<compile_context>
chip_gen: v7x
topology: tpu7x:2x2x1
jax: 0.10.0
libtpu: 0.0.40
codegen_flags: <defaults>
</compile_context>

<pallas_src>
import math
from functools import partial

import jax
import jax.numpy as jnp
from jax import lax
from jax.experimental import pallas as pl
from jax.experimental.pallas import tpu as pltpu


# ---------------------------------------------------------------------------
# Compiler params (generation-aware VMEM limit)
# ---------------------------------------------------------------------------

def _vmem_limit_bytes():
    cap = 64 * 1024 * 1024                      # conservative (v7x physical)
    try:
        info = pltpu.get_tpu_info()
        cap = int(info.vmem_capacity_bytes)
    except Exception:
        pass
    # 3/4 of physical, capped at 96 MiB (v5e/v6e), floored at 32 MiB.
    return max(32 * 1024 * 1024, min((cap * 3) // 4, 96 * 1024 * 1024))


def _compiler_params():
    return pltpu.CompilerParams(
        dimension_semantics=("parallel",),      # batch grid -> shard across TCs
        vmem_limit_bytes=_vmem_limit_bytes(),
    )


def _cost_estimate(batch, seq, d_model, ffn_hidden, num_heads):
    flops = batch * (16 * seq * d_model * d_model       # all projections
                     + 8 * seq * seq * d_model          # QK^T and P@V (x2 blocks)
                     + 4 * seq * d_model * ffn_hidden)  # FFN
    transcendentals = batch * (2 * num_heads * seq * seq     # softmax exp
                               + 2 * num_heads * seq          # softmax recip
                               + 3 * seq)                     # layernorm rsqrt
    bytes_accessed = (batch * (3 * seq * d_model + 2 * seq * seq) * 4   # acts+masks
                      + (8 * d_model * d_model + 2 * d_model * ffn_hidden) * 2
                      + (15 * d_model + ffn_hidden) * 4)
    return pl.CostEstimate(flops=flops, transcendentals=transcendentals,
                           bytes_accessed=bytes_accessed)


# ---------------------------------------------------------------------------
# In-kernel helpers (operate on VMEM values)
# ---------------------------------------------------------------------------

def _layer_norm(t, gamma, beta, eps):
    # Biased variance + rsqrt (EUP), matching torch LayerNormalization. f32.
    mean = jnp.mean(t, axis=-1, keepdims=True)
    var = jnp.mean((t - mean) ** 2, axis=-1, keepdims=True)
    return gamma * ((t - mean) * lax.rsqrt(var + eps)) + beta


def _bcast_heads(t, num_heads):
    # (S, D) f32 -> (H, S, D) bf16, broadcast over the head (major) axis.
    return jnp.broadcast_to(t.astype(jnp.bfloat16)[None], (num_heads,) + t.shape)


def _head_proj(tb, w_ref, b_ref):
    # (H, S, D) bf16 @ (H, D, dh) bf16 -> (H, S, dh) f32, plus (H, 1, dh) bias.
    return jnp.einsum('hsd,hdf->hsf', tb, w_ref[...],
                      preferred_element_type=jnp.float32) + b_ref[...]


def _attention(q, k, v, mask, scale):
    # H-batched attention; MXU operands bf16, softmax statistics f32.
    qs = (q * scale).astype(jnp.bfloat16)        # fold 1/sqrt(dh) into q
    s = jnp.einsum('hqf,hkf->hqk', qs, k.astype(jnp.bfloat16),
                   preferred_element_type=jnp.float32)
    s = s + mask[None]                           # additive mask, bcast over heads
    s = s - jnp.max(s, axis=-1, keepdims=True)
    p = jnp.exp(s)
    p = p * pl.reciprocal(jnp.sum(p, axis=-1, keepdims=True), approx=True)
    return jnp.einsum('hqk,hkf->hqf', p.astype(jnp.bfloat16),
                      v.astype(jnp.bfloat16), preferred_element_type=jnp.float32)


def _merge_heads(vals, wo_ref):
    # Per-head output projection then reduce over the head (major) axis:
    # (H,S,dh) x (H,dh,D) -> (H,S,D) -> sum_h -> (S,D). Equivalent to the torch
    # head concat followed by a single (D, D) projection; no lane concat needed.
    proj = jnp.einsum('hsf,hfd->hsd', vals.astype(jnp.bfloat16), wo_ref[...],
                      preferred_element_type=jnp.float32)
    return jnp.sum(proj, axis=0)


# ---------------------------------------------------------------------------
# Fully fused DecoderLayer kernel (one batch row per grid step)
# ---------------------------------------------------------------------------

def _decoder_layer_kernel(
        y_ref, x_ref, smask_ref, cmask_ref,
        sa_wq, sa_wk, sa_wv, sa_bq, sa_bk, sa_bv, sa_wo, sa_bo, ln1_g, ln1_b,
        ca_wk, ca_wv, ca_bk, ca_bv, ca_wq, ca_bq, ca_wo, ca_bo, ln2_g, ln2_b,
        ffn_w1, ffn_b1, ffn_w2, ffn_b2, ln3_g, ln3_b,
        o_ref, *, num_heads, scale, eps):
    H = num_heads
    y0 = y_ref[0]                      # (S, D) f32  decoder stream
    x0 = x_ref[0]                      # (S, D) f32  encoder output
    smask = smask_ref[0]               # (S, S) f32  additive self-attn mask
    cmask = cmask_ref[0]               # (S, S) f32  additive cross-attn mask

    # ---------------- self-attention + residual + LayerNorm1 ----------------
    yb = _bcast_heads(y0, H)
    q = _head_proj(yb, sa_wq, sa_bq)                   # (H, S, dh)
    k = _head_proj(yb, sa_wk, sa_bk)
    v = _head_proj(yb, sa_wv, sa_bv)
    vals = _attention(q, k, v, smask, scale)           # (H, S, dh)
    sa = _merge_heads(vals, sa_wo) + sa_bo[...]        # (S, D)
    y1 = _layer_norm(sa + y0, ln1_g[...], ln1_b[...], eps)

    # ------------- encoder-decoder cross attention + LayerNorm2 -------------
    xb = _bcast_heads(x0, H)
    y1b = _bcast_heads(y1, H)
    ck = _head_proj(xb, ca_wk, ca_bk)
    cv = _head_proj(xb, ca_wv, ca_bv)
    cq = _head_proj(y1b, ca_wq, ca_bq)
    cvals = _attention(cq, ck, cv, cmask, scale)
    ca = _merge_heads(cvals, ca_wo) + ca_bo[...]
    y2 = _layer_norm(ca + y1, ln2_g[...], ln2_b[...], eps)

    # --------------------- positionwise FFN + LayerNorm3 --------------------
    h = jnp.dot(y2.astype(jnp.bfloat16), ffn_w1[...],
                preferred_element_type=jnp.float32) + ffn_b1[...]
    h = jnp.maximum(h, 0.0)            # ReLU; dropout = identity (eval)
    f = jnp.dot(h.astype(jnp.bfloat16), ffn_w2[...],
                preferred_element_type=jnp.float32) + ffn_b2[...]
    o_ref[0] = _layer_norm(f + y2, ln3_g[...], ln3_b[...], eps)


# ---------------------------------------------------------------------------
# pallas_call wrapper — ONE fused call for the whole layer
# ---------------------------------------------------------------------------

def _weight_spec(arr):
    # Constant index_map: block revisited every grid step -> stays VMEM-resident.
    n = arr.ndim
    return pl.BlockSpec(arr.shape, lambda b, _n=n: (0,) * _n)


def decoder_layer(params, x, y, self_attention_mask, cross_attention_mask, *,
                  num_heads, eps=1e-5):
    B, S, D = y.shape
    dh = D // num_heads
    Hf = params["ffn_w1"].shape[1]

    row_spec = pl.BlockSpec((1, S, D), lambda b: (b, 0, 0))
    mask_spec = pl.BlockSpec((1, S, S), lambda b: (b, 0, 0))

    weights = [
        params["sa_wq"], params["sa_wk"], params["sa_wv"],
        params["sa_bq"], params["sa_bk"], params["sa_bv"],
        params["sa_wo"], params["sa_bo"], params["ln1_g"], params["ln1_b"],
        params["ca_wk"], params["ca_wv"], params["ca_bk"], params["ca_bv"],
        params["ca_wq"], params["ca_bq"], params["ca_wo"], params["ca_bo"],
        params["ln2_g"], params["ln2_b"],
        params["ffn_w1"], params["ffn_b1"], params["ffn_w2"], params["ffn_b2"],
        params["ln3_g"], params["ln3_b"],
    ]

    return pl.pallas_call(
        partial(_decoder_layer_kernel, num_heads=num_heads,
                scale=1.0 / math.sqrt(dh), eps=eps),
        out_shape=jax.ShapeDtypeStruct((B, S, D), jnp.float32),
        grid=(B,),
        in_specs=[row_spec, row_spec, mask_spec, mask_spec]
                 + [_weight_spec(w) for w in weights],
        out_specs=row_spec,
        compiler_params=_compiler_params(),
        cost_estimate=_cost_estimate(B, S, D, Hf, num_heads),
    )(y, x, self_attention_mask, cross_attention_mask, *weights)


# ---------------------------------------------------------------------------
# Parameter init (deterministic; mirrors nn.Linear / LayerNormalization) and
# wrapper-side per-head re-layout (one-time, outside the hot kernel).
# ---------------------------------------------------------------------------

def _linear_params(key, d_in, d_out):
    kw, kb = jax.random.split(key)
    bound = 1.0 / math.sqrt(d_in)
    # stored as (d_in, d_out) so x @ W + b; equivalent to torch weight.T
    w = jax.random.uniform(kw, (d_in, d_out), jnp.float32, -bound, bound)
    b = jax.random.uniform(kb, (d_out,), jnp.float32, -bound, bound)
    return w, b


def init_decoder_params(key, embed_dim, ffn_hidden, num_heads):
    D, H = embed_dim, num_heads
    dh = D // H
    bf16 = jnp.bfloat16
    keys = jax.random.split(key, 7)

    qkv_w, qkv_b = _linear_params(keys[0], D, 3 * D)   # cols: [h][q|k|v] x dh
    sao_w, sao_b = _linear_params(keys[1], D, D)
    kv_w, kv_b = _linear_params(keys[2], D, 2 * D)     # cols: [h][k|v] x dh
    q_w, q_b = _linear_params(keys[3], D, D)
    cao_w, cao_b = _linear_params(keys[4], D, D)
    f1_w, f1_b = _linear_params(keys[5], D, ffn_hidden)
    f2_w, f2_b = _linear_params(keys[6], ffn_hidden, D)

    # Per-head split matching torch reshape(B,S,H,3*dh)/.chunk(...) convention.
    qkv3 = qkv_w.reshape(D, H, 3, dh)
    qkvb3 = qkv_b.reshape(H, 3, dh)
    kv2 = kv_w.reshape(D, H, 2, dh)
    kvb2 = kv_b.reshape(H, 2, dh)

    p = {
        # self-attention
        "sa_wq": jnp.transpose(qkv3[:, :, 0, :], (1, 0, 2)).astype(bf16),  # (H,D,dh)
        "sa_wk": jnp.transpose(qkv3[:, :, 1, :], (1, 0, 2)).astype(bf16),
        "sa_wv": jnp.transpose(qkv3[:, :, 2, :], (1, 0, 2)).astype(bf16),
        "sa_bq": qkvb3[:, 0, :][:, None, :],                               # (H,1,dh) f32
        "sa_bk": qkvb3[:, 1, :][:, None, :],
        "sa_bv": qkvb3[:, 2, :][:, None, :],
        "sa_wo": sao_w.reshape(H, dh, D).astype(bf16),                     # (H,dh,D)
        "sa_bo": sao_b.reshape(1, D),
        "ln1_g": jnp.ones((1, D), jnp.float32),
        "ln1_b": jnp.zeros((1, D), jnp.float32),
        # cross-attention
        "ca_wk": jnp.transpose(kv2[:, :, 0, :], (1, 0, 2)).astype(bf16),
        "ca_wv": jnp.transpose(kv2[:, :, 1, :], (1, 0, 2)).astype(bf16),
        "ca_bk": kvb2[:, 0, :][:, None, :],
        "ca_bv": kvb2[:, 1, :][:, None, :],
        "ca_wq": jnp.transpose(q_w.reshape(D, H, dh), (1, 0, 2)).astype(bf16),
        "ca_bq": q_b.reshape(H, dh)[:, None, :],
        "ca_wo": cao_w.reshape(H, dh, D).astype(bf16),
        "ca_bo": cao_b.reshape(1, D),
        "ln2_g": jnp.ones((1, D), jnp.float32),
        "ln2_b": jnp.zeros((1, D), jnp.float32),
        # FFN
        "ffn_w1": f1_w.astype(bf16),
        "ffn_b1": f1_b.reshape(1, ffn_hidden),
        "ffn_w2": f2_w.astype(bf16),
        "ffn_b2": f2_b.reshape(1, D),
        "ln3_g": jnp.ones((1, D), jnp.float32),
        "ln3_b": jnp.zeros((1, D), jnp.float32),
    }
    return p


# ---------------------------------------------------------------------------
# Main
# ---------------------------------------------------------------------------

if __name__ == "__main__":
    B, S, D = 2, 8, 32
    NUM_HEADS = 4
    FFN_HIDDEN = 64

    key = jax.random.PRNGKey(0)
    k_par, k_x, k_y = jax.random.split(key, 3)

    params = init_decoder_params(k_par, D, FFN_HIDDEN, NUM_HEADS)

    x = jax.random.normal(k_x, (B, S, D), jnp.float32)   # encoder output
    y = jax.random.normal(k_y, (B, S, D), jnp.float32)   # decoder input

    # self-attention mask: causal additive mask (0 / -1e9), broadcast over heads
    causal = jnp.where(
        jnp.arange(S)[:, None] >= jnp.arange(S)[None, :], 0.0, -1e9
    ).astype(jnp.float32)
    self_attention_mask = jnp.broadcast_to(causal, (B, S, S))
    # cross-attention mask: no masking
    cross_attention_mask = jnp.zeros((B, S, S), jnp.float32)

    fwd = jax.jit(partial(decoder_layer, num_heads=NUM_HEADS))
    out = fwd(params, x, y, self_attention_mask, cross_attention_mask)
    jax.block_until_ready(out)

    assert out.shape == (B, S, D) and out.dtype == jnp.float32
    assert bool(jnp.all(jnp.isfinite(out)))
    print("KERNEL_OK")
</pallas_src>

<mosaic_0001>
module attributes {stable_mosaic.version = 11 : i64} {
  func.func @_decoder_layer_kernel(%arg0: i32, %arg1: memref<1x8x32xf32, #tpu.memory_space<vmem>>, %arg2: memref<1x8x32xf32, #tpu.memory_space<vmem>>, %arg3: memref<1x8x8xf32, #tpu.memory_space<vmem>>, %arg4: memref<1x8x8xf32, #tpu.memory_space<vmem>>, %arg5: memref<4x32x8xbf16, #tpu.memory_space<vmem>>, %arg6: memref<4x32x8xbf16, #tpu.memory_space<vmem>>, %arg7: memref<4x32x8xbf16, #tpu.memory_space<vmem>>, %arg8: memref<4x1x8xf32, #tpu.memory_space<vmem>>, %arg9: memref<4x1x8xf32, #tpu.memory_space<vmem>>, %arg10: memref<4x1x8xf32, #tpu.memory_space<vmem>>, %arg11: memref<4x8x32xbf16, #tpu.memory_space<vmem>>, %arg12: memref<1x32xf32, #tpu.memory_space<vmem>>, %arg13: memref<1x32xf32, #tpu.memory_space<vmem>>, %arg14: memref<1x32xf32, #tpu.memory_space<vmem>>, %arg15: memref<4x32x8xbf16, #tpu.memory_space<vmem>>, %arg16: memref<4x32x8xbf16, #tpu.memory_space<vmem>>, %arg17: memref<4x1x8xf32, #tpu.memory_space<vmem>>, %arg18: memref<4x1x8xf32, #tpu.memory_space<vmem>>, %arg19: memref<4x32x8xbf16, #tpu.memory_space<vmem>>, %arg20: memref<4x1x8xf32, #tpu.memory_space<vmem>>, %arg21: memref<4x8x32xbf16, #tpu.memory_space<vmem>>, %arg22: memref<1x32xf32, #tpu.memory_space<vmem>>, %arg23: memref<1x32xf32, #tpu.memory_space<vmem>>, %arg24: memref<1x32xf32, #tpu.memory_space<vmem>>, %arg25: memref<32x64xbf16, #tpu.memory_space<vmem>>, %arg26: memref<1x64xf32, #tpu.memory_space<vmem>>, %arg27: memref<64x32xbf16, #tpu.memory_space<vmem>>, %arg28: memref<1x32xf32, #tpu.memory_space<vmem>>, %arg29: memref<1x32xf32, #tpu.memory_space<vmem>>, %arg30: memref<1x32xf32, #tpu.memory_space<vmem>>, %arg31: memref<1x8x32xf32, #tpu.memory_space<vmem>>) attributes {dimension_semantics = [#tpu.dimension_semantics<parallel>], iteration_bounds = array<i64: 2>, scalar_prefetch = 0 : i64, scratch_operands = 0 : i64, tpu.core_type = #tpu.core_type<tc>, window_params = [{transform_indices = @transform_0, window_bounds = array<i64: 1, 8, 32>}, {transform_indices = @transform_1, window_bounds = array<i64: 1, 8, 32>}, {transform_indices = @transform_2, window_bounds = array<i64: 1, 8, 8>}, {transform_indices = @transform_3, window_bounds = array<i64: 1, 8, 8>}, {pipeline_mode = #tpu.pipeline_mode<synchronous>, transform_indices = @transform_4, window_bounds = array<i64: 4, 32, 8>}, {pipeline_mode = #tpu.pipeline_mode<synchronous>, transform_indices = @transform_5, window_bounds = array<i64: 4, 32, 8>}, {pipeline_mode = #tpu.pipeline_mode<synchronous>, transform_indices = @transform_6, window_bounds = array<i64: 4, 32, 8>}, {pipeline_mode = #tpu.pipeline_mode<synchronous>, transform_indices = @transform_7, window_bounds = array<i64: 4, 1, 8>}, {pipeline_mode = #tpu.pipeline_mode<synchronous>, transform_indices = @transform_8, window_bounds = array<i64: 4, 1, 8>}, {pipeline_mode = #tpu.pipeline_mode<synchronous>, transform_indices = @transform_9, window_bounds = array<i64: 4, 1, 8>}, {pipeline_mode = #tpu.pipeline_mode<synchronous>, transform_indices = @transform_10, window_bounds = array<i64: 4, 8, 32>}, {pipeline_mode = #tpu.pipeline_mode<synchronous>, transform_indices = @transform_11, window_bounds = array<i64: 1, 32>}, {pipeline_mode = #tpu.pipeline_mode<synchronous>, transform_indices = @transform_12, window_bounds = array<i64: 1, 32>}, {pipeline_mode = #tpu.pipeline_mode<synchronous>, transform_indices = @transform_13, window_bounds = array<i64: 1, 32>}, {pipeline_mode = #tpu.pipeline_mode<synchronous>, transform_indices = @transform_14, window_bounds = array<i64: 4, 32, 8>}, {pipeline_mode = #tpu.pipeline_mode<synchronous>, transform_indices = @transform_15, window_bounds = array<i64: 4, 32, 8>}, {pipeline_mode = #tpu.pipeline_mode<synchronous>, transform_indices = @transform_16, window_bounds = array<i64: 4, 1, 8>}, {pipeline_mode = #tpu.pipeline_mode<synchronous>, transform_indices = @transform_17, window_bounds = array<i64: 4, 1, 8>}, {pipeline_mode = #tpu.pipeline_mode<synchronous>, transform_indices = @transform_18, window_bounds = array<i64: 4, 32, 8>}, {pipeline_mode = #tpu.pipeline_mode<synchronous>, transform_indices = @transform_19, window_bounds = array<i64: 4, 1, 8>}, {pipeline_mode = #tpu.pipeline_mode<synchronous>, transform_indices = @transform_20, window_bounds = array<i64: 4, 8, 32>}, {pipeline_mode = #tpu.pipeline_mode<synchronous>, transform_indices = @transform_21, window_bounds = array<i64: 1, 32>}, {pipeline_mode = #tpu.pipeline_mode<synchronous>, transform_indices = @transform_22, window_bounds = array<i64: 1, 32>}, {pipeline_mode = #tpu.pipeline_mode<synchronous>, transform_indices = @transform_23, window_bounds = array<i64: 1, 32>}, {pipeline_mode = #tpu.pipeline_mode<synchronous>, transform_indices = @transform_24, window_bounds = array<i64: 32, 64>}, {pipeline_mode = #tpu.pipeline_mode<synchronous>, transform_indices = @transform_25, window_bounds = array<i64: 1, 64>}, {pipeline_mode = #tpu.pipeline_mode<synchronous>, transform_indices = @transform_26, window_bounds = array<i64: 64, 32>}, {pipeline_mode = #tpu.pipeline_mode<synchronous>, transform_indices = @transform_27, window_bounds = array<i64: 1, 32>}, {pipeline_mode = #tpu.pipeline_mode<synchronous>, transform_indices = @transform_28, window_bounds = array<i64: 1, 32>}, {pipeline_mode = #tpu.pipeline_mode<synchronous>, transform_indices = @transform_29, window_bounds = array<i64: 1, 32>}, {transform_indices = @transform_30, window_bounds = array<i64: 1, 8, 32>}]} {
    %c0 = arith.constant 0 : index
    %c0_0 = arith.constant 0 : index
    %c0_1 = arith.constant 0 : index
    %0 = vector.load %arg1[%c0, %c0_0, %c0_1] : memref<1x8x32xf32, #tpu.memory_space<vmem>>, vector<1x8x32xf32>
    %1 = vector.shape_cast %0 : vector<1x8x32xf32> to vector<8x32xf32>
    %c0_2 = arith.constant 0 : index
    %c0_3 = arith.constant 0 : index
    %c0_4 = arith.constant 0 : index
    %2 = vector.load %arg2[%c0_2, %c0_3, %c0_4] : memref<1x8x32xf32, #tpu.memory_space<vmem>>, vector<1x8x32xf32>
    %3 = vector.shape_cast %2 : vector<1x8x32xf32> to vector<8x32xf32>
    %c0_5 = arith.constant 0 : index
    %c0_6 = arith.constant 0 : index
    %c0_7 = arith.constant 0 : index
    %4 = vector.load %arg3[%c0_5, %c0_6, %c0_7] : memref<1x8x8xf32, #tpu.memory_space<vmem>>, vector<1x8x8xf32>
    %5 = vector.shape_cast %4 : vector<1x8x8xf32> to vector<8x8xf32>
    %c0_8 = arith.constant 0 : index
    %c0_9 = arith.constant 0 : index
    %c0_10 = arith.constant 0 : index
    %6 = vector.load %arg4[%c0_8, %c0_9, %c0_10] : memref<1x8x8xf32, #tpu.memory_space<vmem>>, vector<1x8x8xf32>
    %7 = vector.shape_cast %6 : vector<1x8x8xf32> to vector<8x8xf32>
    %8 = arith.truncf %1 : vector<8x32xf32> to vector<8x32xbf16>
    %9 = vector.shape_cast %8 : vector<8x32xbf16> to vector<1x8x32xbf16>
    %10 = vector.shape_cast %9 : vector<1x8x32xbf16> to vector<1x8x32xbf16>
    %11 = vector.broadcast %10 : vector<1x8x32xbf16> to vector<4x8x32xbf16>
    %c0_11 = arith.constant 0 : index
    %c0_12 = arith.constant 0 : index
    %c0_13 = arith.constant 0 : index
    %12 = vector.load %arg5[%c0_11, %c0_12, %c0_13] : memref<4x32x8xbf16, #tpu.memory_space<vmem>>, vector<4x32x8xbf16>
    "tpu.trace_start"() <{level = 10 : i32, message = "hsd,hdf->hsf"}> : () -> ()
    %cst = arith.constant dense<0.000000e+00> : vector<4x8x8xf32>
    %13 = tpu.matmul %11, %12, %cst {dimension_numbers = #tpu.dot_dimension_numbers<[2], [1], [1], [2], [0, 0, 0, 1, 1, 2], [0], [0]>} : vector<4x8x32xbf16>, vector<4x32x8xbf16>, vector<4x8x8xf32> -> vector<4x8x8xf32>
    "tpu.trace_stop"() : () -> ()
    %c0_14 = arith.constant 0 : index
    %c0_15 = arith.constant 0 : index
    %c0_16 = arith.constant 0 : index
    %14 = vector.load %arg8[%c0_14, %c0_15, %c0_16] : memref<4x1x8xf32, #tpu.memory_space<vmem>>, vector<4x1x8xf32>
    %15 = vector.broadcast %14 : vector<4x1x8xf32> to vector<4x8x8xf32>
    %16 = arith.addf %13, %15 : vector<4x8x8xf32>
    %c0_17 = arith.constant 0 : index
    %c0_18 = arith.constant 0 : index
    %c0_19 = arith.constant 0 : index
    %17 = vector.load %arg6[%c0_17, %c0_18, %c0_19] : memref<4x32x8xbf16, #tpu.memory_space<vmem>>, vector<4x32x8xbf16>
    "tpu.trace_start"() <{level = 10 : i32, message = "hsd,hdf->hsf"}> : () -> ()
    %cst_20 = arith.constant dense<0.000000e+00> : vector<4x8x8xf32>
    %18 = tpu.matmul %11, %17, %cst_20 {dimension_numbers = #tpu.dot_dimension_numbers<[2], [1], [1], [2], [0, 0, 0, 1, 1, 2], [0], [0]>} : vector<4x8x32xbf16>, vector<4x32x8xbf16>, vector<4x8x8xf32> -> vector<4x8x8xf32>
    "tpu.trace_stop"() : () -> ()
    %c0_21 = arith.constant 0 : index
    %c0_22 = arith.constant 0 : index
    %c0_23 = arith.constant 0 : index
    %19 = vector.load %arg9[%c0_21, %c0_22, %c0_23] : memref<4x1x8xf32, #tpu.memory_space<vmem>>, vector<4x1x8xf32>
    %20 = vector.broadcast %19 : vector<4x1x8xf32> to vector<4x8x8xf32>
    %21 = arith.addf %18, %20 : vector<4x8x8xf32>
    %c0_24 = arith.constant 0 : index
    %c0_25 = arith.constant 0 : index
    %c0_26 = arith.constant 0 : index
    %22 = vector.load %arg7[%c0_24, %c0_25, %c0_26] : memref<4x32x8xbf16, #tpu.memory_space<vmem>>, vector<4x32x8xbf16>
    "tpu.trace_start"() <{level = 10 : i32, message = "hsd,hdf->hsf"}> : () -> ()
    %cst_27 = arith.constant dense<0.000000e+00> : vector<4x8x8xf32>
    %23 = tpu.matmul %11, %22, %cst_27 {dimension_numbers = #tpu.dot_dimension_numbers<[2], [1], [1], [2], [0, 0, 0, 1, 1, 2], [0], [0]>} : vector<4x8x32xbf16>, vector<4x32x8xbf16>, vector<4x8x8xf32> -> vector<4x8x8xf32>
    "tpu.trace_stop"() : () -> ()
    %c0_28 = arith.constant 0 : index
    %c0_29 = arith.constant 0 : index
    %c0_30 = arith.constant 0 : index
    %24 = vector.load %arg10[%c0_28, %c0_29, %c0_30] : memref<4x1x8xf32, #tpu.memory_space<vmem>>, vector<4x1x8xf32>
    %25 = vector.broadcast %24 : vector<4x1x8xf32> to vector<4x8x8xf32>
    %26 = arith.addf %23, %25 : vector<4x8x8xf32>
    %cst_31 = arith.constant 0.353553385 : f32
    %27 = vector.broadcast %cst_31 : f32 to vector<4x8x8xf32>
    %28 = arith.mulf %16, %27 : vector<4x8x8xf32>
    %29 = arith.truncf %28 : vector<4x8x8xf32> to vector<4x8x8xbf16>
    %30 = arith.truncf %21 : vector<4x8x8xf32> to vector<4x8x8xbf16>
    "tpu.trace_start"() <{level = 10 : i32, message = "hqf,hkf->hqk"}> : () -> ()
    %cst_32 = arith.constant dense<0.000000e+00> : vector<4x8x8xf32>
    %31 = tpu.matmul %29, %30, %cst_32 {dimension_numbers = #tpu.dot_dimension_numbers<[2], [2], [1], [1], [0, 0, 0, 1, 1, 1], [0], [0]>} : vector<4x8x8xbf16>, vector<4x8x8xbf16>, vector<4x8x8xf32> -> vector<4x8x8xf32>
    "tpu.trace_stop"() : () -> ()
    %32 = vector.shape_cast %5 : vector<8x8xf32> to vector<1x8x8xf32>
    %33 = vector.broadcast %32 : vector<1x8x8xf32> to vector<4x8x8xf32>
    %34 = arith.addf %31, %33 : vector<4x8x8xf32>
    %cst_33 = arith.constant dense<0xFF800000> : vector<4x8xf32>
    %35 = vector.multi_reduction <maximumf>, %34, %cst_33 [2] : vector<4x8x8xf32> to vector<4x8xf32>
    %36 = vector.shape_cast %35 : vector<4x8xf32> to vector<4x8x1xf32>
    %37 = vector.broadcast %36 : vector<4x8x1xf32> to vector<4x8x8xf32>
    %38 = arith.subf %34, %37 : vector<4x8x8xf32>
    %39 = math.exp %38 : vector<4x8x8xf32>
    %cst_34 = arith.constant dense<0.000000e+00> : vector<4x8xf32>
    %40 = vector.multi_reduction <add>, %39, %cst_34 [2] : vector<4x8x8xf32> to vector<4x8xf32>
    %41 = vector.shape_cast %40 : vector<4x8xf32> to vector<4x8x1xf32>
    %42 = tpu.reciprocal %41 {approx = true} : vector<4x8x1xf32> -> vector<4x8x1xf32>
    %43 = vector.broadcast %42 : vector<4x8x1xf32> to vector<4x8x8xf32>
    %44 = arith.mulf %39, %43 : vector<4x8x8xf32>
    %45 = arith.truncf %44 : vector<4x8x8xf32> to vector<4x8x8xbf16>
    %46 = arith.truncf %26 : vector<4x8x8xf32> to vector<4x8x8xbf16>
    "tpu.trace_start"() <{level = 10 : i32, message = "hqk,hkf->hqf"}> : () -> ()
    %cst_35 = arith.constant dense<0.000000e+00> : vector<4x8x8xf32>
    %47 = tpu.matmul %45, %46, %cst_35 {dimension_numbers = #tpu.dot_dimension_numbers<[2], [1], [1], [2], [0, 0, 0, 1, 1, 2], [0], [0]>} : vector<4x8x8xbf16>, vector<4x8x8xbf16>, vector<4x8x8xf32> -> vector<4x8x8xf32>
    "tpu.trace_stop"() : () -> ()
    %48 = arith.truncf %47 : vector<4x8x8xf32> to vector<4x8x8xbf16>
    %c0_36 = arith.constant 0 : index
    %c0_37 = arith.constant 0 : index
    %c0_38 = arith.constant 0 : index
    %49 = vector.load %arg11[%c0_36, %c0_37, %c0_38] : memref<4x8x32xbf16, #tpu.memory_space<vmem>>, vector<4x8x32xbf16>
    "tpu.trace_start"() <{level = 10 : i32, message = "hsf,hfd->hsd"}> : () -> ()
    %cst_39 = arith.constant dense<0.000000e+00> : vector<4x8x32xf32>
    %50 = tpu.matmul %48, %49, %cst_39 {dimension_numbers = #tpu.dot_dimension_numbers<[2], [1], [1], [2], [0, 0, 0, 1, 1, 2], [0], [0]>} : vector<4x8x8xbf16>, vector<4x8x32xbf16>, vector<4x8x32xf32> -> vector<4x8x32xf32>
    "tpu.trace_stop"() : () -> ()
    %cst_40 = arith.constant dense<0.000000e+00> : vector<8x32xf32>
    %51 = vector.multi_reduction <add>, %50, %cst_40 [0] : vector<4x8x32xf32> to vector<8x32xf32>
    %c0_41 = arith.constant 0 : index
    %c0_42 = arith.constant 0 : index
    %52 = vector.load %arg12[%c0_41, %c0_42] : memref<1x32xf32, #tpu.memory_space<vmem>>, vector<1x32xf32>
    %53 = vector.broadcast %52 : vector<1x32xf32> to vector<8x32xf32>
    %54 = arith.addf %51, %53 : vector<8x32xf32>
    %55 = arith.addf %54, %1 : vector<8x32xf32>
    %c0_43 = arith.constant 0 : index
    %c0_44 = arith.constant 0 : index
    %56 = vector.load %arg13[%c0_43, %c0_44] : memref<1x32xf32, #tpu.memory_space<vmem>>, vector<1x32xf32>
    %c0_45 = arith.constant 0 : index
    %c0_46 = arith.constant 0 : index
    %57 = vector.load %arg14[%c0_45, %c0_46] : memref<1x32xf32, #tpu.memory_space<vmem>>, vector<1x32xf32>
    %cst_47 = arith.constant dense<0.000000e+00> : vector<8xf32>
    %58 = vector.multi_reduction <add>, %55, %cst_47 [1] : vector<8x32xf32> to vector<8xf32>
    %59 = vector.shape_cast %58 : vector<8xf32> to vector<8x1xf32>
    %cst_48 = arith.constant 3.200000e+01 : f32
    %60 = vector.broadcast %cst_48 : f32 to vector<8x1xf32>
    %61 = arith.divf %59, %60 : vector<8x1xf32>
    %62 = vector.broadcast %61 : vector<8x1xf32> to vector<8x32xf32>
    %63 = arith.subf %55, %62 : vector<8x32xf32>
    %64 = arith.mulf %63, %63 : vector<8x32xf32>
    %cst_49 = arith.constant dense<0.000000e+00> : vector<8xf32>
    %65 = vector.multi_reduction <add>, %64, %cst_49 [1] : vector<8x32xf32> to vector<8xf32>
    %66 = vector.shape_cast %65 : vector<8xf32> to vector<8x1xf32>
    %cst_50 = arith.constant 3.200000e+01 : f32
    %67 = vector.broadcast %cst_50 : f32 to vector<8x1xf32>
    %68 = arith.divf %66, %67 : vector<8x1xf32>
    %69 = vector.broadcast %61 : vector<8x1xf32> to vector<8x32xf32>
    %70 = arith.subf %55, %69 : vector<8x32xf32>
    %cst_51 = arith.constant 9.99999974E-6 : f32
    %71 = vector.broadcast %cst_51 : f32 to vector<8x1xf32>
    %72 = arith.addf %68, %71 : vector<8x1xf32>
    %73 = math.rsqrt %72 : vector<8x1xf32>
    %74 = vector.broadcast %73 : vector<8x1xf32> to vector<8x32xf32>
    %75 = arith.mulf %70, %74 : vector<8x32xf32>
    %76 = vector.broadcast %56 : vector<1x32xf32> to vector<8x32xf32>
    %77 = arith.mulf %76, %75 : vector<8x32xf32>
    %78 = vector.broadcast %57 : vector<1x32xf32> to vector<8x32xf32>
    %79 = arith.addf %77, %78 : vector<8x32xf32>
    %80 = arith.truncf %3 : vector<8x32xf32> to vector<8x32xbf16>
    %81 = vector.shape_cast %80 : vector<8x32xbf16> to vector<1x8x32xbf16>
    %82 = vector.shape_cast %81 : vector<1x8x32xbf16> to vector<1x8x32xbf16>
    %83 = vector.broadcast %82 : vector<1x8x32xbf16> to vector<4x8x32xbf16>
    %84 = arith.truncf %79 : vector<8x32xf32> to vector<8x32xbf16>
    %85 = vector.shape_cast %84 : vector<8x32xbf16> to vector<1x8x32xbf16>
    %86 = vector.shape_cast %85 : vector<1x8x32xbf16> to vector<1x8x32xbf16>
    %87 = vector.broadcast %86 : vector<1x8x32xbf16> to vector<4x8x32xbf16>
    %c0_52 = arith.constant 0 : index
    %c0_53 = arith.constant 0 : index
    %c0_54 = arith.constant 0 : index
    %88 = vector.load %arg15[%c0_52, %c0_53, %c0_54] : memref<4x32x8xbf16, #tpu.memory_space<vmem>>, vector<4x32x8xbf16>
    "tpu.trace_start"() <{level = 10 : i32, message = "hsd,hdf->hsf"}> : () -> ()
    %cst_55 = arith.constant dense<0.000000e+00> : vector<4x8x8xf32>
    %89 = tpu.matmul %83, %88, %cst_55 {dimension_numbers = #tpu.dot_dimension_numbers<[2], [1], [1], [2], [0, 0, 0, 1, 1, 2], [0], [0]>} : vector<4x8x32xbf16>, vector<4x32x8xbf16>, vector<4x8x8xf32> -> vector<4x8x8xf32>
    "tpu.trace_stop"() : () -> ()
    %c0_56 = arith.constant 0 : index
    %c0_57 = arith.constant 0 : index
    %c0_58 = arith.constant 0 : index
    %90 = vector.load %arg17[%c0_56, %c0_57, %c0_58] : memref<4x1x8xf32, #tpu.memory_space<vmem>>, vector<4x1x8xf32>
    %91 = vector.broadcast %90 : vector<4x1x8xf32> to vector<4x8x8xf32>
    %92 = arith.addf %89, %91 : vector<4x8x8xf32>
    %c0_59 = arith.constant 0 : index
    %c0_60 = arith.constant 0 : index
    %c0_61 = arith.constant 0 : index
    %93 = vector.load %arg16[%c0_59, %c0_60, %c0_61] : memref<4x32x8xbf16, #tpu.memory_space<vmem>>, vector<4x32x8xbf16>
    "tpu.trace_start"() <{level = 10 : i32, message = "hsd,hdf->hsf"}> : () -> ()
    %cst_62 = arith.constant dense<0.000000e+00> : vector<4x8x8xf32>
    %94 = tpu.matmul %83, %93, %cst_62 {dimension_numbers = #tpu.dot_dimension_numbers<[2], [1], [1], [2], [0, 0, 0, 1, 1, 2], [0], [0]>} : vector<4x8x32xbf16>, vector<4x32x8xbf16>, vector<4x8x8xf32> -> vector<4x8x8xf32>
    "tpu.trace_stop"() : () -> ()
    %c0_63 = arith.constant 0 : index
    %c0_64 = arith.constant 0 : index
    %c0_65 = arith.constant 0 : index
    %95 = vector.load %arg18[%c0_63, %c0_64, %c0_65] : memref<4x1x8xf32, #tpu.memory_space<vmem>>, vector<4x1x8xf32>
    %96 = vector.broadcast %95 : vector<4x1x8xf32> to vector<4x8x8xf32>
    %97 = arith.addf %94, %96 : vector<4x8x8xf32>
    %c0_66 = arith.constant 0 : index
    %c0_67 = arith.constant 0 : index
    %c0_68 = arith.constant 0 : index
    %98 = vector.load %arg19[%c0_66, %c0_67, %c0_68] : memref<4x32x8xbf16, #tpu.memory_space<vmem>>, vector<4x32x8xbf16>
    "tpu.trace_start"() <{level = 10 : i32, message = "hsd,hdf->hsf"}> : () -> ()
    %cst_69 = arith.constant dense<0.000000e+00> : vector<4x8x8xf32>
    %99 = tpu.matmul %87, %98, %cst_69 {dimension_numbers = #tpu.dot_dimension_numbers<[2], [1], [1], [2], [0, 0, 0, 1, 1, 2], [0], [0]>} : vector<4x8x32xbf16>, vector<4x32x8xbf16>, vector<4x8x8xf32> -> vector<4x8x8xf32>
    "tpu.trace_stop"() : () -> ()
    %c0_70 = arith.constant 0 : index
    %c0_71 = arith.constant 0 : index
    %c0_72 = arith.constant 0 : index
    %100 = vector.load %arg20[%c0_70, %c0_71, %c0_72] : memref<4x1x8xf32, #tpu.memory_space<vmem>>, vector<4x1x8xf32>
    %101 = vector.broadcast %100 : vector<4x1x8xf32> to vector<4x8x8xf32>
    %102 = arith.addf %99, %101 : vector<4x8x8xf32>
    %cst_73 = arith.constant 0.353553385 : f32
    %103 = vector.broadcast %cst_73 : f32 to vector<4x8x8xf32>
    %104 = arith.mulf %102, %103 : vector<4x8x8xf32>
    %105 = arith.truncf %104 : vector<4x8x8xf32> to vector<4x8x8xbf16>
    %106 = arith.truncf %92 : vector<4x8x8xf32> to vector<4x8x8xbf16>
    "tpu.trace_start"() <{level = 10 : i32, message = "hqf,hkf->hqk"}> : () -> ()
    %cst_74 = arith.constant dense<0.000000e+00> : vector<4x8x8xf32>
    %107 = tpu.matmul %105, %106, %cst_74 {dimension_numbers = #tpu.dot_dimension_numbers<[2], [2], [1], [1], [0, 0, 0, 1, 1, 1], [0], [0]>} : vector<4x8x8xbf16>, vector<4x8x8xbf16>, vector<4x8x8xf32> -> vector<4x8x8xf32>
    "tpu.trace_stop"() : () -> ()
    %108 = vector.shape_cast %7 : vector<8x8xf32> to vector<1x8x8xf32>
    %109 = vector.broadcast %108 : vector<1x8x8xf32> to vector<4x8x8xf32>
    %110 = arith.addf %107, %109 : vector<4x8x8xf32>
    %cst_75 = arith.constant dense<0xFF800000> : vector<4x8xf32>
    %111 = vector.multi_reduction <maximumf>, %110, %cst_75 [2] : vector<4x8x8xf32> to vector<4x8xf32>
    %112 = vector.shape_cast %111 : vector<4x8xf32> to vector<4x8x1xf32>
    %113 = vector.broadcast %112 : vector<4x8x1xf32> to vector<4x8x8xf32>
    %114 = arith.subf %110, %113 : vector<4x8x8xf32>
    %115 = math.exp %114 : vector<4x8x8xf32>
    %cst_76 = arith.constant dense<0.000000e+00> : vector<4x8xf32>
    %116 = vector.multi_reduction <add>, %115, %cst_76 [2] : vector<4x8x8xf32> to vector<4x8xf32>
    %117 = vector.shape_cast %116 : vector<4x8xf32> to vector<4x8x1xf32>
    %118 = tpu.reciprocal %117 {approx = true} : vector<4x8x1xf32> -> vector<4x8x1xf32>
    %119 = vector.broadcast %118 : vector<4x8x1xf32> to vector<4x8x8xf32>
    %120 = arith.mulf %115, %119 : vector<4x8x8xf32>
    %121 = arith.truncf %120 : vector<4x8x8xf32> to vector<4x8x8xbf16>
    %122 = arith.truncf %97 : vector<4x8x8xf32> to vector<4x8x8xbf16>
    "tpu.trace_start"() <{level = 10 : i32, message = "hqk,hkf->hqf"}> : () -> ()
    %cst_77 = arith.constant dense<0.000000e+00> : vector<4x8x8xf32>
    %123 = tpu.matmul %121, %122, %cst_77 {dimension_numbers = #tpu.dot_dimension_numbers<[2], [1], [1], [2], [0, 0, 0, 1, 1, 2], [0], [0]>} : vector<4x8x8xbf16>, vector<4x8x8xbf16>, vector<4x8x8xf32> -> vector<4x8x8xf32>
    "tpu.trace_stop"() : () -> ()
    %124 = arith.truncf %123 : vector<4x8x8xf32> to vector<4x8x8xbf16>
    %c0_78 = arith.constant 0 : index
    %c0_79 = arith.constant 0 : index
    %c0_80 = arith.constant 0 : index
    %125 = vector.load %arg21[%c0_78, %c0_79, %c0_80] : memref<4x8x32xbf16, #tpu.memory_space<vmem>>, vector<4x8x32xbf16>
    "tpu.trace_start"() <{level = 10 : i32, message = "hsf,hfd->hsd"}> : () -> ()
    %cst_81 = arith.constant dense<0.000000e+00> : vector<4x8x32xf32>
    %126 = tpu.matmul %124, %125, %cst_81 {dimension_numbers = #tpu.dot_dimension_numbers<[2], [1], [1], [2], [0, 0, 0, 1, 1, 2], [0], [0]>} : vector<4x8x8xbf16>, vector<4x8x32xbf16>, vector<4x8x32xf32> -> vector<4x8x32xf32>
    "tpu.trace_stop"() : () -> ()
    %cst_82 = arith.constant dense<0.000000e+00> : vector<8x32xf32>
    %127 = vector.multi_reduction <add>, %126, %cst_82 [0] : vector<4x8x32xf32> to vector<8x32xf32>
    %c0_83 = arith.constant 0 : index
    %c0_84 = arith.constant 0 : index
    %128 = vector.load %arg22[%c0_83, %c0_84] : memref<1x32xf32, #tpu.memory_space<vmem>>, vector<1x32xf32>
    %129 = vector.broadcast %128 : vector<1x32xf32> to vector<8x32xf32>
    %130 = arith.addf %127, %129 : vector<8x32xf32>
    %131 = arith.addf %130, %79 : vector<8x32xf32>
    %c0_85 = arith.constant 0 : index
    %c0_86 = arith.constant 0 : index
    %132 = vector.load %arg23[%c0_85, %c0_86] : memref<1x32xf32, #tpu.memory_space<vmem>>, vector<1x32xf32>
    %c0_87 = arith.constant 0 : index
    %c0_88 = arith.constant 0 : index
    %133 = vector.load %arg24[%c0_87, %c0_88] : memref<1x32xf32, #tpu.memory_space<vmem>>, vector<1x32xf32>
    %cst_89 = arith.constant dense<0.000000e+00> : vector<8xf32>
    %134 = vector.multi_reduction <add>, %131, %cst_89 [1] : vector<8x32xf32> to vector<8xf32>
    %135 = vector.shape_cast %134 : vector<8xf32> to vector<8x1xf32>
    %cst_90 = arith.constant 3.200000e+01 : f32
    %136 = vector.broadcast %cst_90 : f32 to vector<8x1xf32>
    %137 = arith.divf %135, %136 : vector<8x1xf32>
    %138 = vector.broadcast %137 : vector<8x1xf32> to vector<8x32xf32>
    %139 = arith.subf %131, %138 : vector<8x32xf32>
    %140 = arith.mulf %139, %139 : vector<8x32xf32>
    %cst_91 = arith.constant dense<0.000000e+00> : vector<8xf32>
    %141 = vector.multi_reduction <add>, %140, %cst_91 [1] : vector<8x32xf32> to vector<8xf32>
    %142 = vector.shape_cast %141 : vector<8xf32> to vector<8x1xf32>
    %cst_92 = arith.constant 3.200000e+01 : f32
    %143 = vector.broadcast %cst_92 : f32 to vector<8x1xf32>
    %144 = arith.divf %142, %143 : vector<8x1xf32>
    %145 = vector.broadcast %137 : vector<8x1xf32> to vector<8x32xf32>
    %146 = arith.subf %131, %145 : vector<8x32xf32>
    %cst_93 = arith.constant 9.99999974E-6 : f32
    %147 = vector.broadcast %cst_93 : f32 to vector<8x1xf32>
    %148 = arith.addf %144, %147 : vector<8x1xf32>
    %149 = math.rsqrt %148 : vector<8x1xf32>
    %150 = vector.broadcast %149 : vector<8x1xf32> to vector<8x32xf32>
    %151 = arith.mulf %146, %150 : vector<8x32xf32>
    %152 = vector.broadcast %132 : vector<1x32xf32> to vector<8x32xf32>
    %153 = arith.mulf %152, %151 : vector<8x32xf32>
    %154 = vector.broadcast %133 : vector<1x32xf32> to vector<8x32xf32>
    %155 = arith.addf %153, %154 : vector<8x32xf32>
    %156 = arith.truncf %155 : vector<8x32xf32> to vector<8x32xbf16>
    %c0_94 = arith.constant 0 : index
    %c0_95 = arith.constant 0 : index
    %157 = vector.load %arg25[%c0_94, %c0_95] : memref<32x64xbf16, #tpu.memory_space<vmem>>, vector<32x64xbf16>
    %cst_96 = arith.constant dense<0.000000e+00> : vector<8x64xf32>
    %158 = tpu.matmul %156, %157, %cst_96 {dimension_numbers = #tpu.dot_dimension_numbers<[1], [0], [0], [1], [0, 0, 1, 1], [], []>} : vector<8x32xbf16>, vector<32x64xbf16>, vector<8x64xf32> -> vector<8x64xf32>
    %c0_97 = arith.constant 0 : index
    %c0_98 = arith.constant 0 : index
    %159 = vector.load %arg26[%c0_97, %c0_98] : memref<1x64xf32, #tpu.memory_space<vmem>>, vector<1x64xf32>
    %160 = vector.broadcast %159 : vector<1x64xf32> to vector<8x64xf32>
    %161 = arith.addf %158, %160 : vector<8x64xf32>
    %cst_99 = arith.constant 0.000000e+00 : f32
    %162 = vector.broadcast %cst_99 : f32 to vector<8x64xf32>
    %163 = arith.maximumf %161, %162 : vector<8x64xf32>
    %164 = arith.truncf %163 : vector<8x64xf32> to vector<8x64xbf16>
    %c0_100 = arith.constant 0 : index
    %c0_101 = arith.constant 0 : index
    %165 = vector.load %arg27[%c0_100, %c0_101] : memref<64x32xbf16, #tpu.memory_space<vmem>>, vector<64x32xbf16>
    %cst_102 = arith.constant dense<0.000000e+00> : vector<8x32xf32>
    %166 = tpu.matmul %164, %165, %cst_102 {dimension_numbers = #tpu.dot_dimension_numbers<[1], [0], [0], [1], [0, 0, 1, 1], [], []>} : vector<8x64xbf16>, vector<64x32xbf16>, vector<8x32xf32> -> vector<8x32xf32>
    %c0_103 = arith.constant 0 : index
    %c0_104 = arith.constant 0 : index
    %167 = vector.load %arg28[%c0_103, %c0_104] : memref<1x32xf32, #tpu.memory_space<vmem>>, vector<1x32xf32>
    %168 = vector.broadcast %167 : vector<1x32xf32> to vector<8x32xf32>
    %169 = arith.addf %166, %168 : vector<8x32xf32>
    %170 = arith.addf %169, %155 : vector<8x32xf32>
    %c0_105 = arith.constant 0 : index
    %c0_106 = arith.constant 0 : index
    %171 = vector.load %arg29[%c0_105, %c0_106] : memref<1x32xf32, #tpu.memory_space<vmem>>, vector<1x32xf32>
    %c0_107 = arith.constant 0 : index
    %c0_108 = arith.constant 0 : index
    %172 = vector.load %arg30[%c0_107, %c0_108] : memref<1x32xf32, #tpu.memory_space<vmem>>, vector<1x32xf32>
    %cst_109 = arith.constant dense<0.000000e+00> : vector<8xf32>
    %173 = vector.multi_reduction <add>, %170, %cst_109 [1] : vector<8x32xf32> to vector<8xf32>
    %174 = vector.shape_cast %173 : vector<8xf32> to vector<8x1xf32>
    %cst_110 = arith.constant 3.200000e+01 : f32
    %175 = vector.broadcast %cst_110 : f32 to vector<8x1xf32>
    %176 = arith.divf %174, %175 : vector<8x1xf32>
    %177 = vector.broadcast %176 : vector<8x1xf32> to vector<8x32xf32>
    %178 = arith.subf %170, %177 : vector<8x32xf32>
    %179 = arith.mulf %178, %178 : vector<8x32xf32>
    %cst_111 = arith.constant dense<0.000000e+00> : vector<8xf32>
    %180 = vector.multi_reduction <add>, %179, %cst_111 [1] : vector<8x32xf32> to vector<8xf32>
    %181 = vector.shape_cast %180 : vector<8xf32> to vector<8x1xf32>
    %cst_112 = arith.constant 3.200000e+01 : f32
    %182 = vector.broadcast %cst_112 : f32 to vector<8x1xf32>
    %183 = arith.divf %181, %182 : vector<8x1xf32>
    %184 = vector.broadcast %176 : vector<8x1xf32> to vector<8x32xf32>
    %185 = arith.subf %170, %184 : vector<8x32xf32>
    %cst_113 = arith.constant 9.99999974E-6 : f32
    %186 = vector.broadcast %cst_113 : f32 to vector<8x1xf32>
    %187 = arith.addf %183, %186 : vector<8x1xf32>
    %188 = math.rsqrt %187 : vector<8x1xf32>
    %189 = vector.broadcast %188 : vector<8x1xf32> to vector<8x32xf32>
    %190 = arith.mulf %185, %189 : vector<8x32xf32>
    %191 = vector.broadcast %171 : vector<1x32xf32> to vector<8x32xf32>
    %192 = arith.mulf %191, %190 : vector<8x32xf32>
    %193 = vector.broadcast %172 : vector<1x32xf32> to vector<8x32xf32>
    %194 = arith.addf %192, %193 : vector<8x32xf32>
    %c0_114 = arith.constant 0 : index
    %c0_115 = arith.constant 0 : index
    %c0_116 = arith.constant 0 : index
    %195 = vector.load %arg31[%c0_114, %c0_115, %c0_116] : memref<1x8x32xf32, #tpu.memory_space<vmem>>, vector<1x8x32xf32>
    %196 = vector.shape_cast %195 : vector<1x8x32xf32> to vector<8x32xf32>
    %197 = vector.shape_cast %194 : vector<8x32xf32> to vector<1x8x32xf32>
    tpu.vector_store %arg31[%c0_114, %c0_115, %c0_116], %197 {strides = array<i32>} : memref<1x8x32xf32, #tpu.memory_space<vmem>>, vector<1x8x32xf32>,
    return
  }
  func.func @transform_0(%arg0: i32) -> (i32, i32, i32) {
    %c0_i32 = arith.constant 0 : i32
    %c0_i32_0 = arith.constant 0 : i32
    %c0_i32_1 = arith.constant 0 : i32
    return %arg0, %c0_i32, %c0_i32_0 : i32, i32, i32
  }
  func.func @transform_1(%arg0: i32) -> (i32, i32, i32) {
    %c0_i32 = arith.constant 0 : i32
    %c0_i32_0 = arith.constant 0 : i32
    %c0_i32_1 = arith.constant 0 : i32
    return %arg0, %c0_i32, %c0_i32_0 : i32, i32, i32
  }
  func.func @transform_2(%arg0: i32) -> (i32, i32, i32) {
    %c0_i32 = arith.constant 0 : i32
    %c0_i32_0 = arith.constant 0 : i32
    %c0_i32_1 = arith.constant 0 : i32
    return %arg0, %c0_i32, %c0_i32_0 : i32, i32, i32
  }
  func.func @transform_3(%arg0: i32) -> (i32, i32, i32) {
    %c0_i32 = arith.constant 0 : i32
    %c0_i32_0 = arith.constant 0 : i32
    %c0_i32_1 = arith.constant 0 : i32
    return %arg0, %c0_i32, %c0_i32_0 : i32, i32, i32
  }
  func.func @transform_4(%arg0: i32) -> (i32, i32, i32) {
    %c0_i32 = arith.constant 0 : i32
    %c0_i32_0 = arith.constant 0 : i32
    %c0_i32_1 = arith.constant 0 : i32
    %c0_i32_2 = arith.constant 0 : i32
    return %c0_i32, %c0_i32_0, %c0_i32_1 : i32, i32, i32
  }
  func.func @transform_5(%arg0: i32) -> (i32, i32, i32) {
    %c0_i32 = arith.constant 0 : i32
    %c0_i32_0 = arith.constant 0 : i32
    %c0_i32_1 = arith.constant 0 : i32
    %c0_i32_2 = arith.constant 0 : i32
    return %c0_i32, %c0_i32_0, %c0_i32_1 : i32, i32, i32
  }
  func.func @transform_6(%arg0: i32) -> (i32, i32, i32) {
    %c0_i32 = arith.constant 0 : i32
    %c0_i32_0 = arith.constant 0 : i32
    %c0_i32_1 = arith.constant 0 : i32
    %c0_i32_2 = arith.constant 0 : i32
    return %c0_i32, %c0_i32_0, %c0_i32_1 : i32, i32, i32
  }
  func.func @transform_7(%arg0: i32) -> (i32, i32, i32) {
    %c0_i32 = arith.constant 0 : i32
    %c0_i32_0 = arith.constant 0 : i32
    %c0_i32_1 = arith.constant 0 : i32
    %c0_i32_2 = arith.constant 0 : i32
    return %c0_i32, %c0_i32_0, %c0_i32_1 : i32, i32, i32
  }
  func.func @transform_8(%arg0: i32) -> (i32, i32, i32) {
    %c0_i32 = arith.constant 0 : i32
    %c0_i32_0 = arith.constant 0 : i32
    %c0_i32_1 = arith.constant 0 : i32
    %c0_i32_2 = arith.constant 0 : i32
    return %c0_i32, %c0_i32_0, %c0_i32_1 : i32, i32, i32
  }
  func.func @transform_9(%arg0: i32) -> (i32, i32, i32) {
    %c0_i32 = arith.constant 0 : i32
    %c0_i32_0 = arith.constant 0 : i32
    %c0_i32_1 = arith.constant 0 : i32
    %c0_i32_2 = arith.constant 0 : i32
    return %c0_i32, %c0_i32_0, %c0_i32_1 : i32, i32, i32
  }
  func.func @transform_10(%arg0: i32) -> (i32, i32, i32) {
    %c0_i32 = arith.constant 0 : i32
    %c0_i32_0 = arith.constant 0 : i32
    %c0_i32_1 = arith.constant 0 : i32
    %c0_i32_2 = arith.constant 0 : i32
    return %c0_i32, %c0_i32_0, %c0_i32_1 : i32, i32, i32
  }
  func.func @transform_11(%arg0: i32) -> (i32, i32) {
    %c0_i32 = arith.constant 0 : i32
    %c0_i32_0 = arith.constant 0 : i32
    %c0_i32_1 = arith.constant 0 : i32
    return %c0_i32, %c0_i32_0 : i32, i32
  }
  func.func @transform_12(%arg0: i32) -> (i32, i32) {
    %c0_i32 = arith.constant 0 : i32
    %c0_i32_0 = arith.constant 0 : i32
    %c0_i32_1 = arith.constant 0 : i32
    return %c0_i32, %c0_i32_0 : i32, i32
  }
  func.func @transform_13(%arg0: i32) -> (i32, i32) {
    %c0_i32 = arith.constant 0 : i32
    %c0_i32_0 = arith.constant 0 : i32
    %c0_i32_1 = arith.constant 0 : i32
    return %c0_i32, %c0_i32_0 : i32, i32
  }
  func.func @transform_14(%arg0: i32) -> (i32, i32, i32) {
    %c0_i32 = arith.constant 0 : i32
    %c0_i32_0 = arith.constant 0 : i32
    %c0_i32_1 = arith.constant 0 : i32
    %c0_i32_2 = arith.constant 0 : i32
    return %c0_i32, %c0_i32_0, %c0_i32_1 : i32, i32, i32
  }
  func.func @transform_15(%arg0: i32) -> (i32, i32, i32) {
    %c0_i32 = arith.constant 0 : i32
    %c0_i32_0 = arith.constant 0 : i32
    %c0_i32_1 = arith.constant 0 : i32
    %c0_i32_2 = arith.constant 0 : i32
    return %c0_i32, %c0_i32_0, %c0_i32_1 : i32, i32, i32
  }
  func.func @transform_16(%arg0: i32) -> (i32, i32, i32) {
    %c0_i32 = arith.constant 0 : i32
    %c0_i32_0 = arith.constant 0 : i32
    %c0_i32_1 = arith.constant 0 : i32
    %c0_i32_2 = arith.constant 0 : i32
    return %c0_i32, %c0_i32_0, %c0_i32_1 : i32, i32, i32
  }
  func.func @transform_17(%arg0: i32) -> (i32, i32, i32) {
    %c0_i32 = arith.constant 0 : i32
    %c0_i32_0 = arith.constant 0 : i32
    %c0_i32_1 = arith.constant 0 : i32
    %c0_i32_2 = arith.constant 0 : i32
    return %c0_i32, %c0_i32_0, %c0_i32_1 : i32, i32, i32
  }
  func.func @transform_18(%arg0: i32) -> (i32, i32, i32) {
    %c0_i32 = arith.constant 0 : i32
    %c0_i32_0 = arith.constant 0 : i32
    %c0_i32_1 = arith.constant 0 : i32
    %c0_i32_2 = arith.constant 0 : i32
    return %c0_i32, %c0_i32_0, %c0_i32_1 : i32, i32, i32
  }
  func.func @transform_19(%arg0: i32) -> (i32, i32, i32) {
    %c0_i32 = arith.constant 0 : i32
    %c0_i32_0 = arith.constant 0 : i32
    %c0_i32_1 = arith.constant 0 : i32
    %c0_i32_2 = arith.constant 0 : i32
    return %c0_i32, %c0_i32_0, %c0_i32_1 : i32, i32, i32
  }
  func.func @transform_20(%arg0: i32) -> (i32, i32, i32) {
    %c0_i32 = arith.constant 0 : i32
    %c0_i32_0 = arith.constant 0 : i32
    %c0_i32_1 = arith.constant 0 : i32
    %c0_i32_2 = arith.constant 0 : i32
    return %c0_i32, %c0_i32_0, %c0_i32_1 : i32, i32, i32
  }
  func.func @transform_21(%arg0: i32) -> (i32, i32) {
    %c0_i32 = arith.constant 0 : i32
    %c0_i32_0 = arith.constant 0 : i32
    %c0_i32_1 = arith.constant 0 : i32
    return %c0_i32, %c0_i32_0 : i32, i32
  }
  func.func @transform_22(%arg0: i32) -> (i32, i32) {
    %c0_i32 = arith.constant 0 : i32
    %c0_i32_0 = arith.constant 0 : i32
    %c0_i32_1 = arith.constant 0 : i32
    return %c0_i32, %c0_i32_0 : i32, i32
  }
  func.func @transform_23(%arg0: i32) -> (i32, i32) {
    %c0_i32 = arith.constant 0 : i32
    %c0_i32_0 = arith.constant 0 : i32
    %c0_i32_1 = arith.constant 0 : i32
    return %c0_i32, %c0_i32_0 : i32, i32
  }
  func.func @transform_24(%arg0: i32) -> (i32, i32) {
    %c0_i32 = arith.constant 0 : i32
    %c0_i32_0 = arith.constant 0 : i32
    %c0_i32_1 = arith.constant 0 : i32
    return %c0_i32, %c0_i32_0 : i32, i32
  }
  func.func @transform_25(%arg0: i32) -> (i32, i32) {
    %c0_i32 = arith.constant 0 : i32
    %c0_i32_0 = arith.constant 0 : i32
    %c0_i32_1 = arith.constant 0 : i32
    return %c0_i32, %c0_i32_0 : i32, i32
  }
  func.func @transform_26(%arg0: i32) -> (i32, i32) {
    %c0_i32 = arith.constant 0 : i32
    %c0_i32_0 = arith.constant 0 : i32
    %c0_i32_1 = arith.constant 0 : i32
    return %c0_i32, %c0_i32_0 : i32, i32
  }
  func.func @transform_27(%arg0: i32) -> (i32, i32) {
    %c0_i32 = arith.constant 0 : i32
    %c0_i32_0 = arith.constant 0 : i32
    %c0_i32_1 = arith.constant 0 : i32
    return %c0_i32, %c0_i32_0 : i32, i32
  }
  func.func @transform_28(%arg0: i32) -> (i32, i32) {
    %c0_i32 = arith.constant 0 : i32
    %c0_i32_0 = arith.constant 0 : i32
    %c0_i32_1 = arith.constant 0 : i32
    return %c0_i32, %c0_i32_0 : i32, i32
  }
  func.func @transform_29(%arg0: i32) -> (i32, i32) {
    %c0_i32 = arith.constant 0 : i32
    %c0_i32_0 = arith.constant 0 : i32
    %c0_i32_1 = arith.constant 0 : i32
    return %c0_i32, %c0_i32_0 : i32, i32
  }
  func.func @transform_30(%arg0: i32) -> (i32, i32, i32) {
    %c0_i32 = arith.constant 0 : i32
    %c0_i32_0 = arith.constant 0 : i32
    %c0_i32_1 = arith.constant 0 : i32
    return %arg0, %c0_i32, %c0_i32_0 : i32, i32, i32
  }
}

</mosaic_0001>

<llo_original>
// kernel: decoder_layer.1
$region0: #{decoder_layer.1}
  #allocation0 [shape = 'u32[]', space=smem, size = 0x4, offset = 0x4, fixed_abs, tag = 'smem constant byte address 0x4 - core index']
  #allocation1 [shape = 'u32[144,128]{1,0:T(1,128)}', space=vmem, size = 0x12000, scoped, tag = 'internal scratch']
  %s0 = inlined_call_operand.smem [shape: u32[31], index: -1, kind: input, shape index: {}]
  %s1 = sld [smem:[%s0]]
  %s2 = scalar_lea.smem %s0, 1
  %s3 = sld [smem:[%s2]]
  %s4 = scalar_lea.smem %s0, 2
  %s5 = sld [smem:[%s4]]
  %s6 = scalar_lea.smem %s0, 3
  %s7 = sld [smem:[%s6]]
  %s8 = scalar_lea.smem %s0, 4
  %s9 = sld [smem:[%s8]]
  %s10 = scalar_lea.smem %s0, 5
  %s11 = sld [smem:[%s10]]
  %s12 = scalar_lea.smem %s0, 6
  %s13 = sld [smem:[%s12]]
  %s14 = scalar_lea.smem %s0, 7
  %s15 = sld [smem:[%s14]]
  %s16 = scalar_lea.smem %s0, 8
  %s17 = sld [smem:[%s16]]
  %s18 = scalar_lea.smem %s0, 9
  %s19 = sld [smem:[%s18]]
  %s20 = scalar_lea.smem %s0, 10
  %s21 = sld [smem:[%s20]]
  %s22 = scalar_lea.smem %s0, 11
  %s23 = sld [smem:[%s22]]
  %s24 = scalar_lea.smem %s0, 12
  %s25 = sld [smem:[%s24]]
  %s26 = scalar_lea.smem %s0, 13
  %s27 = sld [smem:[%s26]]
  %s28 = scalar_lea.smem %s0, 14
  %s29 = sld [smem:[%s28]]
  %s30 = scalar_lea.smem %s0, 15
  %s31 = sld [smem:[%s30]]
  %s32 = scalar_lea.smem %s0, 16
  %s33 = sld [smem:[%s32]]
  %s34 = scalar_lea.smem %s0, 17
  %s35 = sld [smem:[%s34]]
  %s36 = scalar_lea.smem %s0, 18
  %s37 = sld [smem:[%s36]]
  %s38 = scalar_lea.smem %s0, 19
  %s39 = sld [smem:[%s38]]
  %s40 = scalar_lea.smem %s0, 20
  %s41 = sld [smem:[%s40]]
  %s42 = scalar_lea.smem %s0, 21
  %s43 = sld [smem:[%s42]]
  %s44 = scalar_lea.smem %s0, 22
  %s45 = sld [smem:[%s44]]
  %s46 = scalar_lea.smem %s0, 23
  %s47 = sld [smem:[%s46]]
  %s48 = scalar_lea.smem %s0, 24
  %s49 = sld [smem:[%s48]]
  %s50 = scalar_lea.smem %s0, 25
  %s51 = sld [smem:[%s50]]
  %s52 = scalar_lea.smem %s0, 26
  %s53 = sld [smem:[%s52]]
  %s54 = scalar_lea.smem %s0, 27
  %s55 = sld [smem:[%s54]]
  %s56 = scalar_lea.smem %s0, 28
  %s57 = sld [smem:[%s56]]
  %s58 = scalar_lea.smem %s0, 29
  %s59 = sld [smem:[%s58]]
  %s60 = scalar_lea.smem %s0, 30
  %s61 = sld [smem:[%s60]]
  %s62 = sld [smem:[#allocation0]]
  $region153: #{decoder_layer.1} parent=0
    _
  %s64 = ssub.s32 1, %s62
  %s65 = scalar_select 0, %s64, %s62
  $region1: #{decoder_layer.1} parent=0
    #allocation2 [shape = 'u8[8192]{0}', space=vmem, size = 0x2000, scoped, tag = 'output window, operand 0']
    #allocation3 [shape = 's32[2]{0}', space=sflag, size = 0x8, scoped, tag = 'scoped memory for decoder_layer.1']
    %66 = vsyncpa [#allocation3], 0
    %s67 = scalar_lea.sflag [#allocation3], 1
    %68 = vsyncpa %s67, 0
    loop: start=0, step=1, limit=4
    $region2: #{decoder_layer.1} parent=1 // loop_pre_header
      _
    $region3: #{decoder_layer.1} parent=1 // loop_header
      %s70 = sphi 0, %s74
      %p71 = scmp.ge.s32.totalorder %s70, 4
      %s80 = sphi 0, %s82
      %s83 = sphi 0, %s80
      %s84 = sphi 0, %s83
      %s100 = sphi 0, %s84
      %s106 = sphi 0, %s108
      %s109 = sphi 0, %s106
      %s110 = sphi 0, %s109
      %s126 = sphi 0, %s110
      %s132 = sphi 0, %s134
      %s135 = sphi 0, %s132
      %s136 = sphi 0, %s135
      %s152 = sphi 0, %s136
      %s158 = sphi 0, %s160
      %s161 = sphi 0, %s158
      %s162 = sphi 0, %s161
      %s178 = sphi 0, %s162
      %s182 = sphi 0, %s182
      %s184 = sphi 0, %s182
      %s185 = sphi 0, %s184
      %s199 = sphi 0, %s185
      %s203 = sphi 0, %s203
      %s205 = sphi 0, %s203
      %s206 = sphi 0, %s205
      %s220 = sphi 0, %s206
      %s224 = sphi 0, %s224
      %s226 = sphi 0, %s224
      %s227 = sphi 0, %s226
      %s241 = sphi 0, %s227
      %s245 = sphi 0, %s245
      %s247 = sphi 0, %s245
      %s248 = sphi 0, %s247
      %s262 = sphi 0, %s248
      %s266 = sphi 0, %s266
      %s268 = sphi 0, %s266
      %s269 = sphi 0, %s268
      %s283 = sphi 0, %s269
      %s287 = sphi 0, %s287
      %s289 = sphi 0, %s287
      %s290 = sphi 0, %s289
      %s304 = sphi 0, %s290
      %s308 = sphi 0, %s308
      %s310 = sphi 0, %s308
      %s311 = sphi 0, %s310
      %s325 = sphi 0, %s311
      %s329 = sphi 0, %s329
      %s331 = sphi 0, %s329
      %s332 = sphi 0, %s331
      %s346 = sphi 0, %s332
      %s350 = sphi 0, %s350
      %s352 = sphi 0, %s350
      %s353 = sphi 0, %s352
      %s367 = sphi 0, %s353
      %s371 = sphi 0, %s371
      %s373 = sphi 0, %s371
      %s374 = sphi 0, %s373
      %s388 = sphi 0, %s374
      %s392 = sphi 0, %s392
      %s394 = sphi 0, %s392
      %s395 = sphi 0, %s394
      %s409 = sphi 0, %s395
      %s413 = sphi 0, %s413
      %s415 = sphi 0, %s413
      %s416 = sphi 0, %s415
      %s430 = sphi 0, %s416
      %s434 = sphi 0, %s434
      %s436 = sphi 0, %s434
      %s437 = sphi 0, %s436
      %s451 = sphi 0, %s437
      %s455 = sphi 0, %s455
      %s457 = sphi 0, %s455
      %s458 = sphi 0, %s457
      %s472 = sphi 0, %s458
      %s476 = sphi 0, %s476
      %s478 = sphi 0, %s476
      %s479 = sphi 0, %s478
      %s493 = sphi 0, %s479
      %s497 = sphi 0, %s497
      %s499 = sphi 0, %s497
      %s500 = sphi 0, %s499
      %s514 = sphi 0, %s500
      %s518 = sphi 0, %s518
      %s520 = sphi 0, %s518
      %s521 = sphi 0, %s520
      %s535 = sphi 0, %s521
      %s539 = sphi 0, %s539
      %s541 = sphi 0, %s539
      %s542 = sphi 0, %s541
      %s556 = sphi 0, %s542
      %s560 = sphi 0, %s560
      %s562 = sphi 0, %s560
      %s563 = sphi 0, %s562
      %s577 = sphi 0, %s563
      %s581 = sphi 0, %s581
      %s583 = sphi 0, %s581
      %s584 = sphi 0, %s583
      %s598 = sphi 0, %s584
      %s602 = sphi 0, %s602
      %s604 = sphi 0, %s602
      %s605 = sphi 0, %s604
      %s619 = sphi 0, %s605
      %s623 = sphi 0, %s623
      %s625 = sphi 0, %s623
      %s626 = sphi 0, %s625
      %s640 = sphi 0, %s626
      %s644 = sphi 0, %s644
      %s646 = sphi 0, %s644
      %s647 = sphi 0, %s646
      %s661 = sphi 0, %s647
      %s665 = sphi 0, %s665
      %s667 = sphi 0, %s665
      %s668 = sphi 0, %s667
      %s682 = sphi 0, %s668
      %s686 = sphi 0, %s686
      %s688 = sphi 0, %s686
      %s689 = sphi 0, %s688
      %s703 = sphi 0, %s689
      %s707 = sphi 0, %s707
      %s709 = sphi 0, %s707
      %s710 = sphi 0, %s709
      %s724 = sphi 0, %s710
      %s730 = sphi 0, %s732
      %s733 = sphi 0, %s730
      %s734 = sphi 0, %s733
      %s750 = sphi 0, %s734
    $region4: #{decoder_layer.1} parent=1 // loop_header_branch
      %73 = sbr.rel (%p71) target = $region8
    $region5: #{decoder_layer.1} parent=1 // loop_body
      %s75 = ssub.s32 %s70, 1
      %s76 = ssub.s32 %s70, 2
      %s77 = sadd.s32 %s70, 1
      %s78 = ssub.s32 %s70, %s77
      %p79 = scmp.eq.s32.totalorder %s78, 0
      %s81 = sadd.s32 %s80, 1
      %s82 = scalar_select %p79, %s80, %s81
      %p85 = pneg %p79
      %p86 = scmp.eq.s32.totalorder %s70, 1
      %p87 = por %p85, %p86
      %p88 = scmp.ne.s32.totalorder %s80, %s83
      %p89 = scmp.eq.s32.totalorder %s70, 0
      %p90 = por %p88, %p89
      %p91 = scmp.ne.s32.totalorder %s80, %s83
      %p92 = scmp.eq.s32.totalorder %s75, 1
      %p93 = por %p91, %p92
      %p94 = scmp.ne.s32.totalorder %s83, %s84
      %p95 = scmp.eq.s32.totalorder %s75, 0
      %p96 = por %p94, %p95
      %p97 = scmp.ne.s32.totalorder %s83, %s84
      %p98 = scmp.eq.s32.totalorder %s76, 1
      %p99 = por %p97, %p98
      %p101 = scmp.ne.s32.totalorder %s84, %s100
      %p102 = scmp.eq.s32.totalorder %s76, 0
      %p103 = por %p101, %p102
      %s104 = ssub.s32 %s70, %s77
      %p105 = scmp.eq.s32.totalorder %s104, 0
      %s107 = sadd.s32 %s106, 1
      %s108 = scalar_select %p105, %s106, %s107
      %p111 = pneg %p105
      %p112 = scmp.eq.s32.totalorder %s70, 1
      %p113 = por %p111, %p112
      %p114 = scmp.ne.s32.totalorder %s106, %s109
      %p115 = scmp.eq.s32.totalorder %s70, 0
      %p116 = por %p114, %p115
      %p117 = scmp.ne.s32.totalorder %s106, %s109
      %p118 = scmp.eq.s32.totalorder %s75, 1
      %p119 = por %p117, %p118
      %p120 = scmp.ne.s32.totalorder %s109, %s110
      %p121 = scmp.eq.s32.totalorder %s75, 0
      %p122 = por %p120, %p121
      %p123 = scmp.ne.s32.totalorder %s109, %s110
      %p124 = scmp.eq.s32.totalorder %s76, 1
      %p125 = por %p123, %p124
      %p127 = scmp.ne.s32.totalorder %s110, %s126
      %p128 = scmp.eq.s32.totalorder %s76, 0
      %p129 = por %p127, %p128
      %s130 = ssub.s32 %s70, %s77
      %p131 = scmp.eq.s32.totalorder %s130, 0
      %s133 = sadd.s32 %s132, 1
      %s134 = scalar_select %p131, %s132, %s133
      %p137 = pneg %p131
      %p138 = scmp.eq.s32.totalorder %s70, 1
      %p139 = por %p137, %p138
      %p140 = scmp.ne.s32.totalorder %s132, %s135
      %p141 = scmp.eq.s32.totalorder %s70, 0
      %p142 = por %p140, %p141
      %p143 = scmp.ne.s32.totalorder %s132, %s135
      %p144 = scmp.eq.s32.totalorder %s75, 1
      %p145 = por %p143, %p144
      %p146 = scmp.ne.s32.totalorder %s135, %s136
      %p147 = scmp.eq.s32.totalorder %s75, 0
      %p148 = por %p146, %p147
      %p149 = scmp.ne.s32.totalorder %s135, %s136
      %p150 = scmp.eq.s32.totalorder %s76, 1
      %p151 = por %p149, %p150
      %p153 = scmp.ne.s32.totalorder %s136, %s152
      %p154 = scmp.eq.s32.totalorder %s76, 0
      %p155 = por %p153, %p154
      %s156 = ssub.s32 %s70, %s77
      %p157 = scmp.eq.s32.totalorder %s156, 0
      %s159 = sadd.s32 %s158, 1
      %s160 = scalar_select %p157, %s158, %s159
      %p163 = pneg %p157
      %p164 = scmp.eq.s32.totalorder %s70, 1
      %p165 = por %p163, %p164
      %p166 = scmp.ne.s32.totalorder %s158, %s161
      %p167 = scmp.eq.s32.totalorder %s70, 0
      %p168 = por %p166, %p167
      %p169 = scmp.ne.s32.totalorder %s158, %s161
      %p170 = scmp.eq.s32.totalorder %s75, 1
      %p171 = por %p169, %p170
      %p172 = scmp.ne.s32.totalorder %s161, %s162
      %p173 = scmp.eq.s32.totalorder %s75, 0
      %p174 = por %p172, %p173
      %p175 = scmp.ne.s32.totalorder %s161, %s162
      %p176 = scmp.eq.s32.totalorder %s76, 1
      %p177 = por %p175, %p176
      %p179 = scmp.ne.s32.totalorder %s162, %s178
      %p180 = scmp.eq.s32.totalorder %s76, 0
      %p181 = por %p179, %p180
      %s183 = sadd.s32 %s182, 1
      %p186 = scmp.eq.s32.totalorder %s70, 1
      %p187 = scmp.ne.s32.totalorder %s182, %s184
      %p188 = scmp.eq.s32.totalorder %s70, 0
      %p189 = por %p187, %p188
      %p190 = scmp.ne.s32.totalorder %s182, %s184
      %p191 = scmp.eq.s32.totalorder %s75, 1
      %p192 = por %p190, %p191
      %p193 = scmp.ne.s32.totalorder %s184, %s185
      %p194 = scmp.eq.s32.totalorder %s75, 0
      %p195 = por %p193, %p194
      %p196 = scmp.ne.s32.totalorder %s184, %s185
      %p197 = scmp.eq.s32.totalorder %s76, 1
      %p198 = por %p196, %p197
      %p200 = scmp.ne.s32.totalorder %s185, %s199
      %p201 = scmp.eq.s32.totalorder %s76, 0
      %p202 = por %p200, %p201
      %s204 = sadd.s32 %s203, 1
      %p207 = scmp.eq.s32.totalorder %s70, 1
      %p208 = scmp.ne.s32.totalorder %s203, %s205
      %p209 = scmp.eq.s32.totalorder %s70, 0
      %p210 = por %p208, %p209
      %p211 = scmp.ne.s32.totalorder %s203, %s205
      %p212 = scmp.eq.s32.totalorder %s75, 1
      %p213 = por %p211, %p212
      %p214 = scmp.ne.s32.totalorder %s205, %s206
      %p215 = scmp.eq.s32.totalorder %s75, 0
      %p216 = por %p214, %p215
      %p217 = scmp.ne.s32.totalorder %s205, %s206
      %p218 = scmp.eq.s32.totalorder %s76, 1
      %p219 = por %p217, %p218
      %p221 = scmp.ne.s32.totalorder %s206, %s220
      %p222 = scmp.eq.s32.totalorder %s76, 0
      %p223 = por %p221, %p222
      %s225 = sadd.s32 %s224, 1
      %p228 = scmp.eq.s32.totalorder %s70, 1
      %p229 = scmp.ne.s32.totalorder %s224, %s226
      %p230 = scmp.eq.s32.totalorder %s70, 0
      %p231 = por %p229, %p230
      %p232 = scmp.ne.s32.totalorder %s224, %s226
      %p233 = scmp.eq.s32.totalorder %s75, 1
      %p234 = por %p232, %p233
      %p235 = scmp.ne.s32.totalorder %s226, %s227
      %p236 = scmp.eq.s32.totalorder %s75, 0
      %p237 = por %p235, %p236
      %p238 = scmp.ne.s32.totalorder %s226, %s227
      %p239 = scmp.eq.s32.totalorder %s76, 1
      %p240 = por %p238, %p239
      %p242 = scmp.ne.s32.totalorder %s227, %s241
      %p243 = scmp.eq.s32.totalorder %s76, 0
      %p244 = por %p242, %p243
      %s246 = sadd.s32 %s245, 1
      %p249 = scmp.eq.s32.totalorder %s70, 1
      %p250 = scmp.ne.s32.totalorder %s245, %s247
      %p251 = scmp.eq.s32.totalorder %s70, 0
      %p252 = por %p250, %p251
      %p253 = scmp.ne.s32.totalorder %s245, %s247
      %p254 = scmp.eq.s32.totalorder %s75, 1
      %p255 = por %p253, %p254
      %p256 = scmp.ne.s32.totalorder %s247, %s248
      %p257 = scmp.eq.s32.totalorder %s75, 0
      %p258 = por %p256, %p257
      %p259 = scmp.ne.s32.totalorder %s247, %s248
      %p260 = scmp.eq.s32.totalorder %s76, 1
      %p261 = por %p259, %p260
      %p263 = scmp.ne.s32.totalorder %s248, %s262
      %p264 = scmp.eq.s32.totalorder %s76, 0
      %p265 = por %p263, %p264
      %s267 = sadd.s32 %s266, 1
      %p270 = scmp.eq.s32.totalorder %s70, 1
      %p271 = scmp.ne.s32.totalorder %s266, %s268
      %p272 = scmp.eq.s32.totalorder %s70, 0
      %p273 = por %p271, %p272
      %p274 = scmp.ne.s32.totalorder %s266, %s268
      %p275 = scmp.eq.s32.totalorder %s75, 1
      %p276 = por %p274, %p275
      %p277 = scmp.ne.s32.totalorder %s268, %s269
      %p278 = scmp.eq.s32.totalorder %s75, 0
      %p279 = por %p277, %p278
      %p280 = scmp.ne.s32.totalorder %s268, %s269
      %p281 = scmp.eq.s32.totalorder %s76, 1
      %p282 = por %p280, %p281
      %p284 = scmp.ne.s32.totalorder %s269, %s283
      %p285 = scmp.eq.s32.totalorder %s76, 0
      %p286 = por %p284, %p285
      %s288 = sadd.s32 %s287, 1
      %p291 = scmp.eq.s32.totalorder %s70, 1
      %p292 = scmp.ne.s32.totalorder %s287, %s289
      %p293 = scmp.eq.s32.totalorder %s70, 0
      %p294 = por %p292, %p293
      %p295 = scmp.ne.s32.totalorder %s287, %s289
      %p296 = scmp.eq.s32.totalorder %s75, 1
      %p297 = por %p295, %p296
      %p298 = scmp.ne.s32.totalorder %s289, %s290
      %p299 = scmp.eq.s32.totalorder %s75, 0
      %p300 = por %p298, %p299
      %p301 = scmp.ne.s32.totalorder %s289, %s290
      %p302 = scmp.eq.s32.totalorder %s76, 1
      %p303 = por %p301, %p302
      %p305 = scmp.ne.s32.totalorder %s290, %s304
      %p306 = scmp.eq.s32.totalorder %s76, 0
      %p307 = por %p305, %p306
      %s309 = sadd.s32 %s308, 1
      %p312 = scmp.eq.s32.totalorder %s70, 1
      %p313 = scmp.ne.s32.totalorder %s308, %s310
      %p314 = scmp.eq.s32.totalorder %s70, 0
      %p315 = por %p313, %p314
      %p316 = scmp.ne.s32.totalorder %s308, %s310
      %p317 = scmp.eq.s32.totalorder %s75, 1
      %p318 = por %p316, %p317
      %p319 = scmp.ne.s32.totalorder %s310, %s311
      %p320 = scmp.eq.s32.totalorder %s75, 0
      %p321 = por %p319, %p320
      %p322 = scmp.ne.s32.totalorder %s310, %s311
      %p323 = scmp.eq.s32.totalorder %s76, 1
      %p324 = por %p322, %p323
      %p326 = scmp.ne.s32.totalorder %s311, %s325
      %p327 = scmp.eq.s32.totalorder %s76, 0
      %p328 = por %p326, %p327
      %s330 = sadd.s32 %s329, 1
      %p333 = scmp.eq.s32.totalorder %s70, 1
      %p334 = scmp.ne.s32.totalorder %s329, %s331
      %p335 = scmp.eq.s32.totalorder %s70, 0
      %p336 = por %p334, %p335
      %p337 = scmp.ne.s32.totalorder %s329, %s331
      %p338 = scmp.eq.s32.totalorder %s75, 1
      %p339 = por %p337, %p338
      %p340 = scmp.ne.s32.totalorder %s331, %s332
      %p341 = scmp.eq.s32.totalorder %s75, 0
      %p342 = por %p340, %p341
      %p343 = scmp.ne.s32.totalorder %s331, %s332
      %p344 = scmp.eq.s32.totalorder %s76, 1
      %p345 = por %p343, %p344
      %p347 = scmp.ne.s32.totalorder %s332, %s346
      %p348 = scmp.eq.s32.totalorder %s76, 0
      %p349 = por %p347, %p348
      %s351 = sadd.s32 %s350, 1
      %p354 = scmp.eq.s32.totalorder %s70, 1
      %p355 = scmp.ne.s32.totalorder %s350, %s352
      %p356 = scmp.eq.s32.totalorder %s70, 0
      %p357 = por %p355, %p356
      %p358 = scmp.ne.s32.totalorder %s350, %s352
      %p359 = scmp.eq.s32.totalorder %s75, 1
      %p360 = por %p358, %p359
      %p361 = scmp.ne.s32.totalorder %s352, %s353
      %p362 = scmp.eq.s32.totalorder %s75, 0
      %p363 = por %p361, %p362
      %p364 = scmp.ne.s32.totalorder %s352, %s353
      %p365 = scmp.eq.s32.totalorder %s76, 1
      %p366 = por %p364, %p365
      %p368 = scmp.ne.s32.totalorder %s353, %s367
      %p369 = scmp.eq.s32.totalorder %s76, 0
      %p370 = por %p368, %p369
      %s372 = sadd.s32 %s371, 1
      %p375 = scmp.eq.s32.totalorder %s70, 1
      %p376 = scmp.ne.s32.totalorder %s371, %s373
      %p377 = scmp.eq.s32.totalorder %s70, 0
      %p378 = por %p376, %p377
      %p379 = scmp.ne.s32.totalorder %s371, %s373
      %p380 = scmp.eq.s32.totalorder %s75, 1
      %p381 = por %p379, %p380
      %p382 = scmp.ne.s32.totalorder %s373, %s374
      %p383 = scmp.eq.s32.totalorder %s75, 0
      %p384 = por %p382, %p383
      %p385 = scmp.ne.s32.totalorder %s373, %s374
      %p386 = scmp.eq.s32.totalorder %s76, 1
      %p387 = por %p385, %p386
      %p389 = scmp.ne.s32.totalorder %s374, %s388
      %p390 = scmp.eq.s32.totalorder %s76, 0
      %p391 = por %p389, %p390
      %s393 = sadd.s32 %s392, 1
      %p396 = scmp.eq.s32.totalorder %s70, 1
      %p397 = scmp.ne.s32.totalorder %s392, %s394
      %p398 = scmp.eq.s32.totalorder %s70, 0
      %p399 = por %p397, %p398
      %p400 = scmp.ne.s32.totalorder %s392, %s394
      %p401 = scmp.eq.s32.totalorder %s75, 1
      %p402 = por %p400, %p401
      %p403 = scmp.ne.s32.totalorder %s394, %s395
      %p404 = scmp.eq.s32.totalorder %s75, 0
      %p405 = por %p403, %p404
      %p406 = scmp.ne.s32.totalorder %s394, %s395
      %p407 = scmp.eq.s32.totalorder %s76, 1
      %p408 = por %p406, %p407
      %p410 = scmp.ne.s32.totalorder %s395, %s409
      %p411 = scmp.eq.s32.totalorder %s76, 0
      %p412 = por %p410, %p411
      %s414 = sadd.s32 %s413, 1
      %p417 = scmp.eq.s32.totalorder %s70, 1
      %p418 = scmp.ne.s32.totalorder %s413, %s415
      %p419 = scmp.eq.s32.totalorder %s70, 0
      %p420 = por %p418, %p419
      %p421 = scmp.ne.s32.totalorder %s413, %s415
      %p422 = scmp.eq.s32.totalorder %s75, 1
      %p423 = por %p421, %p422
      %p424 = scmp.ne.s32.totalorder %s415, %s416
      %p425 = scmp.eq.s32.totalorder %s75, 0
      %p426 = por %p424, %p425
      %p427 = scmp.ne.s32.totalorder %s415, %s416
      %p428 = scmp.eq.s32.totalorder %s76, 1
      %p429 = por %p427, %p428
      %p431 = scmp.ne.s32.totalorder %s416, %s430
      %p432 = scmp.eq.s32.totalorder %s76, 0
      %p433 = por %p431, %p432
      %s435 = sadd.s32 %s434, 1
      %p438 = scmp.eq.s32.totalorder %s70, 1
      %p439 = scmp.ne.s32.totalorder %s434, %s436
      %p440 = scmp.eq.s32.totalorder %s70, 0
      %p441 = por %p439, %p440
      %p442 = scmp.ne.s32.totalorder %s434, %s436
      %p443 = scmp.eq.s32.totalorder %s75, 1
      %p444 = por %p442, %p443
      %p445 = scmp.ne.s32.totalorder %s436, %s437
      %p446 = scmp.eq.s32.totalorder %s75, 0
      %p447 = por %p445, %p446
      %p448 = scmp.ne.s32.totalorder %s436, %s437
      %p449 = scmp.eq.s32.totalorder %s76, 1
      %p450 = por %p448, %p449
      %p452 = scmp.ne.s32.totalorder %s437, %s451
      %p453 = scmp.eq.s32.totalorder %s76, 0
      %p454 = por %p452, %p453
      %s456 = sadd.s32 %s455, 1
      %p459 = scmp.eq.s32.totalorder %s70, 1
      %p460 = scmp.ne.s32.totalorder %s455, %s457
      %p461 = scmp.eq.s32.totalorder %s70, 0
      %p462 = por %p460, %p461
      %p463 = scmp.ne.s32.totalorder %s455, %s457
      %p464 = scmp.eq.s32.totalorder %s75, 1
      %p465 = por %p463, %p464
      %p466 = scmp.ne.s32.totalorder %s457, %s458
      %p467 = scmp.eq.s32.totalorder %s75, 0
      %p468 = por %p466, %p467
      %p469 = scmp.ne.s32.totalorder %s457, %s458
      %p470 = scmp.eq.s32.totalorder %s76, 1
      %p471 = por %p469, %p470
      %p473 = scmp.ne.s32.totalorder %s458, %s472
      %p474 = scmp.eq.s32.totalorder %s76, 0
      %p475 = por %p473, %p474
      %s477 = sadd.s32 %s476, 1
      %p480 = scmp.eq.s32.totalorder %s70, 1
      %p481 = scmp.ne.s32.totalorder %s476, %s478
      %p482 = scmp.eq.s32.totalorder %s70, 0
      %p483 = por %p481, %p482
      %p484 = scmp.ne.s32.totalorder %s476, %s478
      %p485 = scmp.eq.s32.totalorder %s75, 1
      %p486 = por %p484, %p485
      %p487 = scmp.ne.s32.totalorder %s478, %s479
      %p488 = scmp.eq.s32.totalorder %s75, 0
      %p489 = por %p487, %p488
      %p490 = scmp.ne.s32.totalorder %s478, %s479
      %p491 = scmp.eq.s32.totalorder %s76, 1
      %p492 = por %p490, %p491
      %p494 = scmp.ne.s32.totalorder %s479, %s493
      %p495 = scmp.eq.s32.totalorder %s76, 0
      %p496 = por %p494, %p495
      %s498 = sadd.s32 %s497, 1
      %p501 = scmp.eq.s32.totalorder %s70, 1
      %p502 = scmp.ne.s32.totalorder %s497, %s499
      %p503 = scmp.eq.s32.totalorder %s70, 0
      %p504 = por %p502, %p503
      %p505 = scmp.ne.s32.totalorder %s497, %s499
      %p506 = scmp.eq.s32.totalorder %s75, 1
      %p507 = por %p505, %p506
      %p508 = scmp.ne.s32.totalorder %s499, %s500
      %p509 = scmp.eq.s32.totalorder %s75, 0
      %p510 = por %p508, %p509
      %p511 = scmp.ne.s32.totalorder %s499, %s500
      %p512 = scmp.eq.s32.totalorder %s76, 1
      %p513 = por %p511, %p512
      %p515 = scmp.ne.s32.totalorder %s500, %s514
      %p516 = scmp.eq.s32.totalorder %s76, 0
      %p517 = por %p515, %p516
      %s519 = sadd.s32 %s518, 1
      %p522 = scmp.eq.s32.totalorder %s70, 1
      %p523 = scmp.ne.s32.totalorder %s518, %s520
      %p524 = scmp.eq.s32.totalorder %s70, 0
      %p525 = por %p523, %p524
      %p526 = scmp.ne.s32.totalorder %s518, %s520
      %p527 = scmp.eq.s32.totalorder %s75, 1
      %p528 = por %p526, %p527
      %p529 = scmp.ne.s32.totalorder %s520, %s521
      %p530 = scmp.eq.s32.totalorder %s75, 0
      %p531 = por %p529, %p530
      %p532 = scmp.ne.s32.totalorder %s520, %s521
      %p533 = scmp.eq.s32.totalorder %s76, 1
      %p534 = por %p532, %p533
      %p536 = scmp.ne.s32.totalorder %s521, %s535
      %p537 = scmp.eq.s32.totalorder %s76, 0
      %p538 = por %p536, %p537
      %s540 = sadd.s32 %s539, 1
      %p543 = scmp.eq.s32.totalorder %s70, 1
      %p544 = scmp.ne.s32.totalorder %s539, %s541
      %p545 = scmp.eq.s32.totalorder %s70, 0
      %p546 = por %p544, %p545
      %p547 = scmp.ne.s32.totalorder %s539, %s541
      %p548 = scmp.eq.s32.totalorder %s75, 1
      %p549 = por %p547, %p548
      %p550 = scmp.ne.s32.totalorder %s541, %s542
      %p551 = scmp.eq.s32.totalorder %s75, 0
      %p552 = por %p550, %p551
      %p553 = scmp.ne.s32.totalorder %s541, %s542
      %p554 = scmp.eq.s32.totalorder %s76, 1
      %p555 = por %p553, %p554
      %p557 = scmp.ne.s32.totalorder %s542, %s556
      %p558 = scmp.eq.s32.totalorder %s76, 0
      %p559 = por %p557, %p558
      %s561 = sadd.s32 %s560, 1
      %p564 = scmp.eq.s32.totalorder %s70, 1
      %p565 = scmp.ne.s32.totalorder %s560, %s562
      %p566 = scmp.eq.s32.totalorder %s70, 0
      %p567 = por %p565, %p566
      %p568 = scmp.ne.s32.totalorder %s560, %s562
      %p569 = scmp.eq.s32.totalorder %s75, 1
      %p570 = por %p568, %p569
      %p571 = scmp.ne.s32.totalorder %s562, %s563
      %p572 = scmp.eq.s32.totalorder %s75, 0
      %p573 = por %p571, %p572
      %p574 = scmp.ne.s32.totalorder %s562, %s563
      %p575 = scmp.eq.s32.totalorder %s76, 1
      %p576 = por %p574, %p575
      %p578 = scmp.ne.s32.totalorder %s563, %s577
      %p579 = scmp.eq.s32.totalorder %s76, 0
      %p580 = por %p578, %p579
      %s582 = sadd.s32 %s581, 1
      %p585 = scmp.eq.s32.totalorder %s70, 1
      %p586 = scmp.ne.s32.totalorder %s581, %s583
      %p587 = scmp.eq.s32.totalorder %s70, 0
      %p588 = por %p586, %p587
      %p589 = scmp.ne.s32.totalorder %s581, %s583
      %p590 = scmp.eq.s32.totalorder %s75, 1
      %p591 = por %p589, %p590
      %p592 = scmp.ne.s32.totalorder %s583, %s584
      %p593 = scmp.eq.s32.totalorder %s75, 0
      %p594 = por %p592, %p593
      %p595 = scmp.ne.s32.totalorder %s583, %s584
      %p596 = scmp.eq.s32.totalorder %s76, 1
      %p597 = por %p595, %p596
      %p599 = scmp.ne.s32.totalorder %s584, %s598
      %p600 = scmp.eq.s32.totalorder %s76, 0
      %p601 = por %p599, %p600
      %s603 = sadd.s32 %s602, 1
      %p606 = scmp.eq.s32.totalorder %s70, 1
      %p607 = scmp.ne.s32.totalorder %s602, %s604
      %p608 = scmp.eq.s32.totalorder %s70, 0
      %p609 = por %p607, %p608
      %p610 = scmp.ne.s32.totalorder %s602, %s604
      %p611 = scmp.eq.s32.totalorder %s75, 1
      %p612 = por %p610, %p611
      %p613 = scmp.ne.s32.totalorder %s604, %s605
      %p614 = scmp.eq.s32.totalorder %s75, 0
      %p615 = por %p613, %p614
      %p616 = scmp.ne.s32.totalorder %s604, %s605
      %p617 = scmp.eq.s32.totalorder %s76, 1
      %p618 = por %p616, %p617
      %p620 = scmp.ne.s32.totalorder %s605, %s619
      %p621 = scmp.eq.s32.totalorder %s76, 0
      %p622 = por %p620, %p621
      %s624 = sadd.s32 %s623, 1
      %p627 = scmp.eq.s32.totalorder %s70, 1
      %p628 = scmp.ne.s32.totalorder %s623, %s625
      %p629 = scmp.eq.s32.totalorder %s70, 0
      %p630 = por %p628, %p629
      %p631 = scmp.ne.s32.totalorder %s623, %s625
      %p632 = scmp.eq.s32.totalorder %s75, 1
      %p633 = por %p631, %p632
      %p634 = scmp.ne.s32.totalorder %s625, %s626
      %p635 = scmp.eq.s32.totalorder %s75, 0
      %p636 = por %p634, %p635
      %p637 = scmp.ne.s32.totalorder %s625, %s626
      %p638 = scmp.eq.s32.totalorder %s76, 1
      %p639 = por %p637, %p638
      %p641 = scmp.ne.s32.totalorder %s626, %s640
      %p642 = scmp.eq.s32.totalorder %s76, 0
      %p643 = por %p641, %p642
      %s645 = sadd.s32 %s644, 1
      %p648 = scmp.eq.s32.totalorder %s70, 1
      %p649 = scmp.ne.s32.totalorder %s644, %s646
      %p650 = scmp.eq.s32.totalorder %s70, 0
      %p651 = por %p649, %p650
      %p652 = scmp.ne.s32.totalorder %s644, %s646
      %p653 = scmp.eq.s32.totalorder %s75, 1
      %p654 = por %p652, %p653
      %p655 = scmp.ne.s32.totalorder %s646, %s647
      %p656 = scmp.eq.s32.totalorder %s75, 0
      %p657 = por %p655, %p656
      %p658 = scmp.ne.s32.totalorder %s646, %s647
      %p659 = scmp.eq.s32.totalorder %s76, 1
      %p660 = por %p658, %p659
      %p662 = scmp.ne.s32.totalorder %s647, %s661
      %p663 = scmp.eq.s32.totalorder %s76, 0
      %p664 = por %p662, %p663
      %s666 = sadd.s32 %s665, 1
      %p669 = scmp.eq.s32.totalorder %s70, 1
      %p670 = scmp.ne.s32.totalorder %s665, %s667
      %p671 = scmp.eq.s32.totalorder %s70, 0
      %p672 = por %p670, %p671
      %p673 = scmp.ne.s32.totalorder %s665, %s667
      %p674 = scmp.eq.s32.totalorder %s75, 1
      %p675 = por %p673, %p674
      %p676 = scmp.ne.s32.totalorder %s667, %s668
      %p677 = scmp.eq.s32.totalorder %s75, 0
      %p678 = por %p676, %p677
      %p679 = scmp.ne.s32.totalorder %s667, %s668
      %p680 = scmp.eq.s32.totalorder %s76, 1
      %p681 = por %p679, %p680
      %p683 = scmp.ne.s32.totalorder %s668, %s682
      %p684 = scmp.eq.s32.totalorder %s76, 0
      %p685 = por %p683, %p684
      %s687 = sadd.s32 %s686, 1
      %p690 = scmp.eq.s32.totalorder %s70, 1
      %p691 = scmp.ne.s32.totalorder %s686, %s688
      %p692 = scmp.eq.s32.totalorder %s70, 0
      %p693 = por %p691, %p692
      %p694 = scmp.ne.s32.totalorder %s686, %s688
      %p695 = scmp.eq.s32.totalorder %s75, 1
      %p696 = por %p694, %p695
      %p697 = scmp.ne.s32.totalorder %s688, %s689
      %p698 = scmp.eq.s32.totalorder %s75, 0
      %p699 = por %p697, %p698
      %p700 = scmp.ne.s32.totalorder %s688, %s689
      %p701 = scmp.eq.s32.totalorder %s76, 1
      %p702 = por %p700, %p701
      %p704 = scmp.ne.s32.totalorder %s689, %s703
      %p705 = scmp.eq.s32.totalorder %s76, 0
      %p706 = por %p704, %p705
      %s708 = sadd.s32 %s707, 1
      %p711 = scmp.eq.s32.totalorder %s70, 1
      %p712 = scmp.ne.s32.totalorder %s707, %s709
      %p713 = scmp.eq.s32.totalorder %s70, 0
      %p714 = por %p712, %p713
      %p715 = scmp.ne.s32.totalorder %s707, %s709
      %p716 = scmp.eq.s32.totalorder %s75, 1
      %p717 = por %p715, %p716
      %p718 = scmp.ne.s32.totalorder %s709, %s710
      %p719 = scmp.eq.s32.totalorder %s75, 0
      %p720 = por %p718, %p719
      %p721 = scmp.ne.s32.totalorder %s709, %s710
      %p722 = scmp.eq.s32.totalorder %s76, 1
      %p723 = por %p721, %p722
      %p725 = scmp.ne.s32.totalorder %s710, %s724
      %p726 = scmp.eq.s32.totalorder %s76, 0
      %p727 = por %p725, %p726
      %s728 = ssub.s32 %s70, %s77
      %p729 = scmp.eq.s32.totalorder %s728, 0
      %s731 = sadd.s32 %s730, 1
      %s732 = scalar_select %p729, %s730, %s731
      %p735 = pneg %p729
      %p736 = scmp.eq.s32.totalorder %s70, 1
      %p737 = por %p735, %p736
      %p738 = scmp.ne.s32.totalorder %s730, %s733
      %p739 = scmp.eq.s32.totalorder %s70, 0
      %p740 = por %p738, %p739
      %p741 = scmp.ne.s32.totalorder %s730, %s733
      %p742 = scmp.eq.s32.totalorder %s75, 1
      %p743 = por %p741, %p742
      %p744 = scmp.ne.s32.totalorder %s733, %s734
      %p745 = scmp.eq.s32.totalorder %s75, 0
      %p746 = por %p744, %p745
      %p747 = scmp.ne.s32.totalorder %s733, %s734
      %p748 = scmp.eq.s32.totalorder %s76, 1
      %p749 = por %p747, %p748
      %p751 = scmp.ne.s32.totalorder %s734, %s750
      %p752 = scmp.eq.s32.totalorder %s76, 0
      %p753 = por %p751, %p752
      %p754 = scmp.le.s32.totalorder 1, %s70
      %p755 = scmp.lt.s32.totalorder %s70, 3
      %p756 = pnand %p754, %p755
      %p757 = pneg %p756
      // Predicated region
      $region9: #{decoder_layer.1} parent=5 // pred_check
        _
      $region10: #{decoder_layer.1} parent=5 // pred_check_branch
        %759 = sbr.rel (%p756) target = $region12
      $region11: #{decoder_layer.1} parent=5 // pred_region
        %s760 = ssub.s32 %s70, 1
        // Predicated region
        $region13: #{decoder_layer.1} parent=11 // pred_check
          %p761 = pneg %p195
        $region14: #{decoder_layer.1} parent=11 // pred_check_branch
          %763 = sbr.rel (%p761) target = $region16
        $region15: #{decoder_layer.1} parent=11 // pred_region
          _
        $region16: #{decoder_layer.1} parent=11 // pred_fallthru
          _
        // Predicated region
        $region17: #{decoder_layer.1} parent=11 // pred_check
          %p764 = pneg %p216
        $region18: #{decoder_layer.1} parent=11 // pred_check_branch
          %766 = sbr.rel (%p764) target = $region20
        $region19: #{decoder_layer.1} parent=11 // pred_region
          _
        $region20: #{decoder_layer.1} parent=11 // pred_fallthru
          _
        // Predicated region
        $region21: #{decoder_layer.1} parent=11 // pred_check
          %p767 = pneg %p237
        $region22: #{decoder_layer.1} parent=11 // pred_check_branch
          %769 = sbr.rel (%p767) target = $region24
        $region23: #{decoder_layer.1} parent=11 // pred_region
          _
        $region24: #{decoder_layer.1} parent=11 // pred_fallthru
          _
        // Predicated region
        $region25: #{decoder_layer.1} parent=11 // pred_check
          %p770 = pneg %p258
        $region26: #{decoder_layer.1} parent=11 // pred_check_branch
          %772 = sbr.rel (%p770) target = $region28
        $region27: #{decoder_layer.1} parent=11 // pred_region
          _
        $region28: #{decoder_layer.1} parent=11 // pred_fallthru
          _
        // Predicated region
        $region29: #{decoder_layer.1} parent=11 // pred_check
          %p773 = pneg %p279
        $region30: #{decoder_layer.1} parent=11 // pred_check_branch
          %775 = sbr.rel (%p773) target = $region32
        $region31: #{decoder_layer.1} parent=11 // pred_region
          _
        $region32: #{decoder_layer.1} parent=11 // pred_fallthru
          _
        // Predicated region
        $region33: #{decoder_layer.1} parent=11 // pred_check
          %p776 = pneg %p300
        $region34: #{decoder_layer.1} parent=11 // pred_check_branch
          %778 = sbr.rel (%p776) target = $region36
        $region35: #{decoder_layer.1} parent=11 // pred_region
          _
        $region36: #{decoder_layer.1} parent=11 // pred_fallthru
          _
        // Predicated region
        $region37: #{decoder_layer.1} parent=11 // pred_check
          %p779 = pneg %p321
        $region38: #{decoder_layer.1} parent=11 // pred_check_branch
          %781 = sbr.rel (%p779) target = $region40
        $region39: #{decoder_layer.1} parent=11 // pred_region
          _
        $region40: #{decoder_layer.1} parent=11 // pred_fallthru
          _
        // Predicated region
        $region41: #{decoder_layer.1} parent=11 // pred_check
          %p782 = pneg %p342
        $region42: #{decoder_layer.1} parent=11 // pred_check_branch
          %784 = sbr.rel (%p782) target = $region44
        $region43: #{decoder_layer.1} parent=11 // pred_region
          _
        $region44: #{decoder_layer.1} parent=11 // pred_fallthru
          _
        // Predicated region
        $region45: #{decoder_layer.1} parent=11 // pred_check
          %p785 = pneg %p363
        $region46: #{decoder_layer.1} parent=11 // pred_check_branch
          %787 = sbr.rel (%p785) target = $region48
        $region47: #{decoder_layer.1} parent=11 // pred_region
          _
        $region48: #{decoder_layer.1} parent=11 // pred_fallthru
          _
        // Predicated region
        $region49: #{decoder_layer.1} parent=11 // pred_check
          %p788 = pneg %p384
        $region50: #{decoder_layer.1} parent=11 // pred_check_branch
          %790 = sbr.rel (%p788) target = $region52
        $region51: #{decoder_layer.1} parent=11 // pred_region
          _
        $region52: #{decoder_layer.1} parent=11 // pred_fallthru
          _
        // Predicated region
        $region53: #{decoder_layer.1} parent=11 // pred_check
          %p791 = pneg %p405
        $region54: #{decoder_layer.1} parent=11 // pred_check_branch
          %793 = sbr.rel (%p791) target = $region56
        $region55: #{decoder_layer.1} parent=11 // pred_region
          _
        $region56: #{decoder_layer.1} parent=11 // pred_fallthru
          _
        // Predicated region
        $region57: #{decoder_layer.1} parent=11 // pred_check
          %p794 = pneg %p426
        $region58: #{decoder_layer.1} parent=11 // pred_check_branch
          %796 = sbr.rel (%p794) target = $region60
        $region59: #{decoder_layer.1} parent=11 // pred_region
          _
        $region60: #{decoder_layer.1} parent=11 // pred_fallthru
          _
        // Predicated region
        $region61: #{decoder_layer.1} parent=11 // pred_check
          %p797 = pneg %p447
        $region62: #{decoder_layer.1} parent=11 // pred_check_branch
          %799 = sbr.rel (%p797) target = $region64
        $region63: #{decoder_layer.1} parent=11 // pred_region
          _
        $region64: #{decoder_layer.1} parent=11 // pred_fallthru
          _
        // Predicated region
        $region65: #{decoder_layer.1} parent=11 // pred_check
          %p800 = pneg %p468
        $region66: #{decoder_layer.1} parent=11 // pred_check_branch
          %802 = sbr.rel (%p800) target = $region68
        $region67: #{decoder_layer.1} parent=11 // pred_region
          _
        $region68: #{decoder_layer.1} parent=11 // pred_fallthru
          _
        // Predicated region
        $region69: #{decoder_layer.1} parent=11 // pred_check
          %p803 = pneg %p489
        $region70: #{decoder_layer.1} parent=11 // pred_check_branch
          %805 = sbr.rel (%p803) target = $region72
        $region71: #{decoder_layer.1} parent=11 // pred_region
          _
        $region72: #{decoder_layer.1} parent=11 // pred_fallthru
          _
        // Predicated region
        $region73: #{decoder_layer.1} parent=11 // pred_check
          %p806 = pneg %p510
        $region74: #{decoder_layer.1} parent=11 // pred_check_branch
          %808 = sbr.rel (%p806) target = $region76
        $region75: #{decoder_layer.1} parent=11 // pred_region
          _
        $region76: #{decoder_layer.1} parent=11 // pred_fallthru
          _
        // Predicated region
        $region77: #{decoder_layer.1} parent=11 // pred_check
          %p809 = pneg %p531
        $region78: #{decoder_layer.1} parent=11 // pred_check_branch
          %811 = sbr.rel (%p809) target = $region80
        $region79: #{decoder_layer.1} parent=11 // pred_region
          _
        $region80: #{decoder_layer.1} parent=11 // pred_fallthru
          _
        // Predicated region
        $region81: #{decoder_layer.1} parent=11 // pred_check
          %p812 = pneg %p552
        $region82: #{decoder_layer.1} parent=11 // pred_check_branch
          %814 = sbr.rel (%p812) target = $region84
        $region83: #{decoder_layer.1} parent=11 // pred_region
          _
        $region84: #{decoder_layer.1} parent=11 // pred_fallthru
          _
        // Predicated region
        $region85: #{decoder_layer.1} parent=11 // pred_check
          %p815 = pneg %p573
        $region86: #{decoder_layer.1} parent=11 // pred_check_branch
          %817 = sbr.rel (%p815) target = $region88
        $region87: #{decoder_layer.1} parent=11 // pred_region
          _
        $region88: #{decoder_layer.1} parent=11 // pred_fallthru
          _
        // Predicated region
        $region89: #{decoder_layer.1} parent=11 // pred_check
          %p818 = pneg %p594
        $region90: #{decoder_layer.1} parent=11 // pred_check_branch
          %820 = sbr.rel (%p818) target = $region92
        $region91: #{decoder_layer.1} parent=11 // pred_region
          _
        $region92: #{decoder_layer.1} parent=11 // pred_fallthru
          _
        // Predicated region
        $region93: #{decoder_layer.1} parent=11 // pred_check
          %p821 = pneg %p615
        $region94: #{decoder_layer.1} parent=11 // pred_check_branch
          %823 = sbr.rel (%p821) target = $region96
        $region95: #{decoder_layer.1} parent=11 // pred_region
          _
        $region96: #{decoder_layer.1} parent=11 // pred_fallthru
          _
        // Predicated region
        $region97: #{decoder_layer.1} parent=11 // pred_check
          %p824 = pneg %p636
        $region98: #{decoder_layer.1} parent=11 // pred_check_branch
          %826 = sbr.rel (%p824) target = $region100
        $region99: #{decoder_layer.1} parent=11 // pred_region
          _
        $region100: #{decoder_layer.1} parent=11 // pred_fallthru
          _
        // Predicated region
        $region101: #{decoder_layer.1} parent=11 // pred_check
          %p827 = pneg %p657
        $region102: #{decoder_layer.1} parent=11 // pred_check_branch
          %829 = sbr.rel (%p827) target = $region104
        $region103: #{decoder_layer.1} parent=11 // pred_region
          _
        $region104: #{decoder_layer.1} parent=11 // pred_fallthru
          _
        // Predicated region
        $region105: #{decoder_layer.1} parent=11 // pred_check
          %p830 = pneg %p678
        $region106: #{decoder_layer.1} parent=11 // pred_check_branch
          %832 = sbr.rel (%p830) target = $region108
        $region107: #{decoder_layer.1} parent=11 // pred_region
          _
        $region108: #{decoder_layer.1} parent=11 // pred_fallthru
          _
        // Predicated region
        $region109: #{decoder_layer.1} parent=11 // pred_check
          %p833 = pneg %p699
        $region110: #{decoder_layer.1} parent=11 // pred_check_branch
          %835 = sbr.rel (%p833) target = $region112
        $region111: #{decoder_layer.1} parent=11 // pred_region
          _
        $region112: #{decoder_layer.1} parent=11 // pred_fallthru
          _
        // Predicated region
        $region113: #{decoder_layer.1} parent=11 // pred_check
          %p836 = pneg %p720
        $region114: #{decoder_layer.1} parent=11 // pred_check_branch
          %838 = sbr.rel (%p836) target = $region116
        $region115: #{decoder_layer.1} parent=11 // pred_region
          _
        $region116: #{decoder_layer.1} parent=11 // pred_fallthru
          _
      $region12: #{decoder_layer.1} parent=5 // pred_fallthru
        _
      %p839 = scmp.lt.s32.totalorder %s70, 2
      // Predicated region
      $region117: #{decoder_layer.1} parent=5 // pred_check
        %p840 = pneg %p839
      $region118: #{decoder_layer.1} parent=5 // pred_check_branch
        %842 = sbr.rel (%p840) target = $region120
      $region119: #{decoder_layer.1} parent=5 // pred_region
        // Predicated region
        $region121: #{decoder_layer.1} parent=119 // pred_check
          %p843 = pneg %p90
        $region122: #{decoder_layer.1} parent=119 // pred_check_branch
          %845 = sbr.rel (%p843) target = $region124
        $region123: #{decoder_layer.1} parent=119 // pred_region
          %p846 = scmp.lt.s32.totalorder %s70, 1
          %s847 = scalar_select %p846, %s70, 1
          %s848 = smul.addr %s847, 8
          %s849 = scalar_lea.vmem %s1, %s848
        $region124: #{decoder_layer.1} parent=119 // pred_fallthru
          _
        // Predicated region
        $region125: #{decoder_layer.1} parent=119 // pred_check
          %p850 = pneg %p116
        $region126: #{decoder_layer.1} parent=119 // pred_check_branch
          %852 = sbr.rel (%p850) target = $region128
        $region127: #{decoder_layer.1} parent=119 // pred_region
          %p853 = scmp.lt.s32.totalorder %s70, 1
          %s854 = scalar_select %p853, %s70, 1
          %s855 = smul.addr %s854, 8
          %s856 = scalar_lea.vmem %s3, %s855
        $region128: #{decoder_layer.1} parent=119 // pred_fallthru
          _
        // Predicated region
        $region129: #{decoder_layer.1} parent=119 // pred_check
          %p857 = pneg %p142
        $region130: #{decoder_layer.1} parent=119 // pred_check_branch
          %859 = sbr.rel (%p857) target = $region132
        $region131: #{decoder_layer.1} parent=119 // pred_region
          %p860 = scmp.lt.s32.totalorder %s70, 1
          %s861 = scalar_select %p860, %s70, 1
          %s862 = smul.addr %s861, 8
          %s863 = scalar_lea.vmem %s5, %s862
        $region132: #{decoder_layer.1} parent=119 // pred_fallthru
          _
        // Predicated region
        $region133: #{decoder_layer.1} parent=119 // pred_check
          %p864 = pneg %p168
        $region134: #{decoder_layer.1} parent=119 // pred_check_branch
          %866 = sbr.rel (%p864) target = $region136
        $region135: #{decoder_layer.1} parent=119 // pred_region
          %p867 = scmp.lt.s32.totalorder %s70, 1
          %s868 = scalar_select %p867, %s70, 1
          %s869 = smul.addr %s868, 8
          %s870 = scalar_lea.vmem %s7, %s869
        $region136: #{decoder_layer.1} parent=119 // pred_fallthru
          _
      $region120: #{decoder_layer.1} parent=5 // pred_fallthru
        _
      %p871 = scmp.le.s32.totalorder 1, %s70
      %p872 = scmp.lt.s32.totalorder %s70, 3
      %p873 = pnand %p871, %p872
      %p874 = pneg %p873
      // Predicated region
      $region137: #{decoder_layer.1} parent=5 // pred_check
        _
      $region138: #{decoder_layer.1} parent=5 // pred_check_branch
        %876 = sbr.rel (%p873) target = $region140
      $region139: #{decoder_layer.1} parent=5 // pred_region
        %s877 = ssub.s32 %s70, 1
        %p878 = scmp.lt.s32.totalorder %s75, 1
        %s879 = scalar_select %p878, %s75, 1
        %s880 = smul.addr %s879, 8
        %s881 = scalar_lea.vmem %s1, %s880
        %p882 = pneg %p96
        %p883 = pneg %p93
        %p884 = scmp.lt.s32.totalorder %s75, 1
        %s885 = scalar_select %p884, %s75, 1
        %s886 = smul.addr %s885, 8
        %s887 = scalar_lea.vmem %s3, %s886
        %p888 = pneg %p122
        %p889 = pneg %p119
        %p890 = scmp.lt.s32.totalorder %s75, 1
        %s891 = scalar_select %p890, %s75, 1
        %s892 = smul.addr %s891, 8
        %s893 = scalar_lea.vmem %s5, %s892
        %p894 = pneg %p148
        %p895 = pneg %p145
        %p896 = scmp.lt.s32.totalorder %s75, 1
        %s897 = scalar_select %p896, %s75, 1
        %s898 = smul.addr %s897, 8
        %s899 = scalar_lea.vmem %s7, %s898
        %p900 = pneg %p174
        %p901 = pneg %p171
        %p902 = pneg %p195
        %p903 = pneg %p192
        %p904 = pneg %p216
        %p905 = pneg %p213
        %p906 = pneg %p237
        %p907 = pneg %p234
        %p908 = pneg %p258
        %p909 = pneg %p255
        %p910 = pneg %p279
        %p911 = pneg %p276
        %p912 = pneg %p300
        %p913 = pneg %p297
        %p914 = pneg %p321
        %p915 = pneg %p318
        %p916 = pneg %p342
        %p917 = pneg %p339
        %p918 = pneg %p363
        %p919 = pneg %p360
        %p920 = pneg %p384
        %p921 = pneg %p381
        %p922 = pneg %p405
        %p923 = pneg %p402
        %p924 = pneg %p426
        %p925 = pneg %p423
        %p926 = pneg %p447
        %p927 = pneg %p444
        %p928 = pneg %p468
        %p929 = pneg %p465
        %p930 = pneg %p489
        %p931 = pneg %p486
        %p932 = pneg %p510
        %p933 = pneg %p507
        %p934 = pneg %p531
        %p935 = pneg %p528
        %p936 = pneg %p552
        %p937 = pneg %p549
        %p938 = pneg %p573
        %p939 = pneg %p570
        %p940 = pneg %p594
        %p941 = pneg %p591
        %p942 = pneg %p615
        %p943 = pneg %p612
        %p944 = pneg %p636
        %p945 = pneg %p633
        %p946 = pneg %p657
        %p947 = pneg %p654
        %p948 = pneg %p678
        %p949 = pneg %p675
        %p950 = pneg %p699
        %p951 = pneg %p696
        %p952 = pneg %p720
        %p953 = pneg %p717
        %p954 = pneg %p746
        %p955 = pneg %p743
        %s956 = sand.u32 %s733, 1
        %s957 = scalar_lea.sflag [#allocation3], %s956
        %s958 = sand.u32 %s733, 1
        %s959 = smul.addr %s958, 8
        %s960 = scalar_lea.vmem [#allocation2], %s959
        %p961 = scmp.lt.s32.totalorder %s75, 1
        %s962 = scalar_select %p961, %s75, 1
        %s963 = smul.addr %s962, 8
        %s964 = scalar_lea.vmem %s1, %s963
        %p965 = scmp.lt.s32.totalorder %s75, 1
        %s966 = scalar_select %p965, %s75, 1
        %s967 = smul.addr %s966, 8
        %s968 = scalar_lea.vmem %s3, %s967
        %p969 = scmp.lt.s32.totalorder %s75, 1
        %s970 = scalar_select %p969, %s75, 1
        %s971 = smul.addr %s970, 8
        %s972 = scalar_lea.vmem %s5, %s971
        %p973 = scmp.lt.s32.totalorder %s75, 1
        %s974 = scalar_select %p973, %s75, 1
        %s975 = smul.addr %s974, 8
        %s976 = scalar_lea.vmem %s7, %s975
        %v978 = vld [vmem:[%s964] sm:$0xff]
        %v979 = vld [vmem:[%s968] sm:$0xff]
        %v980 = vld [vmem:[%s972] sm:$0xff]
        %v981 = vld [vmem:[%s976] sm:$0xff]
        %v982 = vpack.c.bf16 %v978, %v978
        %v983 = vld [vmem:[%s9] sm:$0xf]
        %v984 = vld [vmem:[%s9 + $0x4] sm:$0xf]
        %v985 = vld [vmem:[%s9 + $0x8] sm:$0xf]
        %v986 = vld [vmem:[%s9 + $0xc] sm:$0xf]
        %v987 = vld [vmem:[%s9 + $0x10] sm:$0xf]
        %v988 = vld [vmem:[%s9 + $0x14] sm:$0xf]
        %v989 = vld [vmem:[%s9 + $0x18] sm:$0xf]
        %v990 = vld [vmem:[%s9 + $0x1c] sm:$0xf]
        %v991 = vld [vmem:[%s9 + $0x20] sm:$0xf]
        %v992 = vld [vmem:[%s9 + $0x24] sm:$0xf]
        %v993 = vld [vmem:[%s9 + $0x28] sm:$0xf]
        %v994 = vld [vmem:[%s9 + $0x2c] sm:$0xf]
        %v995 = vld [vmem:[%s9 + $0x30] sm:$0xf]
        %v996 = vld [vmem:[%s9 + $0x34] sm:$0xf]
        %v997 = vld [vmem:[%s9 + $0x38] sm:$0xf]
        %v998 = vld [vmem:[%s9 + $0x3c] sm:$0xf]
        %v999 = vld [vmem:[%s15] sm:$0x1]
        %v1000 = vld [vmem:[%s15 + $0x1] sm:$0x1]
        %v1001 = vld [vmem:[%s15 + $0x2] sm:$0x1]
        %v1002 = vld [vmem:[%s15 + $0x3] sm:$0x1]
        %v1007 = vlaneseq
        %v1008 = vshrl.u32 %v1007, 7
        %v1009 = vsub.s32 0, %v1008
        %v1010 = vrot.slane %v999, %v1009
        %v1011 = vlaneseq
        %v1012 = vshrl.u32 %v1011, 7
        %v1013 = vsub.s32 0, %v1012
        %v1014 = vrot.slane %v1000, %v1013
        %v1015 = vlaneseq
        %v1016 = vshrl.u32 %v1015, 7
        %v1017 = vsub.s32 0, %v1016
        %v1018 = vrot.slane %v1001, %v1017
        %v1019 = vlaneseq
        %v1020 = vshrl.u32 %v1019, 7
        %v1021 = vsub.s32 0, %v1020
        %v1022 = vrot.slane %v1002, %v1021
        %v1031 = vunpack.c.l.b16 %v983
        %v1032 = vunpack.c.l.b16 %v984
        %v1033 = vunpack.c.l.b16 %v985
        %v1034 = vunpack.c.l.b16 %v986
        %v1035 = vpack.c.b16 %v1032, %v1031
        %v1036 = vpack.c.b16 %v1034, %v1033
        %vm1039 = vcmask 261120
        %v1041 = vsel %vm1039, %v982, 0
        %1043 = vmatprep.subr.bf16.mxu0 0
        %1044 = vmatpush1.bf16.msra.mxu0 %v1035
        %1045 = vmatprep.subr.bf16.mxu0 0
        %1046 = vmatpush1.bf16.msra.mxu0 %v1036
        %1047 = vmatprep.subr.bf16.mxu0 0
        %1048 = vmatpush1.bf16.msra.mxu0 0
        %1049 = vmatprep.subr.bf16.mxu0 0
        %1050 = vmatpush1.bf16.msra.mxu0 0
        %1051 = vmatprep.subr.bf16.mxu0 0
        %1052 = vmatpush1.bf16.msra.mxu0 0
        %1053 = vmatprep.subr.bf16.mxu0 0
        %1054 = vmatpush1.bf16.msra.mxu0 0
        %1055 = vmatprep.subr.bf16.mxu0 0
        %1056 = vmatpush1.bf16.msra.mxu0 0
        %1057 = vmatprep.subr.bf16.mxu0 0
        %1058 = vmatpush1.bf16.msra.mxu0 0
        %1059 = vmatprep.subr.bf16.mxu0 0
        %1060 = vmatpush1.bf16.msra.mxu0 0
        %1061 = vmatprep.subr.bf16.mxu0 0
        %1062 = vmatpush1.bf16.msra.mxu0 0
        %1063 = vmatprep.subr.bf16.mxu0 0
        %1064 = vmatpush1.bf16.msra.mxu0 0
        %1065 = vmatprep.subr.bf16.mxu0 0
        %1066 = vmatpush1.bf16.msra.mxu0 0
        %1067 = vmatprep.subr.bf16.mxu0 0
        %1068 = vmatpush1.bf16.msra.mxu0 0
        %1069 = vmatprep.subr.bf16.mxu0 0
        %1070 = vmatpush1.bf16.msra.mxu0 0
        %1071 = vmatprep.subr.bf16.mxu0 0
        %1072 = vmatpush1.bf16.msra.mxu0 0
        %1073 = vmatprep.subr.bf16.mxu0 0
        %1074 = vmatpush1.bf16.msra.mxu0 0
        %1075 = vmatprep.mubr.bf16.mxu0 0
        %1076 = vmatmul.mubr.bf16.gmra.mrb[0].mxu0 %v1041
        %v1077 = vpop.f32.mrb[0].mxu0
        %v1078 = vadd.f32 %v1010, %v1077
        %v1079 = vpop.f32.mrb[0].mxu0
        %v1080 = vpop.f32.mrb[0].mxu0
        %v1081 = vpop.f32.mrb[0].mxu0
        %1082 = vdwg.mxu0
        %v1087 = vunpack.c.l.b16 %v987
        %v1088 = vunpack.c.l.b16 %v988
        %v1089 = vunpack.c.l.b16 %v989
        %v1090 = vunpack.c.l.b16 %v990
        %v1091 = vpack.c.b16 %v1088, %v1087
        %v1092 = vpack.c.b16 %v1090, %v1089
        %1095 = vmatprep.subr.bf16.mxu0 0
        %1096 = vmatpush1.bf16.msra.mxu0 %v1091
        %1097 = vmatprep.subr.bf16.mxu0 0
        %1098 = vmatpush1.bf16.msra.mxu0 %v1092
        %1099 = vmatprep.subr.bf16.mxu0 0
        %1100 = vmatpush1.bf16.msra.mxu0 0
        %1101 = vmatprep.subr.bf16.mxu0 0
        %1102 = vmatpush1.bf16.msra.mxu0 0
        %1103 = vmatprep.subr.bf16.mxu0 0
        %1104 = vmatpush1.bf16.msra.mxu0 0
        %1105 = vmatprep.subr.bf16.mxu0 0
        %1106 = vmatpush1.bf16.msra.mxu0 0
        %1107 = vmatprep.subr.bf16.mxu0 0
        %1108 = vmatpush1.bf16.msra.mxu0 0
        %1109 = vmatprep.subr.bf16.mxu0 0
        %1110 = vmatpush1.bf16.msra.mxu0 0
        %1111 = vmatprep.subr.bf16.mxu0 0
        %1112 = vmatpush1.bf16.msra.mxu0 0
        %1113 = vmatprep.subr.bf16.mxu0 0
        %1114 = vmatpush1.bf16.msra.mxu0 0
        %1115 = vmatprep.subr.bf16.mxu0 0
        %1116 = vmatpush1.bf16.msra.mxu0 0
        %1117 = vmatprep.subr.bf16.mxu0 0
        %1118 = vmatpush1.bf16.msra.mxu0 0
        %1119 = vmatprep.subr.bf16.mxu0 0
        %1120 = vmatpush1.bf16.msra.mxu0 0
        %1121 = vmatprep.subr.bf16.mxu0 0
        %1122 = vmatpush1.bf16.msra.mxu0 0
        %1123 = vmatprep.subr.bf16.mxu0 0
        %1124 = vmatpush1.bf16.msra.mxu0 0
        %1125 = vmatprep.subr.bf16.mxu0 0
        %1126 = vmatpush1.bf16.msra.mxu0 0
        %1127 = vmatprep.mubr.bf16.mxu0 0
        %1128 = vmatmul.mubr.bf16.gmra.mrb[0].mxu0 %v1041
        %v1129 = vpop.f32.mrb[0].mxu0
        %v1130 = vadd.f32 %v1014, %v1129
        %v1131 = vpop.f32.mrb[0].mxu0
        %v1132 = vpop.f32.mrb[0].mxu0
        %v1133 = vpop.f32.mrb[0].mxu0
        %1134 = vdwg.mxu0
        %v1139 = vunpack.c.l.b16 %v991
        %v1140 = vunpack.c.l.b16 %v992
        %v1141 = vunpack.c.l.b16 %v993
        %v1142 = vunpack.c.l.b16 %v994
        %v1143 = vpack.c.b16 %v1140, %v1139
        %v1144 = vpack.c.b16 %v1142, %v1141
        %1147 = vmatprep.subr.bf16.mxu0 0
        %1148 = vmatpush1.bf16.msra.mxu0 %v1143
        %1149 = vmatprep.subr.bf16.mxu0 0
        %1150 = vmatpush1.bf16.msra.mxu0 %v1144
        %1151 = vmatprep.subr.bf16.mxu0 0
        %1152 = vmatpush1.bf16.msra.mxu0 0
        %1153 = vmatprep.subr.bf16.mxu0 0
        %1154 = vmatpush1.bf16.msra.mxu0 0
        %1155 = vmatprep.subr.bf16.mxu0 0
        %1156 = vmatpush1.bf16.msra.mxu0 0
        %1157 = vmatprep.subr.bf16.mxu0 0
        %1158 = vmatpush1.bf16.msra.mxu0 0
        %1159 = vmatprep.subr.bf16.mxu0 0
        %1160 = vmatpush1.bf16.msra.mxu0 0
        %1161 = vmatprep.subr.bf16.mxu0 0
        %1162 = vmatpush1.bf16.msra.mxu0 0
        %1163 = vmatprep.subr.bf16.mxu0 0
        %1164 = vmatpush1.bf16.msra.mxu0 0
        %1165 = vmatprep.subr.bf16.mxu0 0
        %1166 = vmatpush1.bf16.msra.mxu0 0
        %1167 = vmatprep.subr.bf16.mxu0 0
        %1168 = vmatpush1.bf16.msra.mxu0 0
        %1169 = vmatprep.subr.bf16.mxu0 0
        %1170 = vmatpush1.bf16.msra.mxu0 0
        %1171 = vmatprep.subr.bf16.mxu0 0
        %1172 = vmatpush1.bf16.msra.mxu0 0
        %1173 = vmatprep.subr.bf16.mxu0 0
        %1174 = vmatpush1.bf16.msra.mxu0 0
        %1175 = vmatprep.subr.bf16.mxu0 0
        %1176 = vmatpush1.bf16.msra.mxu0 0
        %1177 = vmatprep.subr.bf16.mxu0 0
        %1178 = vmatpush1.bf16.msra.mxu0 0
        %1179 = vmatprep.mubr.bf16.mxu0 0
        %1180 = vmatmul.mubr.bf16.gmra.mrb[0].mxu0 %v1041
        %v1181 = vpop.f32.mrb[0].mxu0
        %v1182 = vadd.f32 %v1018, %v1181
        %v1183 = vpop.f32.mrb[0].mxu0
        %v1184 = vpop.f32.mrb[0].mxu0
        %v1185 = vpop.f32.mrb[0].mxu0
        %1186 = vdwg.mxu0
        %v1191 = vunpack.c.l.b16 %v995
        %v1192 = vunpack.c.l.b16 %v996
        %v1193 = vunpack.c.l.b16 %v997
        %v1194 = vunpack.c.l.b16 %v998
        %v1195 = vpack.c.b16 %v1192, %v1191
        %v1196 = vpack.c.b16 %v1194, %v1193
        %1199 = vmatprep.subr.bf16.mxu0 0
        %1200 = vmatpush1.bf16.msra.mxu0 %v1195
        %1201 = vmatprep.subr.bf16.mxu0 0
        %1202 = vmatpush1.bf16.msra.mxu0 %v1196
        %1203 = vmatprep.subr.bf16.mxu0 0
        %1204 = vmatpush1.bf16.msra.mxu0 0
        %1205 = vmatprep.subr.bf16.mxu0 0
        %1206 = vmatpush1.bf16.msra.mxu0 0
        %1207 = vmatprep.subr.bf16.mxu0 0
        %1208 = vmatpush1.bf16.msra.mxu0 0
        %1209 = vmatprep.subr.bf16.mxu0 0
        %1210 = vmatpush1.bf16.msra.mxu0 0
        %1211 = vmatprep.subr.bf16.mxu0 0
        %1212 = vmatpush1.bf16.msra.mxu0 0
        %1213 = vmatprep.subr.bf16.mxu0 0
        %1214 = vmatpush1.bf16.msra.mxu0 0
        %1215 = vmatprep.subr.bf16.mxu0 0
        %1216 = vmatpush1.bf16.msra.mxu0 0
        %1217 = vmatprep.subr.bf16.mxu0 0
        %1218 = vmatpush1.bf16.msra.mxu0 0
        %1219 = vmatprep.subr.bf16.mxu0 0
        %1220 = vmatpush1.bf16.msra.mxu0 0
        %1221 = vmatprep.subr.bf16.mxu0 0
        %1222 = vmatpush1.bf16.msra.mxu0 0
        %1223 = vmatprep.subr.bf16.mxu0 0
        %1224 = vmatpush1.bf16.msra.mxu0 0
        %1225 = vmatprep.subr.bf16.mxu0 0
        %1226 = vmatpush1.bf16.msra.mxu0 0
        %1227 = vmatprep.subr.bf16.mxu0 0
        %1228 = vmatpush1.bf16.msra.mxu0 0
        %1229 = vmatprep.subr.bf16.mxu0 0
        %1230 = vmatpush1.bf16.msra.mxu0 0
        %1231 = vmatprep.mubr.bf16.mxu0 0
        %1232 = vmatmul.mubr.bf16.gmra.mrb[0].mxu0 %v1041
        %v1233 = vpop.f32.mrb[0].mxu0
        %v1234 = vadd.f32 %v1022, %v1233
        %v1235 = vpop.f32.mrb[0].mxu0
        %v1236 = vpop.f32.mrb[0].mxu0
        %v1237 = vpop.f32.mrb[0].mxu0
        %1238 = vdwg.mxu0
        %v1239 = vld [vmem:[%s11] sm:$0xf]
        %v1240 = vld [vmem:[%s11 + $0x4] sm:$0xf]
        %v1241 = vld [vmem:[%s11 + $0x8] sm:$0xf]
        %v1242 = vld [vmem:[%s11 + $0xc] sm:$0xf]
        %v1243 = vld [vmem:[%s11 + $0x10] sm:$0xf]
        %v1244 = vld [vmem:[%s11 + $0x14] sm:$0xf]
        %v1245 = vld [vmem:[%s11 + $0x18] sm:$0xf]
        %v1246 = vld [vmem:[%s11 + $0x1c] sm:$0xf]
        %v1247 = vld [vmem:[%s11 + $0x20] sm:$0xf]
        %v1248 = vld [vmem:[%s11 + $0x24] sm:$0xf]
        %v1249 = vld [vmem:[%s11 + $0x28] sm:$0xf]
        %v1250 = vld [vmem:[%s11 + $0x2c] sm:$0xf]
        %v1251 = vld [vmem:[%s11 + $0x30] sm:$0xf]
        %v1252 = vld [vmem:[%s11 + $0x34] sm:$0xf]
        %v1253 = vld [vmem:[%s11 + $0x38] sm:$0xf]
        %v1254 = vld [vmem:[%s11 + $0x3c] sm:$0xf]
        %v1255 = vld [vmem:[%s17] sm:$0x1]
        %v1256 = vld [vmem:[%s17 + $0x1] sm:$0x1]
        %v1257 = vld [vmem:[%s17 + $0x2] sm:$0x1]
        %v1258 = vld [vmem:[%s17 + $0x3] sm:$0x1]
        %v1263 = vlaneseq
        %v1264 = vshrl.u32 %v1263, 7
        %v1265 = vsub.s32 0, %v1264
        %v1266 = vrot.slane %v1255, %v1265
        %v1267 = vlaneseq
        %v1268 = vshrl.u32 %v1267, 7
        %v1269 = vsub.s32 0, %v1268
        %v1270 = vrot.slane %v1256, %v1269
        %v1271 = vlaneseq
        %v1272 = vshrl.u32 %v1271, 7
        %v1273 = vsub.s32 0, %v1272
        %v1274 = vrot.slane %v1257, %v1273
        %v1275 = vlaneseq
        %v1276 = vshrl.u32 %v1275, 7
        %v1277 = vsub.s32 0, %v1276
        %v1278 = vrot.slane %v1258, %v1277
        %v1287 = vunpack.c.l.b16 %v1239
        %v1288 = vunpack.c.l.b16 %v1240
        %v1289 = vunpack.c.l.b16 %v1241
        %v1290 = vunpack.c.l.b16 %v1242
        %v1291 = vpack.c.b16 %v1288, %v1287
        %v1292 = vpack.c.b16 %v1290, %v1289
        %1295 = vmatprep.subr.bf16.mxu0 0
        %1296 = vmatpush1.bf16.msra.mxu0 %v1291
        %1297 = vmatprep.subr.bf16.mxu0 0
        %1298 = vmatpush1.bf16.msra.mxu0 %v1292
        %1299 = vmatprep.subr.bf16.mxu0 0
        %1300 = vmatpush1.bf16.msra.mxu0 0
        %1301 = vmatprep.subr.bf16.mxu0 0
        %1302 = vmatpush1.bf16.msra.mxu0 0
        %1303 = vmatprep.subr.bf16.mxu0 0
        %1304 = vmatpush1.bf16.msra.mxu0 0
        %1305 = vmatprep.subr.bf16.mxu0 0
        %1306 = vmatpush1.bf16.msra.mxu0 0
        %1307 = vmatprep.subr.bf16.mxu0 0
        %1308 = vmatpush1.bf16.msra.mxu0 0
        %1309 = vmatprep.subr.bf16.mxu0 0
        %1310 = vmatpush1.bf16.msra.mxu0 0
        %1311 = vmatprep.subr.bf16.mxu0 0
        %1312 = vmatpush1.bf16.msra.mxu0 0
        %1313 = vmatprep.subr.bf16.mxu0 0
        %1314 = vmatpush1.bf16.msra.mxu0 0
        %1315 = vmatprep.subr.bf16.mxu0 0
        %1316 = vmatpush1.bf16.msra.mxu0 0
        %1317 = vmatprep.subr.bf16.mxu0 0
        %1318 = vmatpush1.bf16.msra.mxu0 0
        %1319 = vmatprep.subr.bf16.mxu0 0
        %1320 = vmatpush1.bf16.msra.mxu0 0
        %1321 = vmatprep.subr.bf16.mxu0 0
        %1322 = vmatpush1.bf16.msra.mxu0 0
        %1323 = vmatprep.subr.bf16.mxu0 0
        %1324 = vmatpush1.bf16.msra.mxu0 0
        %1325 = vmatprep.subr.bf16.mxu0 0
        %1326 = vmatpush1.bf16.msra.mxu0 0
        %1327 = vmatprep.mubr.bf16.mxu0 0
        %1328 = vmatmul.mubr.bf16.gmra.mrb[0].mxu0 %v1041
        %v1329 = vpop.f32.mrb[0].mxu0
        %v1330 = vadd.f32 %v1266, %v1329
        %v1331 = vpop.f32.mrb[0].mxu0
        %v1332 = vpop.f32.mrb[0].mxu0
        %v1333 = vpop.f32.mrb[0].mxu0
        %1334 = vdwg.mxu0
        %v1339 = vunpack.c.l.b16 %v1243
        %v1340 = vunpack.c.l.b16 %v1244
        %v1341 = vunpack.c.l.b16 %v1245
        %v1342 = vunpack.c.l.b16 %v1246
        %v1343 = vpack.c.b16 %v1340, %v1339
        %v1344 = vpack.c.b16 %v1342, %v1341
        %1347 = vmatprep.subr.bf16.mxu0 0
        %1348 = vmatpush1.bf16.msra.mxu0 %v1343
        %1349 = vmatprep.subr.bf16.mxu0 0
        %1350 = vmatpush1.bf16.msra.mxu0 %v1344
        %1351 = vmatprep.subr.bf16.mxu0 0
        %1352 = vmatpush1.bf16.msra.mxu0 0
        %1353 = vmatprep.subr.bf16.mxu0 0
        %1354 = vmatpush1.bf16.msra.mxu0 0
        %1355 = vmatprep.subr.bf16.mxu0 0
        %1356 = vmatpush1.bf16.msra.mxu0 0
        %1357 = vmatprep.subr.bf16.mxu0 0
        %1358 = vmatpush1.bf16.msra.mxu0 0
        %1359 = vmatprep.subr.bf16.mxu0 0
        %1360 = vmatpush1.bf16.msra.mxu0 0
        %1361 = vmatprep.subr.bf16.mxu0 0
        %1362 = vmatpush1.bf16.msra.mxu0 0
        %1363 = vmatprep.subr.bf16.mxu0 0
        %1364 = vmatpush1.bf16.msra.mxu0 0
        %1365 = vmatprep.subr.bf16.mxu0 0
        %1366 = vmatpush1.bf16.msra.mxu0 0
        %1367 = vmatprep.subr.bf16.mxu0 0
        %1368 = vmatpush1.bf16.msra.mxu0 0
        %1369 = vmatprep.subr.bf16.mxu0 0
        %1370 = vmatpush1.bf16.msra.mxu0 0
        %1371 = vmatprep.subr.bf16.mxu0 0
        %1372 = vmatpush1.bf16.msra.mxu0 0
        %1373 = vmatprep.subr.bf16.mxu0 0
        %1374 = vmatpush1.bf16.msra.mxu0 0
        %1375 = vmatprep.subr.bf16.mxu0 0
        %1376 = vmatpush1.bf16.msra.mxu0 0
        %1377 = vmatprep.subr.bf16.mxu0 0
        %1378 = vmatpush1.bf16.msra.mxu0 0
        %1379 = vmatprep.mubr.bf16.mxu0 0
        %1380 = vmatmul.mubr.bf16.gmra.mrb[0].mxu0 %v1041
        %v1381 = vpop.f32.mrb[0].mxu0
        %v1382 = vadd.f32 %v1270, %v1381
        %v1383 = vpop.f32.mrb[0].mxu0
        %v1384 = vpop.f32.mrb[0].mxu0
        %v1385 = vpop.f32.mrb[0].mxu0
        %1386 = vdwg.mxu0
        %v1391 = vunpack.c.l.b16 %v1247
        %v1392 = vunpack.c.l.b16 %v1248
        %v1393 = vunpack.c.l.b16 %v1249
        %v1394 = vunpack.c.l.b16 %v1250
        %v1395 = vpack.c.b16 %v1392, %v1391
        %v1396 = vpack.c.b16 %v1394, %v1393
        %1399 = vmatprep.subr.bf16.mxu0 0
        %1400 = vmatpush1.bf16.msra.mxu0 %v1395
        %1401 = vmatprep.subr.bf16.mxu0 0
        %1402 = vmatpush1.bf16.msra.mxu0 %v1396
        %1403 = vmatprep.subr.bf16.mxu0 0
        %1404 = vmatpush1.bf16.msra.mxu0 0
        %1405 = vmatprep.subr.bf16.mxu0 0
        %1406 = vmatpush1.bf16.msra.mxu0 0
        %1407 = vmatprep.subr.bf16.mxu0 0
        %1408 = vmatpush1.bf16.msra.mxu0 0
        %1409 = vmatprep.subr.bf16.mxu0 0
        %1410 = vmatpush1.bf16.msra.mxu0 0
        %1411 = vmatprep.subr.bf16.mxu0 0
        %1412 = vmatpush1.bf16.msra.mxu0 0
        %1413 = vmatprep.subr.bf16.mxu0 0
        %1414 = vmatpush1.bf16.msra.mxu0 0
        %1415 = vmatprep.subr.bf16.mxu0 0
        %1416 = vmatpush1.bf16.msra.mxu0 0
        %1417 = vmatprep.subr.bf16.mxu0 0
        %1418 = vmatpush1.bf16.msra.mxu0 0
        %1419 = vmatprep.subr.bf16.mxu0 0
        %1420 = vmatpush1.bf16.msra.mxu0 0
        %1421 = vmatprep.subr.bf16.mxu0 0
        %1422 = vmatpush1.bf16.msra.mxu0 0
        %1423 = vmatprep.subr.bf16.mxu0 0
        %1424 = vmatpush1.bf16.msra.mxu0 0
        %1425 = vmatprep.subr.bf16.mxu0 0
        %1426 = vmatpush1.bf16.msra.mxu0 0
        %1427 = vmatprep.subr.bf16.mxu0 0
        %1428 = vmatpush1.bf16.msra.mxu0 0
        %1429 = vmatprep.subr.bf16.mxu0 0
        %1430 = vmatpush1.bf16.msra.mxu0 0
        %1431 = vmatprep.mubr.bf16.mxu0 0
        %1432 = vmatmul.mubr.bf16.gmra.mrb[0].mxu0 %v1041
        %v1433 = vpop.f32.mrb[0].mxu0
        %v1434 = vadd.f32 %v1274, %v1433
        %v1435 = vpop.f32.mrb[0].mxu0
        %v1436 = vpop.f32.mrb[0].mxu0
        %v1437 = vpop.f32.mrb[0].mxu0
        %1438 = vdwg.mxu0
        %v1443 = vunpack.c.l.b16 %v1251
        %v1444 = vunpack.c.l.b16 %v1252
        %v1445 = vunpack.c.l.b16 %v1253
        %v1446 = vunpack.c.l.b16 %v1254
        %v1447 = vpack.c.b16 %v1444, %v1443
        %v1448 = vpack.c.b16 %v1446, %v1445
        %1451 = vmatprep.subr.bf16.mxu0 0
        %1452 = vmatpush1.bf16.msra.mxu0 %v1447
        %1453 = vmatprep.subr.bf16.mxu0 0
        %1454 = vmatpush1.bf16.msra.mxu0 %v1448
        %1455 = vmatprep.subr.bf16.mxu0 0
        %1456 = vmatpush1.bf16.msra.mxu0 0
        %1457 = vmatprep.subr.bf16.mxu0 0
        %1458 = vmatpush1.bf16.msra.mxu0 0
        %1459 = vmatprep.subr.bf16.mxu0 0
        %1460 = vmatpush1.bf16.msra.mxu0 0
        %1461 = vmatprep.subr.bf16.mxu0 0
        %1462 = vmatpush1.bf16.msra.mxu0 0
        %1463 = vmatprep.subr.bf16.mxu0 0
        %1464 = vmatpush1.bf16.msra.mxu0 0
        %1465 = vmatprep.subr.bf16.mxu0 0
        %1466 = vmatpush1.bf16.msra.mxu0 0
        %1467 = vmatprep.subr.bf16.mxu0 0
        %1468 = vmatpush1.bf16.msra.mxu0 0
        %1469 = vmatprep.subr.bf16.mxu0 0
        %1470 = vmatpush1.bf16.msra.mxu0 0
        %1471 = vmatprep.subr.bf16.mxu0 0
        %1472 = vmatpush1.bf16.msra.mxu0 0
        %1473 = vmatprep.subr.bf16.mxu0 0
        %1474 = vmatpush1.bf16.msra.mxu0 0
        %1475 = vmatprep.subr.bf16.mxu0 0
        %1476 = vmatpush1.bf16.msra.mxu0 0
        %1477 = vmatprep.subr.bf16.mxu0 0
        %1478 = vmatpush1.bf16.msra.mxu0 0
        %1479 = vmatprep.subr.bf16.mxu0 0
        %1480 = vmatpush1.bf16.msra.mxu0 0
        %1481 = vmatprep.subr.bf16.mxu0 0
        %1482 = vmatpush1.bf16.msra.mxu0 0
        %1483 = vmatprep.mubr.bf16.mxu0 0
        %1484 = vmatmul.mubr.bf16.gmra.mrb[0].mxu0 %v1041
        %v1485 = vpop.f32.mrb[0].mxu0
        %v1486 = vadd.f32 %v1278, %v1485
        %v1487 = vpop.f32.mrb[0].mxu0
        %v1488 = vpop.f32.mrb[0].mxu0
        %v1489 = vpop.f32.mrb[0].mxu0
        %1490 = vdwg.mxu0
        %v1491 = vld [vmem:[%s13] sm:$0xf]
        %v1492 = vld [vmem:[%s13 + $0x4] sm:$0xf]
        %v1493 = vld [vmem:[%s13 + $0x8] sm:$0xf]
        %v1494 = vld [vmem:[%s13 + $0xc] sm:$0xf]
        %v1495 = vld [vmem:[%s13 + $0x10] sm:$0xf]
        %v1496 = vld [vmem:[%s13 + $0x14] sm:$0xf]
        %v1497 = vld [vmem:[%s13 + $0x18] sm:$0xf]
        %v1498 = vld [vmem:[%s13 + $0x1c] sm:$0xf]
        %v1499 = vld [vmem:[%s13 + $0x20] sm:$0xf]
        %v1500 = vld [vmem:[%s13 + $0x24] sm:$0xf]
        %v1501 = vld [vmem:[%s13 + $0x28] sm:$0xf]
        %v1502 = vld [vmem:[%s13 + $0x2c] sm:$0xf]
        %v1503 = vld [vmem:[%s13 + $0x30] sm:$0xf]
        %v1504 = vld [vmem:[%s13 + $0x34] sm:$0xf]
        %v1505 = vld [vmem:[%s13 + $0x38] sm:$0xf]
        %v1506 = vld [vmem:[%s13 + $0x3c] sm:$0xf]
        %v1507 = vld [vmem:[%s19] sm:$0x1]
        %v1508 = vld [vmem:[%s19 + $0x1] sm:$0x1]
        %v1509 = vld [vmem:[%s19 + $0x2] sm:$0x1]
        %v1510 = vld [vmem:[%s19 + $0x3] sm:$0x1]
        %v1515 = vlaneseq
        %v1516 = vshrl.u32 %v1515, 7
        %v1517 = vsub.s32 0, %v1516
        %v1518 = vrot.slane %v1507, %v1517
        %v1519 = vlaneseq
        %v1520 = vshrl.u32 %v1519, 7
        %v1521 = vsub.s32 0, %v1520
        %v1522 = vrot.slane %v1508, %v1521
        %v1523 = vlaneseq
        %v1524 = vshrl.u32 %v1523, 7
        %v1525 = vsub.s32 0, %v1524
        %v1526 = vrot.slane %v1509, %v1525
        %v1527 = vlaneseq
        %v1528 = vshrl.u32 %v1527, 7
        %v1529 = vsub.s32 0, %v1528
        %v1530 = vrot.slane %v1510, %v1529
        %v1539 = vunpack.c.l.b16 %v1491
        %v1540 = vunpack.c.l.b16 %v1492
        %v1541 = vunpack.c.l.b16 %v1493
        %v1542 = vunpack.c.l.b16 %v1494
        %v1543 = vpack.c.b16 %v1540, %v1539
        %v1544 = vpack.c.b16 %v1542, %v1541
        %1547 = vmatprep.subr.bf16.mxu0 0
        %1548 = vmatpush1.bf16.msra.mxu0 %v1543
        %1549 = vmatprep.subr.bf16.mxu0 0
        %1550 = vmatpush1.bf16.msra.mxu0 %v1544
        %1551 = vmatprep.subr.bf16.mxu0 0
        %1552 = vmatpush1.bf16.msra.mxu0 0
        %1553 = vmatprep.subr.bf16.mxu0 0
        %1554 = vmatpush1.bf16.msra.mxu0 0
        %1555 = vmatprep.subr.bf16.mxu0 0
        %1556 = vmatpush1.bf16.msra.mxu0 0
        %1557 = vmatprep.subr.bf16.mxu0 0
        %1558 = vmatpush1.bf16.msra.mxu0 0
        %1559 = vmatprep.subr.bf16.mxu0 0
        %1560 = vmatpush1.bf16.msra.mxu0 0
        %1561 = vmatprep.subr.bf16.mxu0 0
        %1562 = vmatpush1.bf16.msra.mxu0 0
        %1563 = vmatprep.subr.bf16.mxu0 0
        %1564 = vmatpush1.bf16.msra.mxu0 0
        %1565 = vmatprep.subr.bf16.mxu0 0
        %1566 = vmatpush1.bf16.msra.mxu0 0
        %1567 = vmatprep.subr.bf16.mxu0 0
        %1568 = vmatpush1.bf16.msra.mxu0 0
        %1569 = vmatprep.subr.bf16.mxu0 0
        %1570 = vmatpush1.bf16.msra.mxu0 0
        %1571 = vmatprep.subr.bf16.mxu0 0
        %1572 = vmatpush1.bf16.msra.mxu0 0
        %1573 = vmatprep.subr.bf16.mxu0 0
        %1574 = vmatpush1.bf16.msra.mxu0 0
        %1575 = vmatprep.subr.bf16.mxu0 0
        %1576 = vmatpush1.bf16.msra.mxu0 0
        %1577 = vmatprep.subr.bf16.mxu0 0
        %1578 = vmatpush1.bf16.msra.mxu0 0
        %1579 = vmatprep.mubr.bf16.mxu0 0
        %1580 = vmatmul.mubr.bf16.gmra.mrb[0].mxu0 %v1041
        %v1581 = vpop.f32.mrb[0].mxu0
        %v1582 = vadd.f32 %v1518, %v1581
        %v1583 = vpop.f32.mrb[0].mxu0
        %v1584 = vpop.f32.mrb[0].mxu0
        %v1585 = vpop.f32.mrb[0].mxu0
        %1586 = vdwg.mxu0
        %v1591 = vunpack.c.l.b16 %v1495
        %v1592 = vunpack.c.l.b16 %v1496
        %v1593 = vunpack.c.l.b16 %v1497
        %v1594 = vunpack.c.l.b16 %v1498
        %v1595 = vpack.c.b16 %v1592, %v1591
        %v1596 = vpack.c.b16 %v1594, %v1593
        %1599 = vmatprep.subr.bf16.mxu0 0
        %1600 = vmatpush1.bf16.msra.mxu0 %v1595
        %1601 = vmatprep.subr.bf16.mxu0 0
        %1602 = vmatpush1.bf16.msra.mxu0 %v1596
        %1603 = vmatprep.subr.bf16.mxu0 0
        %1604 = vmatpush1.bf16.msra.mxu0 0
        %1605 = vmatprep.subr.bf16.mxu0 0
        %1606 = vmatpush1.bf16.msra.mxu0 0
        %1607 = vmatprep.subr.bf16.mxu0 0
        %1608 = vmatpush1.bf16.msra.mxu0 0
        %1609 = vmatprep.subr.bf16.mxu0 0
        %1610 = vmatpush1.bf16.msra.mxu0 0
        %1611 = vmatprep.subr.bf16.mxu0 0
        %1612 = vmatpush1.bf16.msra.mxu0 0
        %1613 = vmatprep.subr.bf16.mxu0 0
        %1614 = vmatpush1.bf16.msra.mxu0 0
        %1615 = vmatprep.subr.bf16.mxu0 0
        %1616 = vmatpush1.bf16.msra.mxu0 0
        %1617 = vmatprep.subr.bf16.mxu0 0
        %1618 = vmatpush1.bf16.msra.mxu0 0
        %1619 = vmatprep.subr.bf16.mxu0 0
        %1620 = vmatpush1.bf16.msra.mxu0 0
        %1621 = vmatprep.subr.bf16.mxu0 0
        %1622 = vmatpush1.bf16.msra.mxu0 0
        %1623 = vmatprep.subr.bf16.mxu0 0
        %1624 = vmatpush1.bf16.msra.mxu0 0
        %1625 = vmatprep.subr.bf16.mxu0 0
        %1626 = vmatpush1.bf16.msra.mxu0 0
        %1627 = vmatprep.subr.bf16.mxu0 0
        %1628 = vmatpush1.bf16.msra.mxu0 0
        %1629 = vmatprep.subr.bf16.mxu0 0
        %1630 = vmatpush1.bf16.msra.mxu0 0
        %1631 = vmatprep.mubr.bf16.mxu0 0
        %1632 = vmatmul.mubr.bf16.gmra.mrb[0].mxu0 %v1041
        %v1633 = vpop.f32.mrb[0].mxu0
        %v1634 = vadd.f32 %v1522, %v1633
        %v1635 = vpop.f32.mrb[0].mxu0
        %v1636 = vpop.f32.mrb[0].mxu0
        %v1637 = vpop.f32.mrb[0].mxu0
        %1638 = vdwg.mxu0
        %v1643 = vunpack.c.l.b16 %v1499
        %v1644 = vunpack.c.l.b16 %v1500
        %v1645 = vunpack.c.l.b16 %v1501
        %v1646 = vunpack.c.l.b16 %v1502
        %v1647 = vpack.c.b16 %v1644, %v1643
        %v1648 = vpack.c.b16 %v1646, %v1645
        %1651 = vmatprep.subr.bf16.mxu0 0
        %1652 = vmatpush1.bf16.msra.mxu0 %v1647
        %1653 = vmatprep.subr.bf16.mxu0 0
        %1654 = vmatpush1.bf16.msra.mxu0 %v1648
        %1655 = vmatprep.subr.bf16.mxu0 0
        %1656 = vmatpush1.bf16.msra.mxu0 0
        %1657 = vmatprep.subr.bf16.mxu0 0
        %1658 = vmatpush1.bf16.msra.mxu0 0
        %1659 = vmatprep.subr.bf16.mxu0 0
        %1660 = vmatpush1.bf16.msra.mxu0 0
        %1661 = vmatprep.subr.bf16.mxu0 0
        %1662 = vmatpush1.bf16.msra.mxu0 0
        %1663 = vmatprep.subr.bf16.mxu0 0
        %1664 = vmatpush1.bf16.msra.mxu0 0
        %1665 = vmatprep.subr.bf16.mxu0 0
        %1666 = vmatpush1.bf16.msra.mxu0 0
        %1667 = vmatprep.subr.bf16.mxu0 0
        %1668 = vmatpush1.bf16.msra.mxu0 0
        %1669 = vmatprep.subr.bf16.mxu0 0
        %1670 = vmatpush1.bf16.msra.mxu0 0
        %1671 = vmatprep.subr.bf16.mxu0 0
        %1672 = vmatpush1.bf16.msra.mxu0 0
        %1673 = vmatprep.subr.bf16.mxu0 0
        %1674 = vmatpush1.bf16.msra.mxu0 0
        %1675 = vmatprep.subr.bf16.mxu0 0
        %1676 = vmatpush1.bf16.msra.mxu0 0
        %1677 = vmatprep.subr.bf16.mxu0 0
        %1678 = vmatpush1.bf16.msra.mxu0 0
        %1679 = vmatprep.subr.bf16.mxu0 0
        %1680 = vmatpush1.bf16.msra.mxu0 0
        %1681 = vmatprep.subr.bf16.mxu0 0
        %1682 = vmatpush1.bf16.msra.mxu0 0
        %1683 = vmatprep.mubr.bf16.mxu0 0
        %1684 = vmatmul.mubr.bf16.gmra.mrb[0].mxu0 %v1041
        %v1685 = vpop.f32.mrb[0].mxu0
        %v1686 = vadd.f32 %v1526, %v1685
        %v1687 = vpop.f32.mrb[0].mxu0
        %v1688 = vpop.f32.mrb[0].mxu0
        %v1689 = vpop.f32.mrb[0].mxu0
        %1690 = vdwg.mxu0
        %v1695 = vunpack.c.l.b16 %v1503
        %v1696 = vunpack.c.l.b16 %v1504
        %v1697 = vunpack.c.l.b16 %v1505
        %v1698 = vunpack.c.l.b16 %v1506
        %v1699 = vpack.c.b16 %v1696, %v1695
        %v1700 = vpack.c.b16 %v1698, %v1697
        %1703 = vmatprep.subr.bf16.mxu0 0
        %1704 = vmatpush1.bf16.msra.mxu0 %v1699
        %1705 = vmatprep.subr.bf16.mxu0 0
        %1706 = vmatpush1.bf16.msra.mxu0 %v1700
        %1707 = vmatprep.subr.bf16.mxu0 0
        %1708 = vmatpush1.bf16.msra.mxu0 0
        %1709 = vmatprep.subr.bf16.mxu0 0
        %1710 = vmatpush1.bf16.msra.mxu0 0
        %1711 = vmatprep.subr.bf16.mxu0 0
        %1712 = vmatpush1.bf16.msra.mxu0 0
        %1713 = vmatprep.subr.bf16.mxu0 0
        %1714 = vmatpush1.bf16.msra.mxu0 0
        %1715 = vmatprep.subr.bf16.mxu0 0
        %1716 = vmatpush1.bf16.msra.mxu0 0
        %1717 = vmatprep.subr.bf16.mxu0 0
        %1718 = vmatpush1.bf16.msra.mxu0 0
        %1719 = vmatprep.subr.bf16.mxu0 0
        %1720 = vmatpush1.bf16.msra.mxu0 0
        %1721 = vmatprep.subr.bf16.mxu0 0
        %1722 = vmatpush1.bf16.msra.mxu0 0
        %1723 = vmatprep.subr.bf16.mxu0 0
        %1724 = vmatpush1.bf16.msra.mxu0 0
        %1725 = vmatprep.subr.bf16.mxu0 0
        %1726 = vmatpush1.bf16.msra.mxu0 0
        %1727 = vmatprep.subr.bf16.mxu0 0
        %1728 = vmatpush1.bf16.msra.mxu0 0
        %1729 = vmatprep.subr.bf16.mxu0 0
        %1730 = vmatpush1.bf16.msra.mxu0 0
        %1731 = vmatprep.subr.bf16.mxu0 0
        %1732 = vmatpush1.bf16.msra.mxu0 0
        %1733 = vmatprep.subr.bf16.mxu0 0
        %1734 = vmatpush1.bf16.msra.mxu0 0
        %1735 = vmatprep.mubr.bf16.mxu0 0
        %1736 = vmatmul.mubr.bf16.gmra.mrb[0].mxu0 %v1041
        %v1737 = vpop.f32.mrb[0].mxu0
        %v1738 = vadd.f32 %v1530, %v1737
        %v1739 = vpop.f32.mrb[0].mxu0
        %v1740 = vpop.f32.mrb[0].mxu0
        %v1741 = vpop.f32.mrb[0].mxu0
        %1742 = vdwg.mxu0
        %v1743 = vmul.f32 %v1078, 0.35355338
        %v1744 = vmul.f32 %v1130, 0.35355338
        %v1745 = vmul.f32 %v1182, 0.35355338
        %v1746 = vmul.f32 %v1234, 0.35355338
        %v1747 = vpack.c.bf16 %v1743, %v1743
        %v1748 = vpack.c.bf16 %v1744, %v1744
        %v1749 = vpack.c.bf16 %v1745, %v1745
        %v1750 = vpack.c.bf16 %v1746, %v1746
        %v1751 = vpack.c.bf16 %v1330, %v1330
        %v1752 = vpack.c.bf16 %v1382, %v1382
        %v1753 = vpack.c.bf16 %v1434, %v1434
        %v1754 = vpack.c.bf16 %v1486, %v1486
        %vm1755 = vcmask 64512
        %v1757 = vsel %vm1755, %v1747, 0
        %v1760 = vsel %vm1755, %v1751, 0
        %1762 = vmatprep.subr.bf16.mxu0 0
        %1763 = vmatpush1.bf16.xpose.msra.mxu0 %v1760
        %1764 = vmatprep.subr.bf16.mxu0 0
        %1765 = vmatpush1.bf16.xpose.msra.mxu0 0
        %1766 = vmatprep.subr.bf16.mxu0 0
        %1767 = vmatpush1.bf16.xpose.msra.mxu0 0
        %1768 = vmatprep.subr.bf16.mxu0 0
        %1769 = vmatpush1.bf16.xpose.msra.mxu0 0
        %1770 = vmatprep.subr.bf16.mxu0 0
        %1771 = vmatpush1.bf16.xpose.msra.mxu0 0
        %1772 = vmatprep.subr.bf16.mxu0 0
        %1773 = vmatpush1.bf16.xpose.msra.mxu0 0
        %1774 = vmatprep.subr.bf16.mxu0 0
        %1775 = vmatpush1.bf16.xpose.msra.mxu0 0
        %1776 = vmatprep.subr.bf16.mxu0 0
        %1777 = vmatpush1.bf16.xpose.msra.mxu0 0
        %1778 = vmatprep.subr.bf16.mxu0 0
        %1779 = vmatpush1.bf16.xpose.msra.mxu0 0
        %1780 = vmatprep.subr.bf16.mxu0 0
        %1781 = vmatpush1.bf16.xpose.msra.mxu0 0
        %1782 = vmatprep.subr.bf16.mxu0 0
        %1783 = vmatpush1.bf16.xpose.msra.mxu0 0
        %1784 = vmatprep.subr.bf16.mxu0 0
        %1785 = vmatpush1.bf16.xpose.msra.mxu0 0
        %1786 = vmatprep.subr.bf16.mxu0 0
        %1787 = vmatpush1.bf16.xpose.msra.mxu0 0
        %1788 = vmatprep.subr.bf16.mxu0 0
        %1789 = vmatpush1.bf16.xpose.msra.mxu0 0
        %1790 = vmatprep.subr.bf16.mxu0 0
        %1791 = vmatpush1.bf16.xpose.msra.mxu0 0
        %1792 = vmatprep.subr.bf16.mxu0 0
        %1793 = vmatpush1.bf16.xpose.msra.mxu0 0
        %1794 = vmatprep.mubr.bf16.mxu0 0
        %1795 = vmatmul.mubr.bf16.gmra.mrb[0].mxu0 %v1757
        %v1796 = vpop.f32.mrb[0].mxu0
        %v1797 = vadd.f32 %v980, %v1796
        %v1798 = vpop.f32.mrb[0].mxu0
        %v1799 = vpop.f32.mrb[0].mxu0
        %v1800 = vpop.f32.mrb[0].mxu0
        %1801 = vdwg.mxu0
        %v1803 = vsel %vm1755, %v1748, 0
        %v1806 = vsel %vm1755, %v1752, 0
        %1808 = vmatprep.subr.bf16.mxu0 0
        %1809 = vmatpush1.bf16.xpose.msra.mxu0 %v1806
        %1810 = vmatprep.subr.bf16.mxu0 0
        %1811 = vmatpush1.bf16.xpose.msra.mxu0 0
        %1812 = vmatprep.subr.bf16.mxu0 0
        %1813 = vmatpush1.bf16.xpose.msra.mxu0 0
        %1814 = vmatprep.subr.bf16.mxu0 0
        %1815 = vmatpush1.bf16.xpose.msra.mxu0 0
        %1816 = vmatprep.subr.bf16.mxu0 0
        %1817 = vmatpush1.bf16.xpose.msra.mxu0 0
        %1818 = vmatprep.subr.bf16.mxu0 0
        %1819 = vmatpush1.bf16.xpose.msra.mxu0 0
        %1820 = vmatprep.subr.bf16.mxu0 0
        %1821 = vmatpush1.bf16.xpose.msra.mxu0 0
        %1822 = vmatprep.subr.bf16.mxu0 0
        %1823 = vmatpush1.bf16.xpose.msra.mxu0 0
        %1824 = vmatprep.subr.bf16.mxu0 0
        %1825 = vmatpush1.bf16.xpose.msra.mxu0 0
        %1826 = vmatprep.subr.bf16.mxu0 0
        %1827 = vmatpush1.bf16.xpose.msra.mxu0 0
        %1828 = vmatprep.subr.bf16.mxu0 0
        %1829 = vmatpush1.bf16.xpose.msra.mxu0 0
        %1830 = vmatprep.subr.bf16.mxu0 0
        %1831 = vmatpush1.bf16.xpose.msra.mxu0 0
        %1832 = vmatprep.subr.bf16.mxu0 0
        %1833 = vmatpush1.bf16.xpose.msra.mxu0 0
        %1834 = vmatprep.subr.bf16.mxu0 0
        %1835 = vmatpush1.bf16.xpose.msra.mxu0 0
        %1836 = vmatprep.subr.bf16.mxu0 0
        %1837 = vmatpush1.bf16.xpose.msra.mxu0 0
        %1838 = vmatprep.subr.bf16.mxu0 0
        %1839 = vmatpush1.bf16.xpose.msra.mxu0 0
        %1840 = vmatprep.mubr.bf16.mxu0 0
        %1841 = vmatmul.mubr.bf16.gmra.mrb[0].mxu0 %v1803
        %v1842 = vpop.f32.mrb[0].mxu0
        %v1843 = vadd.f32 %v980, %v1842
        %v1844 = vpop.f32.mrb[0].mxu0
        %v1845 = vpop.f32.mrb[0].mxu0
        %v1846 = vpop.f32.mrb[0].mxu0
        %1847 = vdwg.mxu0
        %v1849 = vsel %vm1755, %v1749, 0
        %v1852 = vsel %vm1755, %v1753, 0
        %1854 = vmatprep.subr.bf16.mxu0 0
        %1855 = vmatpush1.bf16.xpose.msra.mxu0 %v1852
        %1856 = vmatprep.subr.bf16.mxu0 0
        %1857 = vmatpush1.bf16.xpose.msra.mxu0 0
        %1858 = vmatprep.subr.bf16.mxu0 0
        %1859 = vmatpush1.bf16.xpose.msra.mxu0 0
        %1860 = vmatprep.subr.bf16.mxu0 0
        %1861 = vmatpush1.bf16.xpose.msra.mxu0 0
        %1862 = vmatprep.subr.bf16.mxu0 0
        %1863 = vmatpush1.bf16.xpose.msra.mxu0 0
        %1864 = vmatprep.subr.bf16.mxu0 0
        %1865 = vmatpush1.bf16.xpose.msra.mxu0 0
        %1866 = vmatprep.subr.bf16.mxu0 0
        %1867 = vmatpush1.bf16.xpose.msra.mxu0 0
        %1868 = vmatprep.subr.bf16.mxu0 0
        %1869 = vmatpush1.bf16.xpose.msra.mxu0 0
        %1870 = vmatprep.subr.bf16.mxu0 0
        %1871 = vmatpush1.bf16.xpose.msra.mxu0 0
        %1872 = vmatprep.subr.bf16.mxu0 0
        %1873 = vmatpush1.bf16.xpose.msra.mxu0 0
        %1874 = vmatprep.subr.bf16.mxu0 0
        %1875 = vmatpush1.bf16.xpose.msra.mxu0 0
        %1876 = vmatprep.subr.bf16.mxu0 0
        %1877 = vmatpush1.bf16.xpose.msra.mxu0 0
        %1878 = vmatprep.subr.bf16.mxu0 0
        %1879 = vmatpush1.bf16.xpose.msra.mxu0 0
        %1880 = vmatprep.subr.bf16.mxu0 0
        %1881 = vmatpush1.bf16.xpose.msra.mxu0 0
        %1882 = vmatprep.subr.bf16.mxu0 0
        %1883 = vmatpush1.bf16.xpose.msra.mxu0 0
        %1884 = vmatprep.subr.bf16.mxu0 0
        %1885 = vmatpush1.bf16.xpose.msra.mxu0 0
        %1886 = vmatprep.mubr.bf16.mxu0 0
        %1887 = vmatmul.mubr.bf16.gmra.mrb[0].mxu0 %v1849
        %v1888 = vpop.f32.mrb[0].mxu0
        %v1889 = vadd.f32 %v980, %v1888
        %v1890 = vpop.f32.mrb[0].mxu0
        %v1891 = vpop.f32.mrb[0].mxu0
        %v1892 = vpop.f32.mrb[0].mxu0
        %1893 = vdwg.mxu0
        %v1895 = vsel %vm1755, %v1750, 0
        %v1898 = vsel %vm1755, %v1754, 0
        %1900 = vmatprep.subr.bf16.mxu0 0
        %1901 = vmatpush1.bf16.xpose.msra.mxu0 %v1898
        %1902 = vmatprep.subr.bf16.mxu0 0
        %1903 = vmatpush1.bf16.xpose.msra.mxu0 0
        %1904 = vmatprep.subr.bf16.mxu0 0
        %1905 = vmatpush1.bf16.xpose.msra.mxu0 0
        %1906 = vmatprep.subr.bf16.mxu0 0
        %1907 = vmatpush1.bf16.xpose.msra.mxu0 0
        %1908 = vmatprep.subr.bf16.mxu0 0
        %1909 = vmatpush1.bf16.xpose.msra.mxu0 0
        %1910 = vmatprep.subr.bf16.mxu0 0
        %1911 = vmatpush1.bf16.xpose.msra.mxu0 0
        %1912 = vmatprep.subr.bf16.mxu0 0
        %1913 = vmatpush1.bf16.xpose.msra.mxu0 0
        %1914 = vmatprep.subr.bf16.mxu0 0
        %1915 = vmatpush1.bf16.xpose.msra.mxu0 0
        %1916 = vmatprep.subr.bf16.mxu0 0
        %1917 = vmatpush1.bf16.xpose.msra.mxu0 0
        %1918 = vmatprep.subr.bf16.mxu0 0
        %1919 = vmatpush1.bf16.xpose.msra.mxu0 0
        %1920 = vmatprep.subr.bf16.mxu0 0
        %1921 = vmatpush1.bf16.xpose.msra.mxu0 0
        %1922 = vmatprep.subr.bf16.mxu0 0
        %1923 = vmatpush1.bf16.xpose.msra.mxu0 0
        %1924 = vmatprep.subr.bf16.mxu0 0
        %1925 = vmatpush1.bf16.xpose.msra.mxu0 0
        %1926 = vmatprep.subr.bf16.mxu0 0
        %1927 = vmatpush1.bf16.xpose.msra.mxu0 0
        %1928 = vmatprep.subr.bf16.mxu0 0
        %1929 = vmatpush1.bf16.xpose.msra.mxu0 0
        %1930 = vmatprep.subr.bf16.mxu0 0
        %1931 = vmatpush1.bf16.xpose.msra.mxu0 0
        %1932 = vmatprep.mubr.bf16.mxu0 0
        %1933 = vmatmul.mubr.bf16.gmra.mrb[0].mxu0 %v1895
        %v1934 = vpop.f32.mrb[0].mxu0
        %v1935 = vadd.f32 %v980, %v1934
        %v1936 = vpop.f32.mrb[0].mxu0
        %v1937 = vpop.f32.mrb[0].mxu0
        %v1938 = vpop.f32.mrb[0].mxu0
        %1939 = vdwg.mxu0
        %v1940 = vsel %vm1755, %v1797, -inf
        %1941 = vmax.xlane.f32.xlu0 %v1940
        %v1942 = vpop.xlane.xlu0 %1941
        %v1943 = vsel %vm1755, %v1843, -inf
        %1944 = vmax.xlane.f32.xlu0 %v1943
        %v1945 = vpop.xlane.xlu0 %1944
        %v1946 = vsel %vm1755, %v1889, -inf
        %1947 = vmax.xlane.f32.xlu0 %v1946
        %v1948 = vpop.xlane.xlu0 %1947
        %v1949 = vsel %vm1755, %v1935, -inf
        %1950 = vmax.xlane.f32.xlu0 %v1949
        %v1951 = vpop.xlane.xlu0 %1950
        %v1952 = vsub.f32 %v1797, %v1942
        %v1953 = vsub.f32 %v1843, %v1945
        %v1954 = vsub.f32 %v1889, %v1948
        %v1955 = vsub.f32 %v1935, %v1951
        %v1956 = vmul.f32 %v1952, 1.442695
        %v1957 = vpow.pop %v1956
        %v1958 = vmul.f32 %v1953, 1.442695
        %v1959 = vpow.pop %v1958
        %v1960 = vmul.f32 %v1954, 1.442695
        %v1961 = vpow.pop %v1960
        %v1962 = vmul.f32 %v1955, 1.442695
        %v1963 = vpow.pop %v1962
        %v1964 = vsel %vm1755, %v1957, 0.0
        %1965 = vadd.xlane.f32.xlu0 %v1964
        %v1966 = vpop.xlane.xlu0 %1965
        %v1967 = vsel %vm1755, %v1959, 0.0
        %1968 = vadd.xlane.f32.xlu0 %v1967
        %v1969 = vpop.xlane.xlu0 %1968
        %v1970 = vsel %vm1755, %v1961, 0.0
        %1971 = vadd.xlane.f32.xlu0 %v1970
        %v1972 = vpop.xlane.xlu0 %1971
        %v1973 = vsel %vm1755, %v1963, 0.0
        %1974 = vadd.xlane.f32.xlu0 %v1973
        %v1975 = vpop.xlane.xlu0 %1974
        %v1976 = vrcp.pop %v1966
        %v1977 = vrcp.pop %v1969
        %v1978 = vrcp.pop %v1972
        %v1979 = vrcp.pop %v1975
        %v1980 = vmul.f32 %v1957, %v1976
        %v1981 = vmul.f32 %v1959, %v1977
        %v1982 = vmul.f32 %v1961, %v1978
        %v1983 = vmul.f32 %v1963, %v1979
        %v1984 = vpack.c.bf16 %v1980, %v1980
        %v1985 = vpack.c.bf16 %v1981, %v1981
        %v1986 = vpack.c.bf16 %v1982, %v1982
        %v1987 = vpack.c.bf16 %v1983, %v1983
        %v1988 = vpack.c.bf16 %v1582, %v1582
        %v1989 = vpack.c.bf16 %v1634, %v1634
        %v1990 = vpack.c.bf16 %v1686, %v1686
        %v1991 = vpack.c.bf16 %v1738, %v1738
        %v1993 = vsel %vm1755, %v1984, 0
        %vm1995 = vcmask 1043456
        %v1997 = vsel %vm1995, %v1988, 0
        %1999 = vmatprep.subr.bf16.mxu0 0
        %2000 = vmatpush1.bf16.msra.mxu0 %v1997
        %2001 = vmatprep.subr.bf16.mxu0 0
        %2002 = vmatpush1.bf16.msra.mxu0 0
        %2003 = vmatprep.subr.bf16.mxu0 0
        %2004 = vmatpush1.bf16.msra.mxu0 0
        %2005 = vmatprep.subr.bf16.mxu0 0
        %2006 = vmatpush1.bf16.msra.mxu0 0
        %2007 = vmatprep.subr.bf16.mxu0 0
        %2008 = vmatpush1.bf16.msra.mxu0 0
        %2009 = vmatprep.subr.bf16.mxu0 0
        %2010 = vmatpush1.bf16.msra.mxu0 0
        %2011 = vmatprep.subr.bf16.mxu0 0
        %2012 = vmatpush1.bf16.msra.mxu0 0
        %2013 = vmatprep.subr.bf16.mxu0 0
        %2014 = vmatpush1.bf16.msra.mxu0 0
        %2015 = vmatprep.subr.bf16.mxu0 0
        %2016 = vmatpush1.bf16.msra.mxu0 0
        %2017 = vmatprep.subr.bf16.mxu0 0
        %2018 = vmatpush1.bf16.msra.mxu0 0
        %2019 = vmatprep.subr.bf16.mxu0 0
        %2020 = vmatpush1.bf16.msra.mxu0 0
        %2021 = vmatprep.subr.bf16.mxu0 0
        %2022 = vmatpush1.bf16.msra.mxu0 0
        %2023 = vmatprep.subr.bf16.mxu0 0
        %2024 = vmatpush1.bf16.msra.mxu0 0
        %2025 = vmatprep.subr.bf16.mxu0 0
        %2026 = vmatpush1.bf16.msra.mxu0 0
        %2027 = vmatprep.subr.bf16.mxu0 0
        %2028 = vmatpush1.bf16.msra.mxu0 0
        %2029 = vmatprep.subr.bf16.mxu0 0
        %2030 = vmatpush1.bf16.msra.mxu0 0
        %2031 = vmatprep.mubr.bf16.mxu0 0
        %2032 = vmatmul.mubr.bf16.gmra.mrb[0].mxu0 %v1993
        %v2033 = vpop.f32.mrb[0].mxu0
        %v2034 = vadd.f32 0.0, %v2033
        %v2035 = vpop.f32.mrb[0].mxu0
        %v2036 = vpop.f32.mrb[0].mxu0
        %v2037 = vpop.f32.mrb[0].mxu0
        %2038 = vdwg.mxu0
        %v2040 = vsel %vm1755, %v1985, 0
        %v2043 = vsel %vm1995, %v1989, 0
        %2045 = vmatprep.subr.bf16.mxu0 0
        %2046 = vmatpush1.bf16.msra.mxu0 %v2043
        %2047 = vmatprep.subr.bf16.mxu0 0
        %2048 = vmatpush1.bf16.msra.mxu0 0
        %2049 = vmatprep.subr.bf16.mxu0 0
        %2050 = vmatpush1.bf16.msra.mxu0 0
        %2051 = vmatprep.subr.bf16.mxu0 0
        %2052 = vmatpush1.bf16.msra.mxu0 0
        %2053 = vmatprep.subr.bf16.mxu0 0
        %2054 = vmatpush1.bf16.msra.mxu0 0
        %2055 = vmatprep.subr.bf16.mxu0 0
        %2056 = vmatpush1.bf16.msra.mxu0 0
        %2057 = vmatprep.subr.bf16.mxu0 0
        %2058 = vmatpush1.bf16.msra.mxu0 0
        %2059 = vmatprep.subr.bf16.mxu0 0
        %2060 = vmatpush1.bf16.msra.mxu0 0
        %2061 = vmatprep.subr.bf16.mxu0 0
        %2062 = vmatpush1.bf16.msra.mxu0 0
        %2063 = vmatprep.subr.bf16.mxu0 0
        %2064 = vmatpush1.bf16.msra.mxu0 0
        %2065 = vmatprep.subr.bf16.mxu0 0
        %2066 = vmatpush1.bf16.msra.mxu0 0
        %2067 = vmatprep.subr.bf16.mxu0 0
        %2068 = vmatpush1.bf16.msra.mxu0 0
        %2069 = vmatprep.subr.bf16.mxu0 0
        %2070 = vmatpush1.bf16.msra.mxu0 0
        %2071 = vmatprep.subr.bf16.mxu0 0
        %2072 = vmatpush1.bf16.msra.mxu0 0
        %2073 = vmatprep.subr.bf16.mxu0 0
        %2074 = vmatpush1.bf16.msra.mxu0 0
        %2075 = vmatprep.subr.bf16.mxu0 0
        %2076 = vmatpush1.bf16.msra.mxu0 0
        %2077 = vmatprep.mubr.bf16.mxu0 0
        %2078 = vmatmul.mubr.bf16.gmra.mrb[0].mxu0 %v2040
        %v2079 = vpop.f32.mrb[0].mxu0
        %v2080 = vadd.f32 0.0, %v2079
        %v2081 = vpop.f32.mrb[0].mxu0
        %v2082 = vpop.f32.mrb[0].mxu0
        %v2083 = vpop.f32.mrb[0].mxu0
        %2084 = vdwg.mxu0
        %v2086 = vsel %vm1755, %v1986, 0
        %v2089 = vsel %vm1995, %v1990, 0
        %2091 = vmatprep.subr.bf16.mxu0 0
        %2092 = vmatpush1.bf16.msra.mxu0 %v2089
        %2093 = vmatprep.subr.bf16.mxu0 0
        %2094 = vmatpush1.bf16.msra.mxu0 0
        %2095 = vmatprep.subr.bf16.mxu0 0
        %2096 = vmatpush1.bf16.msra.mxu0 0
        %2097 = vmatprep.subr.bf16.mxu0 0
        %2098 = vmatpush1.bf16.msra.mxu0 0
        %2099 = vmatprep.subr.bf16.mxu0 0
        %2100 = vmatpush1.bf16.msra.mxu0 0
        %2101 = vmatprep.subr.bf16.mxu0 0
        %2102 = vmatpush1.bf16.msra.mxu0 0
        %2103 = vmatprep.subr.bf16.mxu0 0
        %2104 = vmatpush1.bf16.msra.mxu0 0
        %2105 = vmatprep.subr.bf16.mxu0 0
        %2106 = vmatpush1.bf16.msra.mxu0 0
        %2107 = vmatprep.subr.bf16.mxu0 0
        %2108 = vmatpush1.bf16.msra.mxu0 0
        %2109 = vmatprep.subr.bf16.mxu0 0
        %2110 = vmatpush1.bf16.msra.mxu0 0
        %2111 = vmatprep.subr.bf16.mxu0 0
        %2112 = vmatpush1.bf16.msra.mxu0 0
        %2113 = vmatprep.subr.bf16.mxu0 0
        %2114 = vmatpush1.bf16.msra.mxu0 0
        %2115 = vmatprep.subr.bf16.mxu0 0
        %2116 = vmatpush1.bf16.msra.mxu0 0
        %2117 = vmatprep.subr.bf16.mxu0 0
        %2118 = vmatpush1.bf16.msra.mxu0 0
        %2119 = vmatprep.subr.bf16.mxu0 0
        %2120 = vmatpush1.bf16.msra.mxu0 0
        %2121 = vmatprep.subr.bf16.mxu0 0
        %2122 = vmatpush1.bf16.msra.mxu0 0
        %2123 = vmatprep.mubr.bf16.mxu0 0
        %2124 = vmatmul.mubr.bf16.gmra.mrb[0].mxu0 %v2086
        %v2125 = vpop.f32.mrb[0].mxu0
        %v2126 = vadd.f32 0.0, %v2125
        %v2127 = vpop.f32.mrb[0].mxu0
        %v2128 = vpop.f32.mrb[0].mxu0
        %v2129 = vpop.f32.mrb[0].mxu0
        %2130 = vdwg.mxu0
        %v2132 = vsel %vm1755, %v1987, 0
        %v2135 = vsel %vm1995, %v1991, 0
        %2137 = vmatprep.subr.bf16.mxu0 0
        %2138 = vmatpush1.bf16.msra.mxu0 %v2135
        %2139 = vmatprep.subr.bf16.mxu0 0
        %2140 = vmatpush1.bf16.msra.mxu0 0
        %2141 = vmatprep.subr.bf16.mxu0 0
        %2142 = vmatpush1.bf16.msra.mxu0 0
        %2143 = vmatprep.subr.bf16.mxu0 0
        %2144 = vmatpush1.bf16.msra.mxu0 0
        %2145 = vmatprep.subr.bf16.mxu0 0
        %2146 = vmatpush1.bf16.msra.mxu0 0
        %2147 = vmatprep.subr.bf16.mxu0 0
        %2148 = vmatpush1.bf16.msra.mxu0 0
        %2149 = vmatprep.subr.bf16.mxu0 0
        %2150 = vmatpush1.bf16.msra.mxu0 0
        %2151 = vmatprep.subr.bf16.mxu0 0
        %2152 = vmatpush1.bf16.msra.mxu0 0
        %2153 = vmatprep.subr.bf16.mxu0 0
        %2154 = vmatpush1.bf16.msra.mxu0 0
        %2155 = vmatprep.subr.bf16.mxu0 0
        %2156 = vmatpush1.bf16.msra.mxu0 0
        %2157 = vmatprep.subr.bf16.mxu0 0
        %2158 = vmatpush1.bf16.msra.mxu0 0
        %2159 = vmatprep.subr.bf16.mxu0 0
        %2160 = vmatpush1.bf16.msra.mxu0 0
        %2161 = vmatprep.subr.bf16.mxu0 0
        %2162 = vmatpush1.bf16.msra.mxu0 0
        %2163 = vmatprep.subr.bf16.mxu0 0
        %2164 = vmatpush1.bf16.msra.mxu0 0
        %2165 = vmatprep.subr.bf16.mxu0 0
        %2166 = vmatpush1.bf16.msra.mxu0 0
        %2167 = vmatprep.subr.bf16.mxu0 0
        %2168 = vmatpush1.bf16.msra.mxu0 0
        %2169 = vmatprep.mubr.bf16.mxu0 0
        %2170 = vmatmul.mubr.bf16.gmra.mrb[0].mxu0 %v2132
        %v2171 = vpop.f32.mrb[0].mxu0
        %v2172 = vadd.f32 0.0, %v2171
        %v2173 = vpop.f32.mrb[0].mxu0
        %v2174 = vpop.f32.mrb[0].mxu0
        %v2175 = vpop.f32.mrb[0].mxu0
        %2176 = vdwg.mxu0
        %v2177 = vpack.c.bf16 %v2034, %v2034
        %v2178 = vpack.c.bf16 %v2080, %v2080
        %v2179 = vpack.c.bf16 %v2126, %v2126
        %v2180 = vpack.c.bf16 %v2172, %v2172
        %v2181 = vld [vmem:[%s21] sm:$0xf]
        %v2182 = vld [vmem:[%s21 + $0x4] sm:$0xf]
        %v2183 = vld [vmem:[%s21 + $0x8] sm:$0xf]
        %v2184 = vld [vmem:[%s21 + $0xc] sm:$0xf]
        %v2186 = vsel %vm1755, %v2177, 0
        %v2189 = vsel %vm1995, %v2181, 0
        %2191 = vmatprep.subr.bf16.mxu0 0
        %2192 = vmatpush1.bf16.msra.mxu0 %v2189
        %2193 = vmatprep.subr.bf16.mxu0 0
        %2194 = vmatpush1.bf16.msra.mxu0 0
        %2195 = vmatprep.subr.bf16.mxu0 0
        %2196 = vmatpush1.bf16.msra.mxu0 0
        %2197 = vmatprep.subr.bf16.mxu0 0
        %2198 = vmatpush1.bf16.msra.mxu0 0
        %2199 = vmatprep.subr.bf16.mxu0 0
        %2200 = vmatpush1.bf16.msra.mxu0 0
        %2201 = vmatprep.subr.bf16.mxu0 0
        %2202 = vmatpush1.bf16.msra.mxu0 0
        %2203 = vmatprep.subr.bf16.mxu0 0
        %2204 = vmatpush1.bf16.msra.mxu0 0
        %2205 = vmatprep.subr.bf16.mxu0 0
        %2206 = vmatpush1.bf16.msra.mxu0 0
        %2207 = vmatprep.subr.bf16.mxu0 0
        %2208 = vmatpush1.bf16.msra.mxu0 0
        %2209 = vmatprep.subr.bf16.mxu0 0
        %2210 = vmatpush1.bf16.msra.mxu0 0
        %2211 = vmatprep.subr.bf16.mxu0 0
        %2212 = vmatpush1.bf16.msra.mxu0 0
        %2213 = vmatprep.subr.bf16.mxu0 0
        %2214 = vmatpush1.bf16.msra.mxu0 0
        %2215 = vmatprep.subr.bf16.mxu0 0
        %2216 = vmatpush1.bf16.msra.mxu0 0
        %2217 = vmatprep.subr.bf16.mxu0 0
        %2218 = vmatpush1.bf16.msra.mxu0 0
        %2219 = vmatprep.subr.bf16.mxu0 0
        %2220 = vmatpush1.bf16.msra.mxu0 0
        %2221 = vmatprep.subr.bf16.mxu0 0
        %2222 = vmatpush1.bf16.msra.mxu0 0
        %2223 = vmatprep.mubr.bf16.mxu0 0
        %2224 = vmatmul.mubr.bf16.gmra.mrb[0].mxu0 %v2186
        %v2225 = vpop.f32.mrb[0].mxu0
        %v2226 = vadd.f32 0.0, %v2225
        %v2227 = vpop.f32.mrb[0].mxu0
        %v2228 = vpop.f32.mrb[0].mxu0
        %v2229 = vpop.f32.mrb[0].mxu0
        %2230 = vdwg.mxu0
        %v2232 = vsel %vm1755, %v2178, 0
        %v2235 = vsel %vm1995, %v2182, 0
        %2237 = vmatprep.subr.bf16.mxu0 0
        %2238 = vmatpush1.bf16.msra.mxu0 %v2235
        %2239 = vmatprep.subr.bf16.mxu0 0
        %2240 = vmatpush1.bf16.msra.mxu0 0
        %2241 = vmatprep.subr.bf16.mxu0 0
        %2242 = vmatpush1.bf16.msra.mxu0 0
        %2243 = vmatprep.subr.bf16.mxu0 0
        %2244 = vmatpush1.bf16.msra.mxu0 0
        %2245 = vmatprep.subr.bf16.mxu0 0
        %2246 = vmatpush1.bf16.msra.mxu0 0
        %2247 = vmatprep.subr.bf16.mxu0 0
        %2248 = vmatpush1.bf16.msra.mxu0 0
        %2249 = vmatprep.subr.bf16.mxu0 0
        %2250 = vmatpush1.bf16.msra.mxu0 0
        %2251 = vmatprep.subr.bf16.mxu0 0
        %2252 = vmatpush1.bf16.msra.mxu0 0
        %2253 = vmatprep.subr.bf16.mxu0 0
        %2254 = vmatpush1.bf16.msra.mxu0 0
        %2255 = vmatprep.subr.bf16.mxu0 0
        %2256 = vmatpush1.bf16.msra.mxu0 0
        %2257 = vmatprep.subr.bf16.mxu0 0
        %2258 = vmatpush1.bf16.msra.mxu0 0
        %2259 = vmatprep.subr.bf16.mxu0 0
        %2260 = vmatpush1.bf16.msra.mxu0 0
        %2261 = vmatprep.subr.bf16.mxu0 0
        %2262 = vmatpush1.bf16.msra.mxu0 0
        %2263 = vmatprep.subr.bf16.mxu0 0
        %2264 = vmatpush1.bf16.msra.mxu0 0
        %2265 = vmatprep.subr.bf16.mxu0 0
        %2266 = vmatpush1.bf16.msra.mxu0 0
        %2267 = vmatprep.subr.bf16.mxu0 0
        %2268 = vmatpush1.bf16.msra.mxu0 0
        %2269 = vmatprep.mubr.bf16.mxu0 0
        %2270 = vmatmul.mubr.bf16.gmra.mrb[0].mxu0 %v2232
        %v2271 = vpop.f32.mrb[0].mxu0
        %v2272 = vadd.f32 0.0, %v2271
        %v2273 = vpop.f32.mrb[0].mxu0
        %v2274 = vpop.f32.mrb[0].mxu0
        %v2275 = vpop.f32.mrb[0].mxu0
        %2276 = vdwg.mxu0
        %v2278 = vsel %vm1755, %v2179, 0
        %v2281 = vsel %vm1995, %v2183, 0
        %2283 = vmatprep.subr.bf16.mxu0 0
        %2284 = vmatpush1.bf16.msra.mxu0 %v2281
        %2285 = vmatprep.subr.bf16.mxu0 0
        %2286 = vmatpush1.bf16.msra.mxu0 0
        %2287 = vmatprep.subr.bf16.mxu0 0
        %2288 = vmatpush1.bf16.msra.mxu0 0
        %2289 = vmatprep.subr.bf16.mxu0 0
        %2290 = vmatpush1.bf16.msra.mxu0 0
        %2291 = vmatprep.subr.bf16.mxu0 0
        %2292 = vmatpush1.bf16.msra.mxu0 0
        %2293 = vmatprep.subr.bf16.mxu0 0
        %2294 = vmatpush1.bf16.msra.mxu0 0
        %2295 = vmatprep.subr.bf16.mxu0 0
        %2296 = vmatpush1.bf16.msra.mxu0 0
        %2297 = vmatprep.subr.bf16.mxu0 0
        %2298 = vmatpush1.bf16.msra.mxu0 0
        %2299 = vmatprep.subr.bf16.mxu0 0
        %2300 = vmatpush1.bf16.msra.mxu0 0
        %2301 = vmatprep.subr.bf16.mxu0 0
        %2302 = vmatpush1.bf16.msra.mxu0 0
        %2303 = vmatprep.subr.bf16.mxu0 0
        %2304 = vmatpush1.bf16.msra.mxu0 0
        %2305 = vmatprep.subr.bf16.mxu0 0
        %2306 = vmatpush1.bf16.msra.mxu0 0
        %2307 = vmatprep.subr.bf16.mxu0 0
        %2308 = vmatpush1.bf16.msra.mxu0 0
        %2309 = vmatprep.subr.bf16.mxu0 0
        %2310 = vmatpush1.bf16.msra.mxu0 0
        %2311 = vmatprep.subr.bf16.mxu0 0
        %2312 = vmatpush1.bf16.msra.mxu0 0
        %2313 = vmatprep.subr.bf16.mxu0 0
        %2314 = vmatpush1.bf16.msra.mxu0 0
        %2315 = vmatprep.mubr.bf16.mxu0 0
        %2316 = vmatmul.mubr.bf16.gmra.mrb[0].mxu0 %v2278
        %v2317 = vpop.f32.mrb[0].mxu0
        %v2318 = vadd.f32 0.0, %v2317
        %v2319 = vpop.f32.mrb[0].mxu0
        %v2320 = vpop.f32.mrb[0].mxu0
        %v2321 = vpop.f32.mrb[0].mxu0
        %2322 = vdwg.mxu0
        %v2324 = vsel %vm1755, %v2180, 0
        %v2327 = vsel %vm1995, %v2184, 0
        %2329 = vmatprep.subr.bf16.mxu0 0
        %2330 = vmatpush1.bf16.msra.mxu0 %v2327
        %2331 = vmatprep.subr.bf16.mxu0 0
        %2332 = vmatpush1.bf16.msra.mxu0 0
        %2333 = vmatprep.subr.bf16.mxu0 0
        %2334 = vmatpush1.bf16.msra.mxu0 0
        %2335 = vmatprep.subr.bf16.mxu0 0
        %2336 = vmatpush1.bf16.msra.mxu0 0
        %2337 = vmatprep.subr.bf16.mxu0 0
        %2338 = vmatpush1.bf16.msra.mxu0 0
        %2339 = vmatprep.subr.bf16.mxu0 0
        %2340 = vmatpush1.bf16.msra.mxu0 0
        %2341 = vmatprep.subr.bf16.mxu0 0
        %2342 = vmatpush1.bf16.msra.mxu0 0
        %2343 = vmatprep.subr.bf16.mxu0 0
        %2344 = vmatpush1.bf16.msra.mxu0 0
        %2345 = vmatprep.subr.bf16.mxu0 0
        %2346 = vmatpush1.bf16.msra.mxu0 0
        %2347 = vmatprep.subr.bf16.mxu0 0
        %2348 = vmatpush1.bf16.msra.mxu0 0
        %2349 = vmatprep.subr.bf16.mxu0 0
        %2350 = vmatpush1.bf16.msra.mxu0 0
        %2351 = vmatprep.subr.bf16.mxu0 0
        %2352 = vmatpush1.bf16.msra.mxu0 0
        %2353 = vmatprep.subr.bf16.mxu0 0
        %2354 = vmatpush1.bf16.msra.mxu0 0
        %2355 = vmatprep.subr.bf16.mxu0 0
        %2356 = vmatpush1.bf16.msra.mxu0 0
        %2357 = vmatprep.subr.bf16.mxu0 0
        %2358 = vmatpush1.bf16.msra.mxu0 0
        %2359 = vmatprep.subr.bf16.mxu0 0
        %2360 = vmatpush1.bf16.msra.mxu0 0
        %2361 = vmatprep.mubr.bf16.mxu0 0
        %2362 = vmatmul.mubr.bf16.gmra.mrb[0].mxu0 %v2324
        %v2363 = vpop.f32.mrb[0].mxu0
        %v2364 = vadd.f32 0.0, %v2363
        %v2365 = vpop.f32.mrb[0].mxu0
        %v2366 = vpop.f32.mrb[0].mxu0
        %v2367 = vpop.f32.mrb[0].mxu0
        %2368 = vdwg.mxu0
        %v2369 = vsel %vm1039, %v2226, 0.0
        %v2370 = vsel %vm1039, %v2272, 0.0
        %v2371 = vadd.f32 %v2369, %v2370
        %v2372 = vsel %vm1039, %v2318, 0.0
        %v2373 = vadd.f32 %v2371, %v2372
        %v2374 = vsel %vm1039, %v2364, 0.0
        %v2375 = vadd.f32 %v2373, %v2374
        %v2376 = vld [vmem:[%s23] sm:$0x1]
        %v2378 = vlaneseq
        %v2379 = vshrl.u32 %v2378, 7
        %v2380 = vsub.s32 0, %v2379
        %v2381 = vrot.slane %v2376, %v2380
        %v2383 = vadd.f32 %v2375, %v2381
        %v2384 = vadd.f32 %v2383, %v978
        %v2385 = vld [vmem:[%s25] sm:$0x1]
        %v2386 = vld [vmem:[%s27] sm:$0x1]
        %v2387 = vsel %vm1039, %v2384, 0.0
        %2388 = vadd.xlane.f32.xlu0 %v2387
        %v2389 = vpop.xlane.xlu0 %2388
        %v2390 = vrcp.pop 32.0
        %v2391 = vmul.f32 %v2389, %v2390
        %v2392 = vsub.f32 %v2384, %v2391
        %v2393 = vmul.f32 %v2392, %v2392
        %v2394 = vsel %vm1039, %v2393, 0.0
        %2395 = vadd.xlane.f32.xlu0 %v2394
        %v2396 = vpop.xlane.xlu0 %2395
        %v2397 = vmul.f32 %v2396, %v2390
        %v2398 = vadd.f32 %v2397, 1e-05
        %v2399 = vrsqrt.pop %v2398
        %v2400 = vmul.f32 %v2392, %v2399
        %v2402 = vlaneseq
        %v2403 = vshrl.u32 %v2402, 7
        %v2404 = vsub.s32 0, %v2403
        %v2405 = vrot.slane %v2385, %v2404
        %v2407 = vmul.f32 %v2405, %v2400
        %v2409 = vlaneseq
        %v2410 = vshrl.u32 %v2409, 7
        %v2411 = vsub.s32 0, %v2410
        %v2412 = vrot.slane %v2386, %v2411
        %v2414 = vadd.f32 %v2407, %v2412
        %v2415 = vpack.c.bf16 %v979, %v979
        %v2416 = vpack.c.bf16 %v2414, %v2414
        %v2417 = vld [vmem:[%s29] sm:$0xf]
        %v2418 = vld [vmem:[%s29 + $0x4] sm:$0xf]
        %v2419 = vld [vmem:[%s29 + $0x8] sm:$0xf]
        %v2420 = vld [vmem:[%s29 + $0xc] sm:$0xf]
        %v2421 = vld [vmem:[%s29 + $0x10] sm:$0xf]
        %v2422 = vld [vmem:[%s29 + $0x14] sm:$0xf]
        %v2423 = vld [vmem:[%s29 + $0x18] sm:$0xf]
        %v2424 = vld [vmem:[%s29 + $0x1c] sm:$0xf]
        %v2425 = vld [vmem:[%s29 + $0x20] sm:$0xf]
        %v2426 = vld [vmem:[%s29 + $0x24] sm:$0xf]
        %v2427 = vld [vmem:[%s29 + $0x28] sm:$0xf]
        %v2428 = vld [vmem:[%s29 + $0x2c] sm:$0xf]
        %v2429 = vld [vmem:[%s29 + $0x30] sm:$0xf]
        %v2430 = vld [vmem:[%s29 + $0x34] sm:$0xf]
        %v2431 = vld [vmem:[%s29 + $0x38] sm:$0xf]
        %v2432 = vld [vmem:[%s29 + $0x3c] sm:$0xf]
        %v2433 = vld [vmem:[%s33] sm:$0x1]
        %v2434 = vld [vmem:[%s33 + $0x1] sm:$0x1]
        %v2435 = vld [vmem:[%s33 + $0x2] sm:$0x1]
        %v2436 = vld [vmem:[%s33 + $0x3] sm:$0x1]
        %v2441 = vlaneseq
        %v2442 = vshrl.u32 %v2441, 7
        %v2443 = vsub.s32 0, %v2442
        %v2444 = vrot.slane %v2433, %v2443
        %v2445 = vlaneseq
        %v2446 = vshrl.u32 %v2445, 7
        %v2447 = vsub.s32 0, %v2446
        %v2448 = vrot.slane %v2434, %v2447
        %v2449 = vlaneseq
        %v2450 = vshrl.u32 %v2449, 7
        %v2451 = vsub.s32 0, %v2450
        %v2452 = vrot.slane %v2435, %v2451
        %v2453 = vlaneseq
        %v2454 = vshrl.u32 %v2453, 7
        %v2455 = vsub.s32 0, %v2454
        %v2456 = vrot.slane %v2436, %v2455
        %v2465 = vunpack.c.l.b16 %v2417
        %v2466 = vunpack.c.l.b16 %v2418
        %v2467 = vunpack.c.l.b16 %v2419
        %v2468 = vunpack.c.l.b16 %v2420
        %v2469 = vpack.c.b16 %v2466, %v2465
        %v2470 = vpack.c.b16 %v2468, %v2467
        %v2474 = vsel %vm1039, %v2415, 0
        %2476 = vmatprep.subr.bf16.mxu0 0
        %2477 = vmatpush1.bf16.msra.mxu0 %v2469
        %2478 = vmatprep.subr.bf16.mxu0 0
        %2479 = vmatpush1.bf16.msra.mxu0 %v2470
        %2480 = vmatprep.subr.bf16.mxu0 0
        %2481 = vmatpush1.bf16.msra.mxu0 0
        %2482 = vmatprep.subr.bf16.mxu0 0
        %2483 = vmatpush1.bf16.msra.mxu0 0
        %2484 = vmatprep.subr.bf16.mxu0 0
        %2485 = vmatpush1.bf16.msra.mxu0 0
        %2486 = vmatprep.subr.bf16.mxu0 0
        %2487 = vmatpush1.bf16.msra.mxu0 0
        %2488 = vmatprep.subr.bf16.mxu0 0
        %2489 = vmatpush1.bf16.msra.mxu0 0
        %2490 = vmatprep.subr.bf16.mxu0 0
        %2491 = vmatpush1.bf16.msra.mxu0 0
        %2492 = vmatprep.subr.bf16.mxu0 0
        %2493 = vmatpush1.bf16.msra.mxu0 0
        %2494 = vmatprep.subr.bf16.mxu0 0
        %2495 = vmatpush1.bf16.msra.mxu0 0
        %2496 = vmatprep.subr.bf16.mxu0 0
        %2497 = vmatpush1.bf16.msra.mxu0 0
        %2498 = vmatprep.subr.bf16.mxu0 0
        %2499 = vmatpush1.bf16.msra.mxu0 0
        %2500 = vmatprep.subr.bf16.mxu0 0
        %2501 = vmatpush1.bf16.msra.mxu0 0
        %2502 = vmatprep.subr.bf16.mxu0 0
        %2503 = vmatpush1.bf16.msra.mxu0 0
        %2504 = vmatprep.subr.bf16.mxu0 0
        %2505 = vmatpush1.bf16.msra.mxu0 0
        %2506 = vmatprep.subr.bf16.mxu0 0
        %2507 = vmatpush1.bf16.msra.mxu0 0
        %2508 = vmatprep.mubr.bf16.mxu0 0
        %2509 = vmatmul.mubr.bf16.gmra.mrb[0].mxu0 %v2474
        %v2510 = vpop.f32.mrb[0].mxu0
        %v2511 = vadd.f32 %v2444, %v2510
        %v2512 = vpop.f32.mrb[0].mxu0
        %v2513 = vpop.f32.mrb[0].mxu0
        %v2514 = vpop.f32.mrb[0].mxu0
        %2515 = vdwg.mxu0
        %v2520 = vunpack.c.l.b16 %v2421
        %v2521 = vunpack.c.l.b16 %v2422
        %v2522 = vunpack.c.l.b16 %v2423
        %v2523 = vunpack.c.l.b16 %v2424
        %v2524 = vpack.c.b16 %v2521, %v2520
        %v2525 = vpack.c.b16 %v2523, %v2522
        %2528 = vmatprep.subr.bf16.mxu0 0
        %2529 = vmatpush1.bf16.msra.mxu0 %v2524
        %2530 = vmatprep.subr.bf16.mxu0 0
        %2531 = vmatpush1.bf16.msra.mxu0 %v2525
        %2532 = vmatprep.subr.bf16.mxu0 0
        %2533 = vmatpush1.bf16.msra.mxu0 0
        %2534 = vmatprep.subr.bf16.mxu0 0
        %2535 = vmatpush1.bf16.msra.mxu0 0
        %2536 = vmatprep.subr.bf16.mxu0 0
        %2537 = vmatpush1.bf16.msra.mxu0 0
        %2538 = vmatprep.subr.bf16.mxu0 0
        %2539 = vmatpush1.bf16.msra.mxu0 0
        %2540 = vmatprep.subr.bf16.mxu0 0
        %2541 = vmatpush1.bf16.msra.mxu0 0
        %2542 = vmatprep.subr.bf16.mxu0 0
        %2543 = vmatpush1.bf16.msra.mxu0 0
        %2544 = vmatprep.subr.bf16.mxu0 0
        %2545 = vmatpush1.bf16.msra.mxu0 0
        %2546 = vmatprep.subr.bf16.mxu0 0
        %2547 = vmatpush1.bf16.msra.mxu0 0
        %2548 = vmatprep.subr.bf16.mxu0 0
        %2549 = vmatpush1.bf16.msra.mxu0 0
        %2550 = vmatprep.subr.bf16.mxu0 0
        %2551 = vmatpush1.bf16.msra.mxu0 0
        %2552 = vmatprep.subr.bf16.mxu0 0
        %2553 = vmatpush1.bf16.msra.mxu0 0
        %2554 = vmatprep.subr.bf16.mxu0 0
        %2555 = vmatpush1.bf16.msra.mxu0 0
        %2556 = vmatprep.subr.bf16.mxu0 0
        %2557 = vmatpush1.bf16.msra.mxu0 0
        %2558 = vmatprep.subr.bf16.mxu0 0
        %2559 = vmatpush1.bf16.msra.mxu0 0
        %2560 = vmatprep.mubr.bf16.mxu0 0
        %2561 = vmatmul.mubr.bf16.gmra.mrb[0].mxu0 %v2474
        %v2562 = vpop.f32.mrb[0].mxu0
        %v2563 = vadd.f32 %v2448, %v2562
        %v2564 = vpop.f32.mrb[0].mxu0
        %v2565 = vpop.f32.mrb[0].mxu0
        %v2566 = vpop.f32.mrb[0].mxu0
        %2567 = vdwg.mxu0
        %v2572 = vunpack.c.l.b16 %v2425
        %v2573 = vunpack.c.l.b16 %v2426
        %v2574 = vunpack.c.l.b16 %v2427
        %v2575 = vunpack.c.l.b16 %v2428
        %v2576 = vpack.c.b16 %v2573, %v2572
        %v2577 = vpack.c.b16 %v2575, %v2574
        %2580 = vmatprep.subr.bf16.mxu0 0
        %2581 = vmatpush1.bf16.msra.mxu0 %v2576
        %2582 = vmatprep.subr.bf16.mxu0 0
        %2583 = vmatpush1.bf16.msra.mxu0 %v2577
        %2584 = vmatprep.subr.bf16.mxu0 0
        %2585 = vmatpush1.bf16.msra.mxu0 0
        %2586 = vmatprep.subr.bf16.mxu0 0
        %2587 = vmatpush1.bf16.msra.mxu0 0
        %2588 = vmatprep.subr.bf16.mxu0 0
        %2589 = vmatpush1.bf16.msra.mxu0 0
        %2590 = vmatprep.subr.bf16.mxu0 0
        %2591 = vmatpush1.bf16.msra.mxu0 0
        %2592 = vmatprep.subr.bf16.mxu0 0
        %2593 = vmatpush1.bf16.msra.mxu0 0
        %2594 = vmatprep.subr.bf16.mxu0 0
        %2595 = vmatpush1.bf16.msra.mxu0 0
        %2596 = vmatprep.subr.bf16.mxu0 0
        %2597 = vmatpush1.bf16.msra.mxu0 0
        %2598 = vmatprep.subr.bf16.mxu0 0
        %2599 = vmatpush1.bf16.msra.mxu0 0
        %2600 = vmatprep.subr.bf16.mxu0 0
        %2601 = vmatpush1.bf16.msra.mxu0 0
        %2602 = vmatprep.subr.bf16.mxu0 0
        %2603 = vmatpush1.bf16.msra.mxu0 0
        %2604 = vmatprep.subr.bf16.mxu0 0
        %2605 = vmatpush1.bf16.msra.mxu0 0
        %2606 = vmatprep.subr.bf16.mxu0 0
        %2607 = vmatpush1.bf16.msra.mxu0 0
        %2608 = vmatprep.subr.bf16.mxu0 0
        %2609 = vmatpush1.bf16.msra.mxu0 0
        %2610 = vmatprep.subr.bf16.mxu0 0
        %2611 = vmatpush1.bf16.msra.mxu0 0
        %2612 = vmatprep.mubr.bf16.mxu0 0
        %2613 = vmatmul.mubr.bf16.gmra.mrb[0].mxu0 %v2474
        %v2614 = vpop.f32.mrb[0].mxu0
        %v2615 = vadd.f32 %v2452, %v2614
        %v2616 = vpop.f32.mrb[0].mxu0
        %v2617 = vpop.f32.mrb[0].mxu0
        %v2618 = vpop.f32.mrb[0].mxu0
        %2619 = vdwg.mxu0
        %v2624 = vunpack.c.l.b16 %v2429
        %v2625 = vunpack.c.l.b16 %v2430
        %v2626 = vunpack.c.l.b16 %v2431
        %v2627 = vunpack.c.l.b16 %v2432
        %v2628 = vpack.c.b16 %v2625, %v2624
        %v2629 = vpack.c.b16 %v2627, %v2626
        %2632 = vmatprep.subr.bf16.mxu0 0
        %2633 = vmatpush1.bf16.msra.mxu0 %v2628
        %2634 = vmatprep.subr.bf16.mxu0 0
        %2635 = vmatpush1.bf16.msra.mxu0 %v2629
        %2636 = vmatprep.subr.bf16.mxu0 0
        %2637 = vmatpush1.bf16.msra.mxu0 0
        %2638 = vmatprep.subr.bf16.mxu0 0
        %2639 = vmatpush1.bf16.msra.mxu0 0
        %2640 = vmatprep.subr.bf16.mxu0 0
        %2641 = vmatpush1.bf16.msra.mxu0 0
        %2642 = vmatprep.subr.bf16.mxu0 0
        %2643 = vmatpush1.bf16.msra.mxu0 0
        %2644 = vmatprep.subr.bf16.mxu0 0
        %2645 = vmatpush1.bf16.msra.mxu0 0
        %2646 = vmatprep.subr.bf16.mxu0 0
        %2647 = vmatpush1.bf16.msra.mxu0 0
        %2648 = vmatprep.subr.bf16.mxu0 0
        %2649 = vmatpush1.bf16.msra.mxu0 0
        %2650 = vmatprep.subr.bf16.mxu0 0
        %2651 = vmatpush1.bf16.msra.mxu0 0
        %2652 = vmatprep.subr.bf16.mxu0 0
        %2653 = vmatpush1.bf16.msra.mxu0 0
        %2654 = vmatprep.subr.bf16.mxu0 0
        %2655 = vmatpush1.bf16.msra.mxu0 0
        %2656 = vmatprep.subr.bf16.mxu0 0
        %2657 = vmatpush1.bf16.msra.mxu0 0
        %2658 = vmatprep.subr.bf16.mxu0 0
        %2659 = vmatpush1.bf16.msra.mxu0 0
        %2660 = vmatprep.subr.bf16.mxu0 0
        %2661 = vmatpush1.bf16.msra.mxu0 0
        %2662 = vmatprep.subr.bf16.mxu0 0
        %2663 = vmatpush1.bf16.msra.mxu0 0
        %2664 = vmatprep.mubr.bf16.mxu0 0
        %2665 = vmatmul.mubr.bf16.gmra.mrb[0].mxu0 %v2474
        %v2666 = vpop.f32.mrb[0].mxu0
        %v2667 = vadd.f32 %v2456, %v2666
        %v2668 = vpop.f32.mrb[0].mxu0
        %v2669 = vpop.f32.mrb[0].mxu0
        %v2670 = vpop.f32.mrb[0].mxu0
        %2671 = vdwg.mxu0
        %v2672 = vld [vmem:[%s31] sm:$0xf]
        %v2673 = vld [vmem:[%s31 + $0x4] sm:$0xf]
        %v2674 = vld [vmem:[%s31 + $0x8] sm:$0xf]
        %v2675 = vld [vmem:[%s31 + $0xc] sm:$0xf]
        %v2676 = vld [vmem:[%s31 + $0x10] sm:$0xf]
        %v2677 = vld [vmem:[%s31 + $0x14] sm:$0xf]
        %v2678 = vld [vmem:[%s31 + $0x18] sm:$0xf]
        %v2679 = vld [vmem:[%s31 + $0x1c] sm:$0xf]
        %v2680 = vld [vmem:[%s31 + $0x20] sm:$0xf]
        %v2681 = vld [vmem:[%s31 + $0x24] sm:$0xf]
        %v2682 = vld [vmem:[%s31 + $0x28] sm:$0xf]
        %v2683 = vld [vmem:[%s31 + $0x2c] sm:$0xf]
        %v2684 = vld [vmem:[%s31 + $0x30] sm:$0xf]
        %v2685 = vld [vmem:[%s31 + $0x34] sm:$0xf]
        %v2686 = vld [vmem:[%s31 + $0x38] sm:$0xf]
        %v2687 = vld [vmem:[%s31 + $0x3c] sm:$0xf]
        %v2688 = vld [vmem:[%s35] sm:$0x1]
        %v2689 = vld [vmem:[%s35 + $0x1] sm:$0x1]
        %v2690 = vld [vmem:[%s35 + $0x2] sm:$0x1]
        %v2691 = vld [vmem:[%s35 + $0x3] sm:$0x1]
        %v2696 = vlaneseq
        %v2697 = vshrl.u32 %v2696, 7
        %v2698 = vsub.s32 0, %v2697
        %v2699 = vrot.slane %v2688, %v2698
        %v2700 = vlaneseq
        %v2701 = vshrl.u32 %v2700, 7
        %v2702 = vsub.s32 0, %v2701
        %v2703 = vrot.slane %v2689, %v2702
        %v2704 = vlaneseq
        %v2705 = vshrl.u32 %v2704, 7
        %v2706 = vsub.s32 0, %v2705
        %v2707 = vrot.slane %v2690, %v2706
        %v2708 = vlaneseq
        %v2709 = vshrl.u32 %v2708, 7
        %v2710 = vsub.s32 0, %v2709
        %v2711 = vrot.slane %v2691, %v2710
        %v2720 = vunpack.c.l.b16 %v2672
        %v2721 = vunpack.c.l.b16 %v2673
        %v2722 = vunpack.c.l.b16 %v2674
        %v2723 = vunpack.c.l.b16 %v2675
        %v2724 = vpack.c.b16 %v2721, %v2720
        %v2725 = vpack.c.b16 %v2723, %v2722
        %2728 = vmatprep.subr.bf16.mxu0 0
        %2729 = vmatpush1.bf16.msra.mxu0 %v2724
        %2730 = vmatprep.subr.bf16.mxu0 0
        %2731 = vmatpush1.bf16.msra.mxu0 %v2725
        %2732 = vmatprep.subr.bf16.mxu0 0
        %2733 = vmatpush1.bf16.msra.mxu0 0
        %2734 = vmatprep.subr.bf16.mxu0 0
        %2735 = vmatpush1.bf16.msra.mxu0 0
        %2736 = vmatprep.subr.bf16.mxu0 0
        %2737 = vmatpush1.bf16.msra.mxu0 0
        %2738 = vmatprep.subr.bf16.mxu0 0
        %2739 = vmatpush1.bf16.msra.mxu0 0
        %2740 = vmatprep.subr.bf16.mxu0 0
        %2741 = vmatpush1.bf16.msra.mxu0 0
        %2742 = vmatprep.subr.bf16.mxu0 0
        %2743 = vmatpush1.bf16.msra.mxu0 0
        %2744 = vmatprep.subr.bf16.mxu0 0
        %2745 = vmatpush1.bf16.msra.mxu0 0
        %2746 = vmatprep.subr.bf16.mxu0 0
        %2747 = vmatpush1.bf16.msra.mxu0 0
        %2748 = vmatprep.subr.bf16.mxu0 0
        %2749 = vmatpush1.bf16.msra.mxu0 0
        %2750 = vmatprep.subr.bf16.mxu0 0
        %2751 = vmatpush1.bf16.msra.mxu0 0
        %2752 = vmatprep.subr.bf16.mxu0 0
        %2753 = vmatpush1.bf16.msra.mxu0 0
        %2754 = vmatprep.subr.bf16.mxu0 0
        %2755 = vmatpush1.bf16.msra.mxu0 0
        %2756 = vmatprep.subr.bf16.mxu0 0
        %2757 = vmatpush1.bf16.msra.mxu0 0
        %2758 = vmatprep.subr.bf16.mxu0 0
        %2759 = vmatpush1.bf16.msra.mxu0 0
        %2760 = vmatprep.mubr.bf16.mxu0 0
        %2761 = vmatmul.mubr.bf16.gmra.mrb[0].mxu0 %v2474
        %v2762 = vpop.f32.mrb[0].mxu0
        %v2763 = vadd.f32 %v2699, %v2762
        %v2764 = vpop.f32.mrb[0].mxu0
        %v2765 = vpop.f32.mrb[0].mxu0
        %v2766 = vpop.f32.mrb[0].mxu0
        %2767 = vdwg.mxu0
        %v2772 = vunpack.c.l.b16 %v2676
        %v2773 = vunpack.c.l.b16 %v2677
        %v2774 = vunpack.c.l.b16 %v2678
        %v2775 = vunpack.c.l.b16 %v2679
        %v2776 = vpack.c.b16 %v2773, %v2772
        %v2777 = vpack.c.b16 %v2775, %v2774
        %2780 = vmatprep.subr.bf16.mxu0 0
        %2781 = vmatpush1.bf16.msra.mxu0 %v2776
        %2782 = vmatprep.subr.bf16.mxu0 0
        %2783 = vmatpush1.bf16.msra.mxu0 %v2777
        %2784 = vmatprep.subr.bf16.mxu0 0
        %2785 = vmatpush1.bf16.msra.mxu0 0
        %2786 = vmatprep.subr.bf16.mxu0 0
        %2787 = vmatpush1.bf16.msra.mxu0 0
        %2788 = vmatprep.subr.bf16.mxu0 0
        %2789 = vmatpush1.bf16.msra.mxu0 0
        %2790 = vmatprep.subr.bf16.mxu0 0
        %2791 = vmatpush1.bf16.msra.mxu0 0
        %2792 = vmatprep.subr.bf16.mxu0 0
        %2793 = vmatpush1.bf16.msra.mxu0 0
        %2794 = vmatprep.subr.bf16.mxu0 0
        %2795 = vmatpush1.bf16.msra.mxu0 0
        %2796 = vmatprep.subr.bf16.mxu0 0
        %2797 = vmatpush1.bf16.msra.mxu0 0
        %2798 = vmatprep.subr.bf16.mxu0 0
        %2799 = vmatpush1.bf16.msra.mxu0 0
        %2800 = vmatprep.subr.bf16.mxu0 0
        %2801 = vmatpush1.bf16.msra.mxu0 0
        %2802 = vmatprep.subr.bf16.mxu0 0
        %2803 = vmatpush1.bf16.msra.mxu0 0
        %2804 = vmatprep.subr.bf16.mxu0 0
        %2805 = vmatpush1.bf16.msra.mxu0 0
        %2806 = vmatprep.subr.bf16.mxu0 0
        %2807 = vmatpush1.bf16.msra.mxu0 0
        %2808 = vmatprep.subr.bf16.mxu0 0
        %2809 = vmatpush1.bf16.msra.mxu0 0
        %2810 = vmatprep.subr.bf16.mxu0 0
        %2811 = vmatpush1.bf16.msra.mxu0 0
        %2812 = vmatprep.mubr.bf16.mxu0 0
        %2813 = vmatmul.mubr.bf16.gmra.mrb[0].mxu0 %v2474
        %v2814 = vpop.f32.mrb[0].mxu0
        %v2815 = vadd.f32 %v2703, %v2814
        %v2816 = vpop.f32.mrb[0].mxu0
        %v2817 = vpop.f32.mrb[0].mxu0
        %v2818 = vpop.f32.mrb[0].mxu0
        %2819 = vdwg.mxu0
        %v2824 = vunpack.c.l.b16 %v2680
        %v2825 = vunpack.c.l.b16 %v2681
        %v2826 = vunpack.c.l.b16 %v2682
        %v2827 = vunpack.c.l.b16 %v2683
        %v2828 = vpack.c.b16 %v2825, %v2824
        %v2829 = vpack.c.b16 %v2827, %v2826
        %2832 = vmatprep.subr.bf16.mxu0 0
        %2833 = vmatpush1.bf16.msra.mxu0 %v2828
        %2834 = vmatprep.subr.bf16.mxu0 0
        %2835 = vmatpush1.bf16.msra.mxu0 %v2829
        %2836 = vmatprep.subr.bf16.mxu0 0
        %2837 = vmatpush1.bf16.msra.mxu0 0
        %2838 = vmatprep.subr.bf16.mxu0 0
        %2839 = vmatpush1.bf16.msra.mxu0 0
        %2840 = vmatprep.subr.bf16.mxu0 0
        %2841 = vmatpush1.bf16.msra.mxu0 0
        %2842 = vmatprep.subr.bf16.mxu0 0
        %2843 = vmatpush1.bf16.msra.mxu0 0
        %2844 = vmatprep.subr.bf16.mxu0 0
        %2845 = vmatpush1.bf16.msra.mxu0 0
        %2846 = vmatprep.subr.bf16.mxu0 0
        %2847 = vmatpush1.bf16.msra.mxu0 0
        %2848 = vmatprep.subr.bf16.mxu0 0
        %2849 = vmatpush1.bf16.msra.mxu0 0
        %2850 = vmatprep.subr.bf16.mxu0 0
        %2851 = vmatpush1.bf16.msra.mxu0 0
        %2852 = vmatprep.subr.bf16.mxu0 0
        %2853 = vmatpush1.bf16.msra.mxu0 0
        %2854 = vmatprep.subr.bf16.mxu0 0
        %2855 = vmatpush1.bf16.msra.mxu0 0
        %2856 = vmatprep.subr.bf16.mxu0 0
        %2857 = vmatpush1.bf16.msra.mxu0 0
        %2858 = vmatprep.subr.bf16.mxu0 0
        %2859 = vmatpush1.bf16.msra.mxu0 0
        %2860 = vmatprep.subr.bf16.mxu0 0
        %2861 = vmatpush1.bf16.msra.mxu0 0
        %2862 = vmatprep.subr.bf16.mxu0 0
        %2863 = vmatpush1.bf16.msra.mxu0 0
        %2864 = vmatprep.mubr.bf16.mxu0 0
        %2865 = vmatmul.mubr.bf16.gmra.mrb[0].mxu0 %v2474
        %v2866 = vpop.f32.mrb[0].mxu0
        %v2867 = vadd.f32 %v2707, %v2866
        %v2868 = vpop.f32.mrb[0].mxu0
        %v2869 = vpop.f32.mrb[0].mxu0
        %v2870 = vpop.f32.mrb[0].mxu0
        %2871 = vdwg.mxu0
        %v2876 = vunpack.c.l.b16 %v2684
        %v2877 = vunpack.c.l.b16 %v2685
        %v2878 = vunpack.c.l.b16 %v2686
        %v2879 = vunpack.c.l.b16 %v2687
        %v2880 = vpack.c.b16 %v2877, %v2876
        %v2881 = vpack.c.b16 %v2879, %v2878
        %2884 = vmatprep.subr.bf16.mxu0 0
        %2885 = vmatpush1.bf16.msra.mxu0 %v2880
        %2886 = vmatprep.subr.bf16.mxu0 0
        %2887 = vmatpush1.bf16.msra.mxu0 %v2881
        %2888 = vmatprep.subr.bf16.mxu0 0
        %2889 = vmatpush1.bf16.msra.mxu0 0
        %2890 = vmatprep.subr.bf16.mxu0 0
        %2891 = vmatpush1.bf16.msra.mxu0 0
        %2892 = vmatprep.subr.bf16.mxu0 0
        %2893 = vmatpush1.bf16.msra.mxu0 0
        %2894 = vmatprep.subr.bf16.mxu0 0
        %2895 = vmatpush1.bf16.msra.mxu0 0
        %2896 = vmatprep.subr.bf16.mxu0 0
        %2897 = vmatpush1.bf16.msra.mxu0 0
        %2898 = vmatprep.subr.bf16.mxu0 0
        %2899 = vmatpush1.bf16.msra.mxu0 0
        %2900 = vmatprep.subr.bf16.mxu0 0
        %2901 = vmatpush1.bf16.msra.mxu0 0
        %2902 = vmatprep.subr.bf16.mxu0 0
        %2903 = vmatpush1.bf16.msra.mxu0 0
        %2904 = vmatprep.subr.bf16.mxu0 0
        %2905 = vmatpush1.bf16.msra.mxu0 0
        %2906 = vmatprep.subr.bf16.mxu0 0
        %2907 = vmatpush1.bf16.msra.mxu0 0
        %2908 = vmatprep.subr.bf16.mxu0 0
        %2909 = vmatpush1.bf16.msra.mxu0 0
        %2910 = vmatprep.subr.bf16.mxu0 0
        %2911 = vmatpush1.bf16.msra.mxu0 0
        %2912 = vmatprep.subr.bf16.mxu0 0
        %2913 = vmatpush1.bf16.msra.mxu0 0
        %2914 = vmatprep.subr.bf16.mxu0 0
        %2915 = vmatpush1.bf16.msra.mxu0 0
        %2916 = vmatprep.mubr.bf16.mxu0 0
        %2917 = vmatmul.mubr.bf16.gmra.mrb[0].mxu0 %v2474
        %v2918 = vpop.f32.mrb[0].mxu0
        %v2919 = vadd.f32 %v2711, %v2918
        %v2920 = vpop.f32.mrb[0].mxu0
        %v2921 = vpop.f32.mrb[0].mxu0
        %v2922 = vpop.f32.mrb[0].mxu0
        %2923 = vdwg.mxu0
        %v2924 = vld [vmem:[%s37] sm:$0xf]
        %v2925 = vld [vmem:[%s37 + $0x4] sm:$0xf]
        %v2926 = vld [vmem:[%s37 + $0x8] sm:$0xf]
        %v2927 = vld [vmem:[%s37 + $0xc] sm:$0xf]
        %v2928 = vld [vmem:[%s37 + $0x10] sm:$0xf]
        %v2929 = vld [vmem:[%s37 + $0x14] sm:$0xf]
        %v2930 = vld [vmem:[%s37 + $0x18] sm:$0xf]
        %v2931 = vld [vmem:[%s37 + $0x1c] sm:$0xf]
        %v2932 = vld [vmem:[%s37 + $0x20] sm:$0xf]
        %v2933 = vld [vmem:[%s37 + $0x24] sm:$0xf]
        %v2934 = vld [vmem:[%s37 + $0x28] sm:$0xf]
        %v2935 = vld [vmem:[%s37 + $0x2c] sm:$0xf]
        %v2936 = vld [vmem:[%s37 + $0x30] sm:$0xf]
        %v2937 = vld [vmem:[%s37 + $0x34] sm:$0xf]
        %v2938 = vld [vmem:[%s37 + $0x38] sm:$0xf]
        %v2939 = vld [vmem:[%s37 + $0x3c] sm:$0xf]
        %v2940 = vld [vmem:[%s39] sm:$0x1]
        %v2941 = vld [vmem:[%s39 + $0x1] sm:$0x1]
        %v2942 = vld [vmem:[%s39 + $0x2] sm:$0x1]
        %v2943 = vld [vmem:[%s39 + $0x3] sm:$0x1]
        %v2948 = vlaneseq
        %v2949 = vshrl.u32 %v2948, 7
        %v2950 = vsub.s32 0, %v2949
        %v2951 = vrot.slane %v2940, %v2950
        %v2952 = vlaneseq
        %v2953 = vshrl.u32 %v2952, 7
        %v2954 = vsub.s32 0, %v2953
        %v2955 = vrot.slane %v2941, %v2954
        %v2956 = vlaneseq
        %v2957 = vshrl.u32 %v2956, 7
        %v2958 = vsub.s32 0, %v2957
        %v2959 = vrot.slane %v2942, %v2958
        %v2960 = vlaneseq
        %v2961 = vshrl.u32 %v2960, 7
        %v2962 = vsub.s32 0, %v2961
        %v2963 = vrot.slane %v2943, %v2962
        %v2972 = vunpack.c.l.b16 %v2924
        %v2973 = vunpack.c.l.b16 %v2925
        %v2974 = vunpack.c.l.b16 %v2926
        %v2975 = vunpack.c.l.b16 %v2927
        %v2976 = vpack.c.b16 %v2973, %v2972
        %v2977 = vpack.c.b16 %v2975, %v2974
        %v2981 = vsel %vm1039, %v2416, 0
        %2983 = vmatprep.subr.bf16.mxu0 0
        %2984 = vmatpush1.bf16.msra.mxu0 %v2976
        %2985 = vmatprep.subr.bf16.mxu0 0
        %2986 = vmatpush1.bf16.msra.mxu0 %v2977
        %2987 = vmatprep.subr.bf16.mxu0 0
        %2988 = vmatpush1.bf16.msra.mxu0 0
        %2989 = vmatprep.subr.bf16.mxu0 0
        %2990 = vmatpush1.bf16.msra.mxu0 0
        %2991 = vmatprep.subr.bf16.mxu0 0
        %2992 = vmatpush1.bf16.msra.mxu0 0
        %2993 = vmatprep.subr.bf16.mxu0 0
        %2994 = vmatpush1.bf16.msra.mxu0 0
        %2995 = vmatprep.subr.bf16.mxu0 0
        %2996 = vmatpush1.bf16.msra.mxu0 0
        %2997 = vmatprep.subr.bf16.mxu0 0
        %2998 = vmatpush1.bf16.msra.mxu0 0
        %2999 = vmatprep.subr.bf16.mxu0 0
        %3000 = vmatpush1.bf16.msra.mxu0 0
        %3001 = vmatprep.subr.bf16.mxu0 0
        %3002 = vmatpush1.bf16.msra.mxu0 0
        %3003 = vmatprep.subr.bf16.mxu0 0
        %3004 = vmatpush1.bf16.msra.mxu0 0
        %3005 = vmatprep.subr.bf16.mxu0 0
        %3006 = vmatpush1.bf16.msra.mxu0 0
        %3007 = vmatprep.subr.bf16.mxu0 0
        %3008 = vmatpush1.bf16.msra.mxu0 0
        %3009 = vmatprep.subr.bf16.mxu0 0
        %3010 = vmatpush1.bf16.msra.mxu0 0
        %3011 = vmatprep.subr.bf16.mxu0 0
        %3012 = vmatpush1.bf16.msra.mxu0 0
        %3013 = vmatprep.subr.bf16.mxu0 0
        %3014 = vmatpush1.bf16.msra.mxu0 0
        %3015 = vmatprep.mubr.bf16.mxu0 0
        %3016 = vmatmul.mubr.bf16.gmra.mrb[0].mxu0 %v2981
        %v3017 = vpop.f32.mrb[0].mxu0
        %v3018 = vadd.f32 %v2951, %v3017
        %v3019 = vpop.f32.mrb[0].mxu0
        %v3020 = vpop.f32.mrb[0].mxu0
        %v3021 = vpop.f32.mrb[0].mxu0
        %3022 = vdwg.mxu0
        %v3027 = vunpack.c.l.b16 %v2928
        %v3028 = vunpack.c.l.b16 %v2929
        %v3029 = vunpack.c.l.b16 %v2930
        %v3030 = vunpack.c.l.b16 %v2931
        %v3031 = vpack.c.b16 %v3028, %v3027
        %v3032 = vpack.c.b16 %v3030, %v3029
        %3035 = vmatprep.subr.bf16.mxu0 0
        %3036 = vmatpush1.bf16.msra.mxu0 %v3031
        %3037 = vmatprep.subr.bf16.mxu0 0
        %3038 = vmatpush1.bf16.msra.mxu0 %v3032
        %3039 = vmatprep.subr.bf16.mxu0 0
        %3040 = vmatpush1.bf16.msra.mxu0 0
        %3041 = vmatprep.subr.bf16.mxu0 0
        %3042 = vmatpush1.bf16.msra.mxu0 0
        %3043 = vmatprep.subr.bf16.mxu0 0
        %3044 = vmatpush1.bf16.msra.mxu0 0
        %3045 = vmatprep.subr.bf16.mxu0 0
        %3046 = vmatpush1.bf16.msra.mxu0 0
        %3047 = vmatprep.subr.bf16.mxu0 0
        %3048 = vmatpush1.bf16.msra.mxu0 0
        %3049 = vmatprep.subr.bf16.mxu0 0
        %3050 = vmatpush1.bf16.msra.mxu0 0
        %3051 = vmatprep.subr.bf16.mxu0 0
        %3052 = vmatpush1.bf16.msra.mxu0 0
        %3053 = vmatprep.subr.bf16.mxu0 0
        %3054 = vmatpush1.bf16.msra.mxu0 0
        %3055 = vmatprep.subr.bf16.mxu0 0
        %3056 = vmatpush1.bf16.msra.mxu0 0
        %3057 = vmatprep.subr.bf16.mxu0 0
        %3058 = vmatpush1.bf16.msra.mxu0 0
        %3059 = vmatprep.subr.bf16.mxu0 0
        %3060 = vmatpush1.bf16.msra.mxu0 0
        %3061 = vmatprep.subr.bf16.mxu0 0
        %3062 = vmatpush1.bf16.msra.mxu0 0
        %3063 = vmatprep.subr.bf16.mxu0 0
        %3064 = vmatpush1.bf16.msra.mxu0 0
        %3065 = vmatprep.subr.bf16.mxu0 0
        %3066 = vmatpush1.bf16.msra.mxu0 0
        %3067 = vmatprep.mubr.bf16.mxu0 0
        %3068 = vmatmul.mubr.bf16.gmra.mrb[0].mxu0 %v2981
        %v3069 = vpop.f32.mrb[0].mxu0
        %v3070 = vadd.f32 %v2955, %v3069
        %v3071 = vpop.f32.mrb[0].mxu0
        %v3072 = vpop.f32.mrb[0].mxu0
        %v3073 = vpop.f32.mrb[0].mxu0
        %3074 = vdwg.mxu0
        %v3079 = vunpack.c.l.b16 %v2932
        %v3080 = vunpack.c.l.b16 %v2933
        %v3081 = vunpack.c.l.b16 %v2934
        %v3082 = vunpack.c.l.b16 %v2935
        %v3083 = vpack.c.b16 %v3080, %v3079
        %v3084 = vpack.c.b16 %v3082, %v3081
        %3087 = vmatprep.subr.bf16.mxu0 0
        %3088 = vmatpush1.bf16.msra.mxu0 %v3083
        %3089 = vmatprep.subr.bf16.mxu0 0
        %3090 = vmatpush1.bf16.msra.mxu0 %v3084
        %3091 = vmatprep.subr.bf16.mxu0 0
        %3092 = vmatpush1.bf16.msra.mxu0 0
        %3093 = vmatprep.subr.bf16.mxu0 0
        %3094 = vmatpush1.bf16.msra.mxu0 0
        %3095 = vmatprep.subr.bf16.mxu0 0
        %3096 = vmatpush1.bf16.msra.mxu0 0
        %3097 = vmatprep.subr.bf16.mxu0 0
        %3098 = vmatpush1.bf16.msra.mxu0 0
        %3099 = vmatprep.subr.bf16.mxu0 0
        %3100 = vmatpush1.bf16.msra.mxu0 0
        %3101 = vmatprep.subr.bf16.mxu0 0
        %3102 = vmatpush1.bf16.msra.mxu0 0
        %3103 = vmatprep.subr.bf16.mxu0 0
        %3104 = vmatpush1.bf16.msra.mxu0 0
        %3105 = vmatprep.subr.bf16.mxu0 0
        %3106 = vmatpush1.bf16.msra.mxu0 0
        %3107 = vmatprep.subr.bf16.mxu0 0
        %3108 = vmatpush1.bf16.msra.mxu0 0
        %3109 = vmatprep.subr.bf16.mxu0 0
        %3110 = vmatpush1.bf16.msra.mxu0 0
        %3111 = vmatprep.subr.bf16.mxu0 0
        %3112 = vmatpush1.bf16.msra.mxu0 0
        %3113 = vmatprep.subr.bf16.mxu0 0
        %3114 = vmatpush1.bf16.msra.mxu0 0
        %3115 = vmatprep.subr.bf16.mxu0 0
        %3116 = vmatpush1.bf16.msra.mxu0 0
        %3117 = vmatprep.subr.bf16.mxu0 0
        %3118 = vmatpush1.bf16.msra.mxu0 0
        %3119 = vmatprep.mubr.bf16.mxu0 0
        %3120 = vmatmul.mubr.bf16.gmra.mrb[0].mxu0 %v2981
        %v3121 = vpop.f32.mrb[0].mxu0
        %v3122 = vadd.f32 %v2959, %v3121
        %v3123 = vpop.f32.mrb[0].mxu0
        %v3124 = vpop.f32.mrb[0].mxu0
        %v3125 = vpop.f32.mrb[0].mxu0
        %3126 = vdwg.mxu0
        %v3131 = vunpack.c.l.b16 %v2936
        %v3132 = vunpack.c.l.b16 %v2937
        %v3133 = vunpack.c.l.b16 %v2938
        %v3134 = vunpack.c.l.b16 %v2939
        %v3135 = vpack.c.b16 %v3132, %v3131
        %v3136 = vpack.c.b16 %v3134, %v3133
        %3139 = vmatprep.subr.bf16.mxu0 0
        %3140 = vmatpush1.bf16.msra.mxu0 %v3135
        %3141 = vmatprep.subr.bf16.mxu0 0
        %3142 = vmatpush1.bf16.msra.mxu0 %v3136
        %3143 = vmatprep.subr.bf16.mxu0 0
        %3144 = vmatpush1.bf16.msra.mxu0 0
        %3145 = vmatprep.subr.bf16.mxu0 0
        %3146 = vmatpush1.bf16.msra.mxu0 0
        %3147 = vmatprep.subr.bf16.mxu0 0
        %3148 = vmatpush1.bf16.msra.mxu0 0
        %3149 = vmatprep.subr.bf16.mxu0 0
        %3150 = vmatpush1.bf16.msra.mxu0 0
        %3151 = vmatprep.subr.bf16.mxu0 0
        %3152 = vmatpush1.bf16.msra.mxu0 0
        %3153 = vmatprep.subr.bf16.mxu0 0
        %3154 = vmatpush1.bf16.msra.mxu0 0
        %3155 = vmatprep.subr.bf16.mxu0 0
        %3156 = vmatpush1.bf16.msra.mxu0 0
        %3157 = vmatprep.subr.bf16.mxu0 0
        %3158 = vmatpush1.bf16.msra.mxu0 0
        %3159 = vmatprep.subr.bf16.mxu0 0
        %3160 = vmatpush1.bf16.msra.mxu0 0
        %3161 = vmatprep.subr.bf16.mxu0 0
        %3162 = vmatpush1.bf16.msra.mxu0 0
        %3163 = vmatprep.subr.bf16.mxu0 0
        %3164 = vmatpush1.bf16.msra.mxu0 0
        %3165 = vmatprep.subr.bf16.mxu0 0
        %3166 = vmatpush1.bf16.msra.mxu0 0
        %3167 = vmatprep.subr.bf16.mxu0 0
        %3168 = vmatpush1.bf16.msra.mxu0 0
        %3169 = vmatprep.subr.bf16.mxu0 0
        %3170 = vmatpush1.bf16.msra.mxu0 0
        %3171 = vmatprep.mubr.bf16.mxu0 0
        %3172 = vmatmul.mubr.bf16.gmra.mrb[0].mxu0 %v2981
        %v3173 = vpop.f32.mrb[0].mxu0
        %v3174 = vadd.f32 %v2963, %v3173
        %v3175 = vpop.f32.mrb[0].mxu0
        %v3176 = vpop.f32.mrb[0].mxu0
        %v3177 = vpop.f32.mrb[0].mxu0
        %3178 = vdwg.mxu0
        %v3179 = vmul.f32 %v3018, 0.35355338
        %v3180 = vmul.f32 %v3070, 0.35355338
        %v3181 = vmul.f32 %v3122, 0.35355338
        %v3182 = vmul.f32 %v3174, 0.35355338
        %v3183 = vpack.c.bf16 %v3179, %v3179
        %v3184 = vpack.c.bf16 %v3180, %v3180
        %v3185 = vpack.c.bf16 %v3181, %v3181
        %v3186 = vpack.c.bf16 %v3182, %v3182
        %v3187 = vpack.c.bf16 %v2511, %v2511
        %v3188 = vpack.c.bf16 %v2563, %v2563
        %v3189 = vpack.c.bf16 %v2615, %v2615
        %v3190 = vpack.c.bf16 %v2667, %v2667
        %v3192 = vsel %vm1755, %v3183, 0
        %v3195 = vsel %vm1755, %v3187, 0
        %3197 = vmatprep.subr.bf16.mxu0 0
        %3198 = vmatpush1.bf16.xpose.msra.mxu0 %v3195
        %3199 = vmatprep.subr.bf16.mxu0 0
        %3200 = vmatpush1.bf16.xpose.msra.mxu0 0
        %3201 = vmatprep.subr.bf16.mxu0 0
        %3202 = vmatpush1.bf16.xpose.msra.mxu0 0
        %3203 = vmatprep.subr.bf16.mxu0 0
        %3204 = vmatpush1.bf16.xpose.msra.mxu0 0
        %3205 = vmatprep.subr.bf16.mxu0 0
        %3206 = vmatpush1.bf16.xpose.msra.mxu0 0
        %3207 = vmatprep.subr.bf16.mxu0 0
        %3208 = vmatpush1.bf16.xpose.msra.mxu0 0
        %3209 = vmatprep.subr.bf16.mxu0 0
        %3210 = vmatpush1.bf16.xpose.msra.mxu0 0
        %3211 = vmatprep.subr.bf16.mxu0 0
        %3212 = vmatpush1.bf16.xpose.msra.mxu0 0
        %3213 = vmatprep.subr.bf16.mxu0 0
        %3214 = vmatpush1.bf16.xpose.msra.mxu0 0
        %3215 = vmatprep.subr.bf16.mxu0 0
        %3216 = vmatpush1.bf16.xpose.msra.mxu0 0
        %3217 = vmatprep.subr.bf16.mxu0 0
        %3218 = vmatpush1.bf16.xpose.msra.mxu0 0
        %3219 = vmatprep.subr.bf16.mxu0 0
        %3220 = vmatpush1.bf16.xpose.msra.mxu0 0
        %3221 = vmatprep.subr.bf16.mxu0 0
        %3222 = vmatpush1.bf16.xpose.msra.mxu0 0
        %3223 = vmatprep.subr.bf16.mxu0 0
        %3224 = vmatpush1.bf16.xpose.msra.mxu0 0
        %3225 = vmatprep.subr.bf16.mxu0 0
        %3226 = vmatpush1.bf16.xpose.msra.mxu0 0
        %3227 = vmatprep.subr.bf16.mxu0 0
        %3228 = vmatpush1.bf16.xpose.msra.mxu0 0
        %3229 = vmatprep.mubr.bf16.mxu0 0
        %3230 = vmatmul.mubr.bf16.gmra.mrb[0].mxu0 %v3192
        %v3231 = vpop.f32.mrb[0].mxu0
        %v3232 = vadd.f32 %v981, %v3231
        %v3233 = vpop.f32.mrb[0].mxu0
        %v3234 = vpop.f32.mrb[0].mxu0
        %v3235 = vpop.f32.mrb[0].mxu0
        %3236 = vdwg.mxu0
        %v3238 = vsel %vm1755, %v3184, 0
        %v3241 = vsel %vm1755, %v3188, 0
        %3243 = vmatprep.subr.bf16.mxu0 0
        %3244 = vmatpush1.bf16.xpose.msra.mxu0 %v3241
        %3245 = vmatprep.subr.bf16.mxu0 0
        %3246 = vmatpush1.bf16.xpose.msra.mxu0 0
        %3247 = vmatprep.subr.bf16.mxu0 0
        %3248 = vmatpush1.bf16.xpose.msra.mxu0 0
        %3249 = vmatprep.subr.bf16.mxu0 0
        %3250 = vmatpush1.bf16.xpose.msra.mxu0 0
        %3251 = vmatprep.subr.bf16.mxu0 0
        %3252 = vmatpush1.bf16.xpose.msra.mxu0 0
        %3253 = vmatprep.subr.bf16.mxu0 0
        %3254 = vmatpush1.bf16.xpose.msra.mxu0 0
        %3255 = vmatprep.subr.bf16.mxu0 0
        %3256 = vmatpush1.bf16.xpose.msra.mxu0 0
        %3257 = vmatprep.subr.bf16.mxu0 0
        %3258 = vmatpush1.bf16.xpose.msra.mxu0 0
        %3259 = vmatprep.subr.bf16.mxu0 0
        %3260 = vmatpush1.bf16.xpose.msra.mxu0 0
        %3261 = vmatprep.subr.bf16.mxu0 0
        %3262 = vmatpush1.bf16.xpose.msra.mxu0 0
        %3263 = vmatprep.subr.bf16.mxu0 0
        %3264 = vmatpush1.bf16.xpose.msra.mxu0 0
        %3265 = vmatprep.subr.bf16.mxu0 0
        %3266 = vmatpush1.bf16.xpose.msra.mxu0 0
        %3267 = vmatprep.subr.bf16.mxu0 0
        %3268 = vmatpush1.bf16.xpose.msra.mxu0 0
        %3269 = vmatprep.subr.bf16.mxu0 0
        %3270 = vmatpush1.bf16.xpose.msra.mxu0 0
        %3271 = vmatprep.subr.bf16.mxu0 0
        %3272 = vmatpush1.bf16.xpose.msra.mxu0 0
        %3273 = vmatprep.subr.bf16.mxu0 0
        %3274 = vmatpush1.bf16.xpose.msra.mxu0 0
        %3275 = vmatprep.mubr.bf16.mxu0 0
        %3276 = vmatmul.mubr.bf16.gmra.mrb[0].mxu0 %v3238
        %v3277 = vpop.f32.mrb[0].mxu0
        %v3278 = vadd.f32 %v981, %v3277
        %v3279 = vpop.f32.mrb[0].mxu0
        %v3280 = vpop.f32.mrb[0].mxu0
        %v3281 = vpop.f32.mrb[0].mxu0
        %3282 = vdwg.mxu0
        %v3284 = vsel %vm1755, %v3185, 0
        %v3287 = vsel %vm1755, %v3189, 0
        %3289 = vmatprep.subr.bf16.mxu0 0
        %3290 = vmatpush1.bf16.xpose.msra.mxu0 %v3287
        %3291 = vmatprep.subr.bf16.mxu0 0
        %3292 = vmatpush1.bf16.xpose.msra.mxu0 0
        %3293 = vmatprep.subr.bf16.mxu0 0
        %3294 = vmatpush1.bf16.xpose.msra.mxu0 0
        %3295 = vmatprep.subr.bf16.mxu0 0
        %3296 = vmatpush1.bf16.xpose.msra.mxu0 0
        %3297 = vmatprep.subr.bf16.mxu0 0
        %3298 = vmatpush1.bf16.xpose.msra.mxu0 0
        %3299 = vmatprep.subr.bf16.mxu0 0
        %3300 = vmatpush1.bf16.xpose.msra.mxu0 0
        %3301 = vmatprep.subr.bf16.mxu0 0
        %3302 = vmatpush1.bf16.xpose.msra.mxu0 0
        %3303 = vmatprep.subr.bf16.mxu0 0
        %3304 = vmatpush1.bf16.xpose.msra.mxu0 0
        %3305 = vmatprep.subr.bf16.mxu0 0
        %3306 = vmatpush1.bf16.xpose.msra.mxu0 0
        %3307 = vmatprep.subr.bf16.mxu0 0
        %3308 = vmatpush1.bf16.xpose.msra.mxu0 0
        %3309 = vmatprep.subr.bf16.mxu0 0
        %3310 = vmatpush1.bf16.xpose.msra.mxu0 0
        %3311 = vmatprep.subr.bf16.mxu0 0
        %3312 = vmatpush1.bf16.xpose.msra.mxu0 0
        %3313 = vmatprep.subr.bf16.mxu0 0
        %3314 = vmatpush1.bf16.xpose.msra.mxu0 0
        %3315 = vmatprep.subr.bf16.mxu0 0
        %3316 = vmatpush1.bf16.xpose.msra.mxu0 0
        %3317 = vmatprep.subr.bf16.mxu0 0
        %3318 = vmatpush1.bf16.xpose.msra.mxu0 0
        %3319 = vmatprep.subr.bf16.mxu0 0
        %3320 = vmatpush1.bf16.xpose.msra.mxu0 0
        %3321 = vmatprep.mubr.bf16.mxu0 0
        %3322 = vmatmul.mubr.bf16.gmra.mrb[0].mxu0 %v3284
        %v3323 = vpop.f32.mrb[0].mxu0
        %v3324 = vadd.f32 %v981, %v3323
        %v3325 = vpop.f32.mrb[0].mxu0
        %v3326 = vpop.f32.mrb[0].mxu0
        %v3327 = vpop.f32.mrb[0].mxu0
        %3328 = vdwg.mxu0
        %v3330 = vsel %vm1755, %v3186, 0
        %v3333 = vsel %vm1755, %v3190, 0
        %3335 = vmatprep.subr.bf16.mxu0 0
        %3336 = vmatpush1.bf16.xpose.msra.mxu0 %v3333
        %3337 = vmatprep.subr.bf16.mxu0 0
        %3338 = vmatpush1.bf16.xpose.msra.mxu0 0
        %3339 = vmatprep.subr.bf16.mxu0 0
        %3340 = vmatpush1.bf16.xpose.msra.mxu0 0
        %3341 = vmatprep.subr.bf16.mxu0 0
        %3342 = vmatpush1.bf16.xpose.msra.mxu0 0
        %3343 = vmatprep.subr.bf16.mxu0 0
        %3344 = vmatpush1.bf16.xpose.msra.mxu0 0
        %3345 = vmatprep.subr.bf16.mxu0 0
        %3346 = vmatpush1.bf16.xpose.msra.mxu0 0
        %3347 = vmatprep.subr.bf16.mxu0 0
        %3348 = vmatpush1.bf16.xpose.msra.mxu0 0
        %3349 = vmatprep.subr.bf16.mxu0 0
        %3350 = vmatpush1.bf16.xpose.msra.mxu0 0
        %3351 = vmatprep.subr.bf16.mxu0 0
        %3352 = vmatpush1.bf16.xpose.msra.mxu0 0
        %3353 = vmatprep.subr.bf16.mxu0 0
        %3354 = vmatpush1.bf16.xpose.msra.mxu0 0
        %3355 = vmatprep.subr.bf16.mxu0 0
        %3356 = vmatpush1.bf16.xpose.msra.mxu0 0
        %3357 = vmatprep.subr.bf16.mxu0 0
        %3358 = vmatpush1.bf16.xpose.msra.mxu0 0
        %3359 = vmatprep.subr.bf16.mxu0 0
        %3360 = vmatpush1.bf16.xpose.msra.mxu0 0
        %3361 = vmatprep.subr.bf16.mxu0 0
        %3362 = vmatpush1.bf16.xpose.msra.mxu0 0
        %3363 = vmatprep.subr.bf16.mxu0 0
        %3364 = vmatpush1.bf16.xpose.msra.mxu0 0
        %3365 = vmatprep.subr.bf16.mxu0 0
        %3366 = vmatpush1.bf16.xpose.msra.mxu0 0
        %3367 = vmatprep.mubr.bf16.mxu0 0
        %3368 = vmatmul.mubr.bf16.gmra.mrb[0].mxu0 %v3330
        %v3369 = vpop.f32.mrb[0].mxu0
        %v3370 = vadd.f32 %v981, %v3369
        %v3371 = vpop.f32.mrb[0].mxu0
        %v3372 = vpop.f32.mrb[0].mxu0
        %v3373 = vpop.f32.mrb[0].mxu0
        %3374 = vdwg.mxu0
        %v3375 = vsel %vm1755, %v3232, -inf
        %3376 = vmax.xlane.f32.xlu0 %v3375
        %v3377 = vpop.xlane.xlu0 %3376
        %v3378 = vsel %vm1755, %v3278, -inf
        %3379 = vmax.xlane.f32.xlu0 %v3378
        %v3380 = vpop.xlane.xlu0 %3379
        %v3381 = vsel %vm1755, %v3324, -inf
        %3382 = vmax.xlane.f32.xlu0 %v3381
        %v3383 = vpop.xlane.xlu0 %3382
        %v3384 = vsel %vm1755, %v3370, -inf
        %3385 = vmax.xlane.f32.xlu0 %v3384
        %v3386 = vpop.xlane.xlu0 %3385
        %v3387 = vsub.f32 %v3232, %v3377
        %v3388 = vsub.f32 %v3278, %v3380
        %v3389 = vsub.f32 %v3324, %v3383
        %v3390 = vsub.f32 %v3370, %v3386
        %v3391 = vmul.f32 %v3387, 1.442695
        %v3392 = vpow.pop %v3391
        %v3393 = vmul.f32 %v3388, 1.442695
        %v3394 = vpow.pop %v3393
        %v3395 = vmul.f32 %v3389, 1.442695
        %v3396 = vpow.pop %v3395
        %v3397 = vmul.f32 %v3390, 1.442695
        %v3398 = vpow.pop %v3397
        %v3399 = vsel %vm1755, %v3392, 0.0
        %3400 = vadd.xlane.f32.xlu0 %v3399
        %v3401 = vpop.xlane.xlu0 %3400
        %v3402 = vsel %vm1755, %v3394, 0.0
        %3403 = vadd.xlane.f32.xlu0 %v3402
        %v3404 = vpop.xlane.xlu0 %3403
        %v3405 = vsel %vm1755, %v3396, 0.0
        %3406 = vadd.xlane.f32.xlu0 %v3405
        %v3407 = vpop.xlane.xlu0 %3406
        %v3408 = vsel %vm1755, %v3398, 0.0
        %3409 = vadd.xlane.f32.xlu0 %v3408
        %v3410 = vpop.xlane.xlu0 %3409
        %v3411 = vrcp.pop %v3401
        %v3412 = vrcp.pop %v3404
        %v3413 = vrcp.pop %v3407
        %v3414 = vrcp.pop %v3410
        %v3415 = vmul.f32 %v3392, %v3411
        %v3416 = vmul.f32 %v3394, %v3412
        %v3417 = vmul.f32 %v3396, %v3413
        %v3418 = vmul.f32 %v3398, %v3414
        %v3419 = vpack.c.bf16 %v3415, %v3415
        %v3420 = vpack.c.bf16 %v3416, %v3416
        %v3421 = vpack.c.bf16 %v3417, %v3417
        %v3422 = vpack.c.bf16 %v3418, %v3418
        %v3423 = vpack.c.bf16 %v2763, %v2763
        %v3424 = vpack.c.bf16 %v2815, %v2815
        %v3425 = vpack.c.bf16 %v2867, %v2867
        %v3426 = vpack.c.bf16 %v2919, %v2919
        %v3428 = vsel %vm1755, %v3419, 0
        %v3431 = vsel %vm1995, %v3423, 0
        %3433 = vmatprep.subr.bf16.mxu0 0
        %3434 = vmatpush1.bf16.msra.mxu0 %v3431
        %3435 = vmatprep.subr.bf16.mxu0 0
        %3436 = vmatpush1.bf16.msra.mxu0 0
        %3437 = vmatprep.subr.bf16.mxu0 0
        %3438 = vmatpush1.bf16.msra.mxu0 0
        %3439 = vmatprep.subr.bf16.mxu0 0
        %3440 = vmatpush1.bf16.msra.mxu0 0
        %3441 = vmatprep.subr.bf16.mxu0 0
        %3442 = vmatpush1.bf16.msra.mxu0 0
        %3443 = vmatprep.subr.bf16.mxu0 0
        %3444 = vmatpush1.bf16.msra.mxu0 0
        %3445 = vmatprep.subr.bf16.mxu0 0
        %3446 = vmatpush1.bf16.msra.mxu0 0
        %3447 = vmatprep.subr.bf16.mxu0 0
        %3448 = vmatpush1.bf16.msra.mxu0 0
        %3449 = vmatprep.subr.bf16.mxu0 0
        %3450 = vmatpush1.bf16.msra.mxu0 0
        %3451 = vmatprep.subr.bf16.mxu0 0
        %3452 = vmatpush1.bf16.msra.mxu0 0
        %3453 = vmatprep.subr.bf16.mxu0 0
        %3454 = vmatpush1.bf16.msra.mxu0 0
        %3455 = vmatprep.subr.bf16.mxu0 0
        %3456 = vmatpush1.bf16.msra.mxu0 0
        %3457 = vmatprep.subr.bf16.mxu0 0
        %3458 = vmatpush1.bf16.msra.mxu0 0
        %3459 = vmatprep.subr.bf16.mxu0 0
        %3460 = vmatpush1.bf16.msra.mxu0 0
        %3461 = vmatprep.subr.bf16.mxu0 0
        %3462 = vmatpush1.bf16.msra.mxu0 0
        %3463 = vmatprep.subr.bf16.mxu0 0
        %3464 = vmatpush1.bf16.msra.mxu0 0
        %3465 = vmatprep.mubr.bf16.mxu0 0
        %3466 = vmatmul.mubr.bf16.gmra.mrb[0].mxu0 %v3428
        %v3467 = vpop.f32.mrb[0].mxu0
        %v3468 = vadd.f32 0.0, %v3467
        %v3469 = vpop.f32.mrb[0].mxu0
        %v3470 = vpop.f32.mrb[0].mxu0
        %v3471 = vpop.f32.mrb[0].mxu0
        %3472 = vdwg.mxu0
        %v3474 = vsel %vm1755, %v3420, 0
        %v3477 = vsel %vm1995, %v3424, 0
        %3479 = vmatprep.subr.bf16.mxu0 0
        %3480 = vmatpush1.bf16.msra.mxu0 %v3477
        %3481 = vmatprep.subr.bf16.mxu0 0
        %3482 = vmatpush1.bf16.msra.mxu0 0
        %3483 = vmatprep.subr.bf16.mxu0 0
        %3484 = vmatpush1.bf16.msra.mxu0 0
        %3485 = vmatprep.subr.bf16.mxu0 0
        %3486 = vmatpush1.bf16.msra.mxu0 0
        %3487 = vmatprep.subr.bf16.mxu0 0
        %3488 = vmatpush1.bf16.msra.mxu0 0
        %3489 = vmatprep.subr.bf16.mxu0 0
        %3490 = vmatpush1.bf16.msra.mxu0 0
        %3491 = vmatprep.subr.bf16.mxu0 0
        %3492 = vmatpush1.bf16.msra.mxu0 0
        %3493 = vmatprep.subr.bf16.mxu0 0
        %3494 = vmatpush1.bf16.msra.mxu0 0
        %3495 = vmatprep.subr.bf16.mxu0 0
        %3496 = vmatpush1.bf16.msra.mxu0 0
        %3497 = vmatprep.subr.bf16.mxu0 0
        %3498 = vmatpush1.bf16.msra.mxu0 0
        %3499 = vmatprep.subr.bf16.mxu0 0
        %3500 = vmatpush1.bf16.msra.mxu0 0
        %3501 = vmatprep.subr.bf16.mxu0 0
        %3502 = vmatpush1.bf16.msra.mxu0 0
        %3503 = vmatprep.subr.bf16.mxu0 0
        %3504 = vmatpush1.bf16.msra.mxu0 0
        %3505 = vmatprep.subr.bf16.mxu0 0
        %3506 = vmatpush1.bf16.msra.mxu0 0
        %3507 = vmatprep.subr.bf16.mxu0 0
        %3508 = vmatpush1.bf16.msra.mxu0 0
        %3509 = vmatprep.subr.bf16.mxu0 0
        %3510 = vmatpush1.bf16.msra.mxu0 0
        %3511 = vmatprep.mubr.bf16.mxu0 0
        %3512 = vmatmul.mubr.bf16.gmra.mrb[0].mxu0 %v3474
        %v3513 = vpop.f32.mrb[0].mxu0
        %v3514 = vadd.f32 0.0, %v3513
        %v3515 = vpop.f32.mrb[0].mxu0
        %v3516 = vpop.f32.mrb[0].mxu0
        %v3517 = vpop.f32.mrb[0].mxu0
        %3518 = vdwg.mxu0
        %v3520 = vsel %vm1755, %v3421, 0
        %v3523 = vsel %vm1995, %v3425, 0
        %3525 = vmatprep.subr.bf16.mxu0 0
        %3526 = vmatpush1.bf16.msra.mxu0 %v3523
        %3527 = vmatprep.subr.bf16.mxu0 0
        %3528 = vmatpush1.bf16.msra.mxu0 0
        %3529 = vmatprep.subr.bf16.mxu0 0
        %3530 = vmatpush1.bf16.msra.mxu0 0
        %3531 = vmatprep.subr.bf16.mxu0 0
        %3532 = vmatpush1.bf16.msra.mxu0 0
        %3533 = vmatprep.subr.bf16.mxu0 0
        %3534 = vmatpush1.bf16.msra.mxu0 0
        %3535 = vmatprep.subr.bf16.mxu0 0
        %3536 = vmatpush1.bf16.msra.mxu0 0
        %3537 = vmatprep.subr.bf16.mxu0 0
        %3538 = vmatpush1.bf16.msra.mxu0 0
        %3539 = vmatprep.subr.bf16.mxu0 0
        %3540 = vmatpush1.bf16.msra.mxu0 0
        %3541 = vmatprep.subr.bf16.mxu0 0
        %3542 = vmatpush1.bf16.msra.mxu0 0
        %3543 = vmatprep.subr.bf16.mxu0 0
        %3544 = vmatpush1.bf16.msra.mxu0 0
        %3545 = vmatprep.subr.bf16.mxu0 0
        %3546 = vmatpush1.bf16.msra.mxu0 0
        %3547 = vmatprep.subr.bf16.mxu0 0
        %3548 = vmatpush1.bf16.msra.mxu0 0
        %3549 = vmatprep.subr.bf16.mxu0 0
        %3550 = vmatpush1.bf16.msra.mxu0 0
        %3551 = vmatprep.subr.bf16.mxu0 0
        %3552 = vmatpush1.bf16.msra.mxu0 0
        %3553 = vmatprep.subr.bf16.mxu0 0
        %3554 = vmatpush1.bf16.msra.mxu0 0
        %3555 = vmatprep.subr.bf16.mxu0 0
        %3556 = vmatpush1.bf16.msra.mxu0 0
        %3557 = vmatprep.mubr.bf16.mxu0 0
        %3558 = vmatmul.mubr.bf16.gmra.mrb[0].mxu0 %v3520
        %v3559 = vpop.f32.mrb[0].mxu0
        %v3560 = vadd.f32 0.0, %v3559
        %v3561 = vpop.f32.mrb[0].mxu0
        %v3562 = vpop.f32.mrb[0].mxu0
        %v3563 = vpop.f32.mrb[0].mxu0
        %3564 = vdwg.mxu0
        %v3566 = vsel %vm1755, %v3422, 0
        %v3569 = vsel %vm1995, %v3426, 0
        %3571 = vmatprep.subr.bf16.mxu0 0
        %3572 = vmatpush1.bf16.msra.mxu0 %v3569
        %3573 = vmatprep.subr.bf16.mxu0 0
        %3574 = vmatpush1.bf16.msra.mxu0 0
        %3575 = vmatprep.subr.bf16.mxu0 0
        %3576 = vmatpush1.bf16.msra.mxu0 0
        %3577 = vmatprep.subr.bf16.mxu0 0
        %3578 = vmatpush1.bf16.msra.mxu0 0
        %3579 = vmatprep.subr.bf16.mxu0 0
        %3580 = vmatpush1.bf16.msra.mxu0 0
        %3581 = vmatprep.subr.bf16.mxu0 0
        %3582 = vmatpush1.bf16.msra.mxu0 0
        %3583 = vmatprep.subr.bf16.mxu0 0
        %3584 = vmatpush1.bf16.msra.mxu0 0
        %3585 = vmatprep.subr.bf16.mxu0 0
        %3586 = vmatpush1.bf16.msra.mxu0 0
        %3587 = vmatprep.subr.bf16.mxu0 0
        %3588 = vmatpush1.bf16.msra.mxu0 0
        %3589 = vmatprep.subr.bf16.mxu0 0
        %3590 = vmatpush1.bf16.msra.mxu0 0
        %3591 = vmatprep.subr.bf16.mxu0 0
        %3592 = vmatpush1.bf16.msra.mxu0 0
        %3593 = vmatprep.subr.bf16.mxu0 0
        %3594 = vmatpush1.bf16.msra.mxu0 0
        %3595 = vmatprep.subr.bf16.mxu0 0
        %3596 = vmatpush1.bf16.msra.mxu0 0
        %3597 = vmatprep.subr.bf16.mxu0 0
        %3598 = vmatpush1.bf16.msra.mxu0 0
        %3599 = vmatprep.subr.bf16.mxu0 0
        %3600 = vmatpush1.bf16.msra.mxu0 0
        %3601 = vmatprep.subr.bf16.mxu0 0
        %3602 = vmatpush1.bf16.msra.mxu0 0
        %3603 = vmatprep.mubr.bf16.mxu0 0
        %3604 = vmatmul.mubr.bf16.gmra.mrb[0].mxu0 %v3566
        %v3605 = vpop.f32.mrb[0].mxu0
        %v3606 = vadd.f32 0.0, %v3605
        %v3607 = vpop.f32.mrb[0].mxu0
        %v3608 = vpop.f32.mrb[0].mxu0
        %v3609 = vpop.f32.mrb[0].mxu0
        %3610 = vdwg.mxu0
        %v3611 = vpack.c.bf16 %v3468, %v3468
        %v3612 = vpack.c.bf16 %v3514, %v3514
        %v3613 = vpack.c.bf16 %v3560, %v3560
        %v3614 = vpack.c.bf16 %v3606, %v3606
        %v3615 = vld [vmem:[%s41] sm:$0xf]
        %v3616 = vld [vmem:[%s41 + $0x4] sm:$0xf]
        %v3617 = vld [vmem:[%s41 + $0x8] sm:$0xf]
        %v3618 = vld [vmem:[%s41 + $0xc] sm:$0xf]
        %v3620 = vsel %vm1755, %v3611, 0
        %v3623 = vsel %vm1995, %v3615, 0
        %3625 = vmatprep.subr.bf16.mxu0 0
        %3626 = vmatpush1.bf16.msra.mxu0 %v3623
        %3627 = vmatprep.subr.bf16.mxu0 0
        %3628 = vmatpush1.bf16.msra.mxu0 0
        %3629 = vmatprep.subr.bf16.mxu0 0
        %3630 = vmatpush1.bf16.msra.mxu0 0
        %3631 = vmatprep.subr.bf16.mxu0 0
        %3632 = vmatpush1.bf16.msra.mxu0 0
        %3633 = vmatprep.subr.bf16.mxu0 0
        %3634 = vmatpush1.bf16.msra.mxu0 0
        %3635 = vmatprep.subr.bf16.mxu0 0
        %3636 = vmatpush1.bf16.msra.mxu0 0
        %3637 = vmatprep.subr.bf16.mxu0 0
        %3638 = vmatpush1.bf16.msra.mxu0 0
        %3639 = vmatprep.subr.bf16.mxu0 0
        %3640 = vmatpush1.bf16.msra.mxu0 0
        %3641 = vmatprep.subr.bf16.mxu0 0
        %3642 = vmatpush1.bf16.msra.mxu0 0
        %3643 = vmatprep.subr.bf16.mxu0 0
        %3644 = vmatpush1.bf16.msra.mxu0 0
        %3645 = vmatprep.subr.bf16.mxu0 0
        %3646 = vmatpush1.bf16.msra.mxu0 0
        %3647 = vmatprep.subr.bf16.mxu0 0
        %3648 = vmatpush1.bf16.msra.mxu0 0
        %3649 = vmatprep.subr.bf16.mxu0 0
        %3650 = vmatpush1.bf16.msra.mxu0 0
        %3651 = vmatprep.subr.bf16.mxu0 0
        %3652 = vmatpush1.bf16.msra.mxu0 0
        %3653 = vmatprep.subr.bf16.mxu0 0
        %3654 = vmatpush1.bf16.msra.mxu0 0
        %3655 = vmatprep.subr.bf16.mxu0 0
        %3656 = vmatpush1.bf16.msra.mxu0 0
        %3657 = vmatprep.mubr.bf16.mxu0 0
        %3658 = vmatmul.mubr.bf16.gmra.mrb[0].mxu0 %v3620
        %v3659 = vpop.f32.mrb[0].mxu0
        %v3660 = vadd.f32 0.0, %v3659
        %v3661 = vpop.f32.mrb[0].mxu0
        %v3662 = vpop.f32.mrb[0].mxu0
        %v3663 = vpop.f32.mrb[0].mxu0
        %3664 = vdwg.mxu0
        %v3666 = vsel %vm1755, %v3612, 0
        %v3669 = vsel %vm1995, %v3616, 0
        %3671 = vmatprep.subr.bf16.mxu0 0
        %3672 = vmatpush1.bf16.msra.mxu0 %v3669
        %3673 = vmatprep.subr.bf16.mxu0 0
        %3674 = vmatpush1.bf16.msra.mxu0 0
        %3675 = vmatprep.subr.bf16.mxu0 0
        %3676 = vmatpush1.bf16.msra.mxu0 0
        %3677 = vmatprep.subr.bf16.mxu0 0
        %3678 = vmatpush1.bf16.msra.mxu0 0
        %3679 = vmatprep.subr.bf16.mxu0 0
        %3680 = vmatpush1.bf16.msra.mxu0 0
        %3681 = vmatprep.subr.bf16.mxu0 0
        %3682 = vmatpush1.bf16.msra.mxu0 0
        %3683 = vmatprep.subr.bf16.mxu0 0
        %3684 = vmatpush1.bf16.msra.mxu0 0
        %3685 = vmatprep.subr.bf16.mxu0 0
        %3686 = vmatpush1.bf16.msra.mxu0 0
        %3687 = vmatprep.subr.bf16.mxu0 0
        %3688 = vmatpush1.bf16.msra.mxu0 0
        %3689 = vmatprep.subr.bf16.mxu0 0
        %3690 = vmatpush1.bf16.msra.mxu0 0
        %3691 = vmatprep.subr.bf16.mxu0 0
        %3692 = vmatpush1.bf16.msra.mxu0 0
        %3693 = vmatprep.subr.bf16.mxu0 0
        %3694 = vmatpush1.bf16.msra.mxu0 0
        %3695 = vmatprep.subr.bf16.mxu0 0
        %3696 = vmatpush1.bf16.msra.mxu0 0
        %3697 = vmatprep.subr.bf16.mxu0 0
        %3698 = vmatpush1.bf16.msra.mxu0 0
        %3699 = vmatprep.subr.bf16.mxu0 0
        %3700 = vmatpush1.bf16.msra.mxu0 0
        %3701 = vmatprep.subr.bf16.mxu0 0
        %3702 = vmatpush1.bf16.msra.mxu0 0
        %3703 = vmatprep.mubr.bf16.mxu0 0
        %3704 = vmatmul.mubr.bf16.gmra.mrb[0].mxu0 %v3666
        %v3705 = vpop.f32.mrb[0].mxu0
        %v3706 = vadd.f32 0.0, %v3705
        %v3707 = vpop.f32.mrb[0].mxu0
        %v3708 = vpop.f32.mrb[0].mxu0
        %v3709 = vpop.f32.mrb[0].mxu0
        %3710 = vdwg.mxu0
        %v3712 = vsel %vm1755, %v3613, 0
        %v3715 = vsel %vm1995, %v3617, 0
        %3717 = vmatprep.subr.bf16.mxu0 0
        %3718 = vmatpush1.bf16.msra.mxu0 %v3715
        %3719 = vmatprep.subr.bf16.mxu0 0
        %3720 = vmatpush1.bf16.msra.mxu0 0
        %3721 = vmatprep.subr.bf16.mxu0 0
        %3722 = vmatpush1.bf16.msra.mxu0 0
        %3723 = vmatprep.subr.bf16.mxu0 0
        %3724 = vmatpush1.bf16.msra.mxu0 0
        %3725 = vmatprep.subr.bf16.mxu0 0
        %3726 = vmatpush1.bf16.msra.mxu0 0
        %3727 = vmatprep.subr.bf16.mxu0 0
        %3728 = vmatpush1.bf16.msra.mxu0 0
        %3729 = vmatprep.subr.bf16.mxu0 0
        %3730 = vmatpush1.bf16.msra.mxu0 0
        %3731 = vmatprep.subr.bf16.mxu0 0
        %3732 = vmatpush1.bf16.msra.mxu0 0
        %3733 = vmatprep.subr.bf16.mxu0 0
        %3734 = vmatpush1.bf16.msra.mxu0 0
        %3735 = vmatprep.subr.bf16.mxu0 0
        %3736 = vmatpush1.bf16.msra.mxu0 0
        %3737 = vmatprep.subr.bf16.mxu0 0
        %3738 = vmatpush1.bf16.msra.mxu0 0
        %3739 = vmatprep.subr.bf16.mxu0 0
        %3740 = vmatpush1.bf16.msra.mxu0 0
        %3741 = vmatprep.subr.bf16.mxu0 0
        %3742 = vmatpush1.bf16.msra.mxu0 0
        %3743 = vmatprep.subr.bf16.mxu0 0
        %3744 = vmatpush1.bf16.msra.mxu0 0
        %3745 = vmatprep.subr.bf16.mxu0 0
        %3746 = vmatpush1.bf16.msra.mxu0 0
        %3747 = vmatprep.subr.bf16.mxu0 0
        %3748 = vmatpush1.bf16.msra.mxu0 0
        %3749 = vmatprep.mubr.bf16.mxu0 0
        %3750 = vmatmul.mubr.bf16.gmra.mrb[0].mxu0 %v3712
        %v3751 = vpop.f32.mrb[0].mxu0
        %v3752 = vadd.f32 0.0, %v3751
        %v3753 = vpop.f32.mrb[0].mxu0
        %v3754 = vpop.f32.mrb[0].mxu0
        %v3755 = vpop.f32.mrb[0].mxu0
        %3756 = vdwg.mxu0
        %v3758 = vsel %vm1755, %v3614, 0
        %v3761 = vsel %vm1995, %v3618, 0
        %3763 = vmatprep.subr.bf16.mxu0 0
        %3764 = vmatpush1.bf16.msra.mxu0 %v3761
        %3765 = vmatprep.subr.bf16.mxu0 0
        %3766 = vmatpush1.bf16.msra.mxu0 0
        %3767 = vmatprep.subr.bf16.mxu0 0
        %3768 = vmatpush1.bf16.msra.mxu0 0
        %3769 = vmatprep.subr.bf16.mxu0 0
        %3770 = vmatpush1.bf16.msra.mxu0 0
        %3771 = vmatprep.subr.bf16.mxu0 0
        %3772 = vmatpush1.bf16.msra.mxu0 0
        %3773 = vmatprep.subr.bf16.mxu0 0
        %3774 = vmatpush1.bf16.msra.mxu0 0
        %3775 = vmatprep.subr.bf16.mxu0 0
        %3776 = vmatpush1.bf16.msra.mxu0 0
        %3777 = vmatprep.subr.bf16.mxu0 0
        %3778 = vmatpush1.bf16.msra.mxu0 0
        %3779 = vmatprep.subr.bf16.mxu0 0
        %3780 = vmatpush1.bf16.msra.mxu0 0
        %3781 = vmatprep.subr.bf16.mxu0 0
        %3782 = vmatpush1.bf16.msra.mxu0 0
        %3783 = vmatprep.subr.bf16.mxu0 0
        %3784 = vmatpush1.bf16.msra.mxu0 0
        %3785 = vmatprep.subr.bf16.mxu0 0
        %3786 = vmatpush1.bf16.msra.mxu0 0
        %3787 = vmatprep.subr.bf16.mxu0 0
        %3788 = vmatpush1.bf16.msra.mxu0 0
        %3789 = vmatprep.subr.bf16.mxu0 0
        %3790 = vmatpush1.bf16.msra.mxu0 0
        %3791 = vmatprep.subr.bf16.mxu0 0
        %3792 = vmatpush1.bf16.msra.mxu0 0
        %3793 = vmatprep.subr.bf16.mxu0 0
        %3794 = vmatpush1.bf16.msra.mxu0 0
        %3795 = vmatprep.mubr.bf16.mxu0 0
        %3796 = vmatmul.mubr.bf16.gmra.mrb[0].mxu0 %v3758
        %v3797 = vpop.f32.mrb[0].mxu0
        %v3798 = vadd.f32 0.0, %v3797
        %v3799 = vpop.f32.mrb[0].mxu0
        %v3800 = vpop.f32.mrb[0].mxu0
        %v3801 = vpop.f32.mrb[0].mxu0
        %3802 = vdwg.mxu0
        %v3803 = vsel %vm1039, %v3660, 0.0
        %v3804 = vsel %vm1039, %v3706, 0.0
        %v3805 = vadd.f32 %v3803, %v3804
        %v3806 = vsel %vm1039, %v3752, 0.0
        %v3807 = vadd.f32 %v3805, %v3806
        %v3808 = vsel %vm1039, %v3798, 0.0
        %v3809 = vadd.f32 %v3807, %v3808
        %v3810 = vld [vmem:[%s43] sm:$0x1]
        %v3812 = vlaneseq
        %v3813 = vshrl.u32 %v3812, 7
        %v3814 = vsub.s32 0, %v3813
        %v3815 = vrot.slane %v3810, %v3814
        %v3817 = vadd.f32 %v3809, %v3815
        %v3818 = vadd.f32 %v3817, %v2414
        %v3819 = vld [vmem:[%s45] sm:$0x1]
        %v3820 = vld [vmem:[%s47] sm:$0x1]
        %v3821 = vsel %vm1039, %v3818, 0.0
        %3822 = vadd.xlane.f32.xlu0 %v3821
        %v3823 = vpop.xlane.xlu0 %3822
        %v3824 = vmul.f32 %v3823, %v2390
        %v3825 = vsub.f32 %v3818, %v3824
        %v3826 = vmul.f32 %v3825, %v3825
        %v3827 = vsel %vm1039, %v3826, 0.0
        %3828 = vadd.xlane.f32.xlu0 %v3827
        %v3829 = vpop.xlane.xlu0 %3828
        %v3830 = vmul.f32 %v3829, %v2390
        %v3831 = vadd.f32 %v3830, 1e-05
        %v3832 = vrsqrt.pop %v3831
        %v3833 = vmul.f32 %v3825, %v3832
        %v3835 = vlaneseq
        %v3836 = vshrl.u32 %v3835, 7
        %v3837 = vsub.s32 0, %v3836
        %v3838 = vrot.slane %v3819, %v3837
        %v3840 = vmul.f32 %v3838, %v3833
        %v3842 = vlaneseq
        %v3843 = vshrl.u32 %v3842, 7
        %v3844 = vsub.s32 0, %v3843
        %v3845 = vrot.slane %v3820, %v3844
        %v3847 = vadd.f32 %v3840, %v3845
        %v3848 = vpack.c.bf16 %v3847, %v3847
        %v3849 = vld [vmem:[%s49] sm:$0xf]
        %v3850 = vld [vmem:[%s49 + $0x4] sm:$0xf]
        %v3851 = vld [vmem:[%s49 + $0x8] sm:$0xf]
        %v3852 = vld [vmem:[%s49 + $0xc] sm:$0xf]
        %v3853 = vld [vmem:[%s51] sm:$0x1]
        %v3855 = vlaneseq
        %v3856 = vshrl.u32 %v3855, 7
        %v3857 = vsub.s32 0, %v3856
        %v3858 = vrot.slane %v3853, %v3857
        %v3864 = vunpack.c.l.b16 %v3849
        %v3865 = vunpack.c.l.b16 %v3850
        %v3866 = vunpack.c.l.b16 %v3851
        %v3867 = vunpack.c.l.b16 %v3852
        %v3868 = vpack.c.b16 %v3865, %v3864
        %v3869 = vpack.c.b16 %v3867, %v3866
        %v3873 = vsel %vm1039, %v3848, 0
        %3875 = vmatprep.subr.bf16.mxu0 0
        %3876 = vmatpush1.bf16.msra.mxu0 %v3868
        %3877 = vmatprep.subr.bf16.mxu0 0
        %3878 = vmatpush1.bf16.msra.mxu0 %v3869
        %3879 = vmatprep.subr.bf16.mxu0 0
        %3880 = vmatpush1.bf16.msra.mxu0 0
        %3881 = vmatprep.subr.bf16.mxu0 0
        %3882 = vmatpush1.bf16.msra.mxu0 0
        %3883 = vmatprep.subr.bf16.mxu0 0
        %3884 = vmatpush1.bf16.msra.mxu0 0
        %3885 = vmatprep.subr.bf16.mxu0 0
        %3886 = vmatpush1.bf16.msra.mxu0 0
        %3887 = vmatprep.subr.bf16.mxu0 0
        %3888 = vmatpush1.bf16.msra.mxu0 0
        %3889 = vmatprep.subr.bf16.mxu0 0
        %3890 = vmatpush1.bf16.msra.mxu0 0
        %3891 = vmatprep.subr.bf16.mxu0 0
        %3892 = vmatpush1.bf16.msra.mxu0 0
        %3893 = vmatprep.subr.bf16.mxu0 0
        %3894 = vmatpush1.bf16.msra.mxu0 0
        %3895 = vmatprep.subr.bf16.mxu0 0
        %3896 = vmatpush1.bf16.msra.mxu0 0
        %3897 = vmatprep.subr.bf16.mxu0 0
        %3898 = vmatpush1.bf16.msra.mxu0 0
        %3899 = vmatprep.subr.bf16.mxu0 0
        %3900 = vmatpush1.bf16.msra.mxu0 0
        %3901 = vmatprep.subr.bf16.mxu0 0
        %3902 = vmatpush1.bf16.msra.mxu0 0
        %3903 = vmatprep.subr.bf16.mxu0 0
        %3904 = vmatpush1.bf16.msra.mxu0 0
        %3905 = vmatprep.subr.bf16.mxu0 0
        %3906 = vmatpush1.bf16.msra.mxu0 0
        %3907 = vmatprep.mubr.bf16.mxu0 0
        %3908 = vmatmul.mubr.bf16.gmra.mrb[0].mxu0 %v3873
        %v3909 = vpop.f32.mrb[0].mxu0
        %v3910 = vadd.f32 %v3858, %v3909
        %v3911 = vpop.f32.mrb[0].mxu0
        %v3912 = vpop.f32.mrb[0].mxu0
        %v3913 = vpop.f32.mrb[0].mxu0
        %3914 = vdwg.mxu0
        %v3915 = vmax.f32 %v3910, 0.0
        %v3916 = vpack.c.bf16 %v3915, %v3915
        %v3917 = vld [vmem:[%s53] sm:$0xf]
        %v3918 = vld [vmem:[%s53 + $0x4] sm:$0xf]
        %v3919 = vld [vmem:[%s53 + $0x8] sm:$0xf]
        %v3920 = vld [vmem:[%s53 + $0xc] sm:$0xf]
        %v3921 = vld [vmem:[%s53 + $0x10] sm:$0xf]
        %v3922 = vld [vmem:[%s53 + $0x14] sm:$0xf]
        %v3923 = vld [vmem:[%s53 + $0x18] sm:$0xf]
        %v3924 = vld [vmem:[%s53 + $0x1c] sm:$0xf]
        %v3925 = vld [vmem:[%s55] sm:$0x1]
        %v3927 = vlaneseq
        %v3928 = vshrl.u32 %v3927, 7
        %v3929 = vsub.s32 0, %v3928
        %v3930 = vrot.slane %v3925, %v3929
        %v3940 = vunpack.c.l.b16 %v3917
        %v3941 = vunpack.c.l.b16 %v3918
        %v3942 = vunpack.c.l.b16 %v3919
        %v3943 = vunpack.c.l.b16 %v3920
        %v3944 = vunpack.c.l.b16 %v3921
        %v3945 = vunpack.c.l.b16 %v3922
        %v3946 = vunpack.c.l.b16 %v3923
        %v3947 = vunpack.c.l.b16 %v3924
        %v3948 = vpack.c.b16 %v3941, %v3940
        %v3949 = vpack.c.b16 %v3943, %v3942
        %v3950 = vpack.c.b16 %v3945, %v3944
        %v3951 = vpack.c.b16 %v3947, %v3946
        %vm3956 = vcmask 523264
        %v3958 = vsel %vm3956, %v3916, 0
        %3960 = vmatprep.subr.bf16.mxu0 0
        %3961 = vmatpush1.bf16.msra.mxu0 %v3948
        %3962 = vmatprep.subr.bf16.mxu0 0
        %3963 = vmatpush1.bf16.msra.mxu0 %v3949
        %3964 = vmatprep.subr.bf16.mxu0 0
        %3965 = vmatpush1.bf16.msra.mxu0 %v3950
        %3966 = vmatprep.subr.bf16.mxu0 0
        %3967 = vmatpush1.bf16.msra.mxu0 %v3951
        %3968 = vmatprep.subr.bf16.mxu0 0
        %3969 = vmatpush1.bf16.msra.mxu0 0
        %3970 = vmatprep.subr.bf16.mxu0 0
        %3971 = vmatpush1.bf16.msra.mxu0 0
        %3972 = vmatprep.subr.bf16.mxu0 0
        %3973 = vmatpush1.bf16.msra.mxu0 0
        %3974 = vmatprep.subr.bf16.mxu0 0
        %3975 = vmatpush1.bf16.msra.mxu0 0
        %3976 = vmatprep.subr.bf16.mxu0 0
        %3977 = vmatpush1.bf16.msra.mxu0 0
        %3978 = vmatprep.subr.bf16.mxu0 0
        %3979 = vmatpush1.bf16.msra.mxu0 0
        %3980 = vmatprep.subr.bf16.mxu0 0
        %3981 = vmatpush1.bf16.msra.mxu0 0
        %3982 = vmatprep.subr.bf16.mxu0 0
        %3983 = vmatpush1.bf16.msra.mxu0 0
        %3984 = vmatprep.subr.bf16.mxu0 0
        %3985 = vmatpush1.bf16.msra.mxu0 0
        %3986 = vmatprep.subr.bf16.mxu0 0
        %3987 = vmatpush1.bf16.msra.mxu0 0
        %3988 = vmatprep.subr.bf16.mxu0 0
        %3989 = vmatpush1.bf16.msra.mxu0 0
        %3990 = vmatprep.subr.bf16.mxu0 0
        %3991 = vmatpush1.bf16.msra.mxu0 0
        %3992 = vmatprep.mubr.bf16.mxu0 0
        %3993 = vmatmul.mubr.bf16.gmra.mrb[0].mxu0 %v3958
        %v3994 = vpop.f32.mrb[0].mxu0
        %v3995 = vadd.f32 %v3930, %v3994
        %v3996 = vpop.f32.mrb[0].mxu0
        %v3997 = vpop.f32.mrb[0].mxu0
        %v3998 = vpop.f32.mrb[0].mxu0
        %3999 = vdwg.mxu0
        %v4000 = vadd.f32 %v3995, %v3847
        %v4001 = vld [vmem:[%s57] sm:$0x1]
        %v4002 = vld [vmem:[%s59] sm:$0x1]
        %v4003 = vsel %vm1039, %v4000, 0.0
        %4004 = vadd.xlane.f32.xlu0 %v4003
        %v4005 = vpop.xlane.xlu0 %4004
        %v4006 = vmul.f32 %v4005, %v2390
        %v4007 = vsub.f32 %v4000, %v4006
        %v4008 = vmul.f32 %v4007, %v4007
        %v4009 = vsel %vm1039, %v4008, 0.0
        %4010 = vadd.xlane.f32.xlu0 %v4009
        %v4011 = vpop.xlane.xlu0 %4010
        %v4012 = vmul.f32 %v4011, %v2390
        %v4013 = vadd.f32 %v4012, 1e-05
        %v4014 = vrsqrt.pop %v4013
        %v4015 = vmul.f32 %v4007, %v4014
        %v4017 = vlaneseq
        %v4018 = vshrl.u32 %v4017, 7
        %v4019 = vsub.s32 0, %v4018
        %v4020 = vrot.slane %v4001, %v4019
        %v4022 = vmul.f32 %v4020, %v4015
        %v4024 = vlaneseq
        %v4025 = vshrl.u32 %v4024, 7
        %v4026 = vsub.s32 0, %v4025
        %v4027 = vrot.slane %v4002, %v4026
        %v4029 = vadd.f32 %v4022, %v4027
        %4030 = vst.msk [vmem:[%s960] sm:$0xff] %vm1039, %v4029
        %s4031 = sand.u32 %s733, 1
        %s4032 = scalar_lea.sflag [#allocation3], %s4031
        %s4033 = sand.u32 %s733, 1
        %s4034 = smul.addr %s4033, 8
        %s4035 = scalar_lea.vmem [#allocation2], %s4034
        // Predicated region
        $region141: #{decoder_layer.1} parent=139 // pred_check
          %p4036 = pneg %p743
        $region142: #{decoder_layer.1} parent=139 // pred_check_branch
          %4038 = sbr.rel (%p4036) target = $region144
        $region143: #{decoder_layer.1} parent=139 // pred_region
          %s4040 = ssub.s32 128, 128
          %4041 = vsyncadd %s4032, %s4040
          %s4042 = smul.addr %s75, 128
          %s4043 = scalar_lea.hbm %s61, %s4042
          %s4045 = sshll.u32 %s4035, 4
          %s4046 = int_to_ptr.vmem [resolvable:$true] %s4045
          %4048 = dma.vmem_to_hbm [thread:$0]  %s4046, 128, %s4043, %s4032
        $region144: #{decoder_layer.1} parent=139 // pred_fallthru
          _
      $region140: #{decoder_layer.1} parent=5 // pred_fallthru
        _
      %p4049 = scmp.le.s32.totalorder 2, %s70
      // Predicated region
      $region145: #{decoder_layer.1} parent=5 // pred_check
        %p4050 = pneg %p4049
      $region146: #{decoder_layer.1} parent=5 // pred_check_branch
        %4052 = sbr.rel (%p4050) target = $region148
      $region147: #{decoder_layer.1} parent=5 // pred_region
        %s4053 = ssub.s32 %s70, 2
        // Predicated region
        $region149: #{decoder_layer.1} parent=147 // pred_check
          %p4054 = pneg %p749
        $region150: #{decoder_layer.1} parent=147 // pred_check_branch
          %4056 = sbr.rel (%p4054) target = $region152
        $region151: #{decoder_layer.1} parent=147 // pred_region
          %s4057 = sand.u32 %s734, 1
          %s4058 = scalar_lea.sflag [#allocation3], %s4057
          %s4059 = sand.u32 %s734, 1
          %s4060 = smul.addr %s4059, 8
          %s4061 = scalar_lea.vmem [#allocation2], %s4060
          %4062 = dma.done %s4058, 128
        $region152: #{decoder_layer.1} parent=147 // pred_fallthru
          _
      $region148: #{decoder_layer.1} parent=5 // pred_fallthru
        _
    $region6: #{decoder_layer.1} parent=1 // loop_footer
      %s74 = sadd.s32 1, %s70
    $region7: #{decoder_layer.1} parent=1 // loop_footer_branch
      %69 = sbr.rel target = $region3
    $region8: #{decoder_layer.1} parent=1 // loop_exit
      _
    %4063 = vsyncpa [#allocation3], 1
    %s4064 = scalar_lea.sflag [#allocation3], 1
    %4065 = vsyncpa %s4064, 1

</llo_original>
